<compile_context>
chip_gen: v5e
topology: v5e:2x2
jax: 0.10.0
libtpu: 0.0.40
codegen_flags: <defaults>
</compile_context>

<pallas_src>
import functools
import math

import jax
import jax.numpy as jnp
import numpy as np
from jax.experimental import pallas as pl
from jax.experimental.pallas import tpu as pltpu

LEAKY_GIN = 0.01   # F.leaky_relu default slope (edge processor + after each GIN layer)
LEAKY_ENC = 0.1    # nn.LeakyReLU(0.1) in node_encoder


def _leaky(x, slope):
    return jnp.where(x > 0, x, slope * x)


# --------------------------------------------------------------------------- #
# Fused kernel: one grid step == one batch tile, full forward pass.            #
# --------------------------------------------------------------------------- #
def _fused_kernel(na_ref, ea1_ref, ea2_ref, adjx_ref,
                  enc_ref, webd_ref, wrc_ref, wrabe_ref, wsc_ref, wsa_ref,
                  wnc_ref, wnab_ref, wng_ref,
                  summ_ref, bdm_ref, onesb_ref, sel_ref,
                  w1_ref, b1_ref, w2_ref, b2_ref, w3_ref, b3_ref,
                  out_ref, *, L):
    f32 = jnp.float32
    nL = 2 * L

    na = na_ref[...]          # (M, Da+1)   node_attr with a ones column (bias trick)
    adjx = adjx_ref[...]      # (M, N*H)    adj, H-expanded along lanes
    summ = summ_ref[...]      # (N*H, H)    stacked identities: sum over sender blocks
    bdm = bdm_ref[...]        # (M, N*H)    block-diag mask: (row % N) == lane block
    onesb = onesb_ref[...]    # (M, M)      ones within each batch element's NxN block

    # ---- node encoder: Linear(Da, H) + LeakyReLU(0.1) (bias via ones column) --
    nc = _leaky(jnp.dot(na, enc_ref[...], preferred_element_type=f32), LEAKY_ENC)

    # ---- hoisted nc-independent per-layer terms (off the serial GIN chain) ----
    ea = (ea1_ref[...], ea2_ref[...])                       # (M, N*De) each
    ea_proj = [jnp.dot(ea[l // L], webd_ref[l], preferred_element_type=f32)
               for l in range(nL)]                          # (M, N*H)
    na_recv = [jnp.dot(na, wrabe_ref[l], preferred_element_type=f32)
               for l in range(nL)]                          # (M, N*H)  (edge bias folded)
    na_send = [jnp.dot(na, wsa_ref[l], preferred_element_type=f32)
               for l in range(nL)]                          # (M, N*H)
    na_node = [jnp.dot(na, wnab_ref[l], preferred_element_type=f32)
               for l in range(nL)]                          # (M, H)    (node bias folded)

    # ---- 2L GraphInteractionLayer_4input + GIN post-layer leaky_relu ---------
    for l in range(nL):
        # receiver term, already lane-tiled N times via the tiled weight
        recv = jnp.dot(nc, wrc_ref[l], preferred_element_type=f32) + na_recv[l]   # (M, N*H)
        # sender term: lane-tiled, then placed on the block diagonal and
        # broadcast to every receiver row of the same batch element via a
        # constant 0/1 matmul (no in-kernel reshape).
        send_t = jnp.dot(nc, wsc_ref[l], preferred_element_type=f32) + na_send[l]  # (M, N*H)
        send = jnp.dot(onesb, send_t * bdm, preferred_element_type=f32)            # (M, N*H)

        edge_code = _leaky(ea_proj[l] + recv + send, LEAKY_GIN)                    # (M, N*H)
        edge_agg = jnp.dot(edge_code * adjx, summ, preferred_element_type=f32)     # (M, H)

        nc = _leaky(jnp.dot(nc, wnc_ref[l], preferred_element_type=f32)
                    + jnp.dot(edge_agg, wng_ref[l], preferred_element_type=f32)
                    + na_node[l], LEAKY_GIN)                                       # (M, H)

    # ---- readout head: cat(nc[:,0],nc[:,1],nc[:,2]) -> lin1 -> lin2 -> output -
    # Row-selector matmuls pick node k of every batch row; w1 is row-split.
    h = b1_ref[...]                                                                # (1, 128)
    for k in range(3):
        rows_k = jnp.dot(sel_ref[k], nc, preferred_element_type=f32)               # (Bt, H)
        h = h + jnp.dot(rows_k, w1_ref[k], preferred_element_type=f32)             # (Bt, 128)
    h = jnp.dot(h, w2_ref[...], preferred_element_type=f32) + b2_ref[...]
    h = jnp.dot(h, w3_ref[...], preferred_element_type=f32) + b3_ref[...]
    out_ref[...] = jax.nn.sigmoid(h).astype(out_ref.dtype)                         # (Bt, 1)


# --------------------------------------------------------------------------- #
# Wrapper: flattens/expands the data, builds constant selectors, one call.     #
# --------------------------------------------------------------------------- #
def seiral_gnn_4input_forward(kp, node_attr, edge_attr1, edge_attr2, adj, *,
                              batch_tiles=1):
    B, N, Da = node_attr.shape
    De = edge_attr1.shape[-1]
    H = kp["enc_wb"].shape[1]
    nL = kp["webd"].shape[0]
    L = nL // 2
    G = batch_tiles
    assert B % G == 0
    Bt = B // G
    M = Bt * N
    dt = jnp.float32

    # Data prep (cheap XLA ops, outside the kernel).
    na_aug = jnp.concatenate(
        [node_attr.reshape(B * N, Da).astype(dt), jnp.ones((B * N, 1), dt)], axis=1)
    ea1 = edge_attr1.reshape(B * N, N * De).astype(dt)
    ea2 = edge_attr2.reshape(B * N, N * De).astype(dt)
    adjx = jnp.broadcast_to(adj[:, :, :, None].astype(dt),
                            (B, N, N, H)).reshape(B * N, N * H)

    # Small constant 0/1 matrices (baked in; pure functions of static shapes).
    row_node = np.arange(M) % N
    col_node = np.arange(N * H) // H
    bdm = jnp.asarray(row_node[:, None] == col_node[None, :], dt)        # (M, N*H)
    row_b = np.arange(M) // N
    onesb = jnp.asarray(row_b[:, None] == row_b[None, :], dt)            # (M, M)
    sel_np = np.zeros((3, Bt, M), np.float32)
    for k in range(3):
        sel_np[k, np.arange(Bt), np.arange(Bt) * N + k] = 1.0
    sel = jnp.asarray(sel_np)                                            # (3, Bt, M)

    def _const_spec(a):
        nd = a.ndim
        def im(g, _nd=nd):
            return (0,) * _nd
        return pl.BlockSpec(a.shape, im)

    in_specs = [
        pl.BlockSpec((M, Da + 1), lambda g: (g, 0)),       # na_aug
        pl.BlockSpec((M, N * De), lambda g: (g, 0)),       # edge_attr1 (flat)
        pl.BlockSpec((M, N * De), lambda g: (g, 0)),       # edge_attr2 (flat)
        pl.BlockSpec((M, N * H), lambda g: (g, 0)),        # adj (H-expanded)
        _const_spec(kp["enc_wb"]),
        _const_spec(kp["webd"]),
        _const_spec(kp["wrc"]),
        _const_spec(kp["wrabe"]),
        _const_spec(kp["wsc"]),
        _const_spec(kp["wsa"]),
        _const_spec(kp["wnc"]),
        _const_spec(kp["wnab"]),
        _const_spec(kp["wng"]),
        _const_spec(kp["summ"]),
        _const_spec(bdm),
        _const_spec(onesb),
        _const_spec(sel),
        _const_spec(kp["w1blk"]),
        _const_spec(kp["b1"]),
        _const_spec(kp["w2"]),
        _const_spec(kp["b2"]),
        _const_spec(kp["w3"]),
        _const_spec(kp["b3"]),
    ]

    out = pl.pallas_call(
        functools.partial(_fused_kernel, L=L),
        out_shape=jax.ShapeDtypeStruct((B, 1), jnp.float32),
        grid=(G,),
        in_specs=in_specs,
        out_specs=pl.BlockSpec((Bt, 1), lambda g: (g, 0)),
        compiler_params=pltpu.CompilerParams(
            dimension_semantics=("parallel",)),
    )(na_aug, ea1, ea2, adjx,
      kp["enc_wb"], kp["webd"], kp["wrc"], kp["wrabe"], kp["wsc"], kp["wsa"],
      kp["wnc"], kp["wnab"], kp["wng"], kp["summ"], bdm, onesb, sel,
      kp["w1blk"], kp["b1"], kp["w2"], kp["b2"], kp["w3"], kp["b3"])
    return out


# --------------------------------------------------------------------------- #
# Parameters: PyTorch-style logical params + kernel-layout packing.            #
# --------------------------------------------------------------------------- #
def _linear_init(key, fan_in, fan_out):
    kw, kb = jax.random.split(key)
    bound = 1.0 / math.sqrt(fan_in)
    w = jax.random.uniform(kw, (fan_in, fan_out), jnp.float32, -bound, bound)
    b = jax.random.uniform(kb, (fan_out,), jnp.float32, -bound, bound)
    return w, b


def make_params(key, *, nhid, n_node_attr, n_edge_attr, gnn_layers):
    H, Da, De, L = nhid, n_node_attr, n_edge_attr, gnn_layers
    nL = 2 * L
    keys = jax.random.split(key, 1 + nL + 3)
    enc_w, enc_b = _linear_init(keys[0], Da, H)
    we_full, be, wn_full, bn = [], [], [], []
    for i in range(nL):
        ke, kn = jax.random.split(keys[1 + i])
        w, b = _linear_init(ke, De + 2 * (H + Da), H)   # edge_processor
        we_full.append(w); be.append(b)
        w, b = _linear_init(kn, H + Da + H, H)          # node_processor
        wn_full.append(w); bn.append(b)
    w1, b1 = _linear_init(keys[1 + nL], 3 * H, 128)
    w2, b2 = _linear_init(keys[2 + nL], 128, 64)
    w3, b3 = _linear_init(keys[3 + nL], 64, 1)
    return dict(enc_w=enc_w, enc_b=enc_b,
                we_full=jnp.stack(we_full), be=jnp.stack(be),
                wn_full=jnp.stack(wn_full), bn=jnp.stack(bn),
                w1=w1, b1=b1, w2=w2, b2=b2, w3=w3, b3=b3)


def pack_params(params, N):
    """Pre-split / tile / block-diagonalize the weights into the kernel layout."""
    enc_w, enc_b = params["enc_w"], params["enc_b"]
    we_full, be = params["we_full"], params["be"]
    wn_full, bn = params["wn_full"], params["bn"]
    Da, H = enc_w.shape
    nL = we_full.shape[0]
    De = we_full.shape[1] - 2 * (H + Da)
    f32 = jnp.float32

    # edge_processor input layout: [edge_attr | recv(code,attr) | send(code,attr)]
    w_e = we_full[:, :De]                                   # (nL, De, H)
    w_rc = we_full[:, De:De + H]                            # (nL, H,  H)
    w_ra = we_full[:, De + H:De + H + Da]                   # (nL, Da, H)
    w_sc = we_full[:, De + H + Da:De + 2 * H + Da]          # (nL, H,  H)
    w_sa = we_full[:, De + 2 * H + Da:]                     # (nL, Da, H)
    # node_processor input layout: [node_code | node_attr | edge_agg]
    wn_c = wn_full[:, :H]
    wn_a = wn_full[:, H:H + Da]
    wn_g = wn_full[:, H + Da:]

    eyeN = jnp.eye(N, dtype=f32)
    webd = jnp.stack([jnp.kron(eyeN, w_e[l]) for l in range(nL)])          # (nL, N*De, N*H)
    wrc = jnp.tile(w_rc, (1, 1, N))                                        # (nL, H, N*H)
    wrabe = jnp.concatenate([jnp.tile(w_ra, (1, 1, N)),
                             jnp.tile(be[:, None, :], (1, 1, N))], axis=1)  # (nL, Da+1, N*H)
    wsc = jnp.tile(w_sc, (1, 1, N))                                        # (nL, H, N*H)
    wsa = jnp.concatenate([jnp.tile(w_sa, (1, 1, N)),
                           jnp.zeros((nL, 1, N * H), f32)], axis=1)        # (nL, Da+1, N*H)
    wnab = jnp.concatenate([wn_a, bn[:, None, :]], axis=1)                 # (nL, Da+1, H)
    enc_wb = jnp.concatenate([enc_w, enc_b[None, :]], axis=0)              # (Da+1, H)
    summ = jnp.tile(jnp.eye(H, dtype=f32), (N, 1))                         # (N*H, H)
    w1blk = params["w1"].reshape(3, H, 128)                                # (3, H, 128)

    return dict(enc_wb=enc_wb, webd=webd, wrc=wrc, wrabe=wrabe, wsc=wsc, wsa=wsa,
                wnc=wn_c, wnab=wnab, wng=wn_g, summ=summ,
                w1blk=w1blk, b1=params["b1"].reshape(1, 128),
                w2=params["w2"], b2=params["b2"].reshape(1, 64),
                w3=params["w3"], b3=params["b3"].reshape(1, 1))


# --------------------------------------------------------------------------- #
# Pure-JAX reference (mirrors the PyTorch forward) for a correctness check.    #
# --------------------------------------------------------------------------- #
def ref_forward(params, node_attr, edge_attr1, edge_attr2, adj):
    nL = params["we_full"].shape[0]
    L = nL // 2
    B, N, _ = node_attr.shape

    def gil(nc, na, ea, adj_, idx):
        node_info = jnp.concatenate([nc, na], axis=-1)
        Dinfo = node_info.shape[-1]
        recv = jnp.broadcast_to(node_info[:, :, None, :], (B, N, N, Dinfo))
        send = jnp.broadcast_to(node_info[:, None, :, :], (B, N, N, Dinfo))
        edge_input = jnp.concatenate([ea, recv, send], axis=-1)
        edge_code = _leaky(edge_input @ params["we_full"][idx] + params["be"][idx],
                           LEAKY_GIN)
        edge_agg = jnp.sum(edge_code * adj_[..., None], axis=2)
        node_input = jnp.concatenate([node_info, edge_agg], axis=-1)
        return node_input @ params["wn_full"][idx] + params["bn"][idx]

    x = _leaky(node_attr @ params["enc_w"] + params["enc_b"], LEAKY_ENC)
    for l in range(L):
        x = _leaky(gil(x, node_attr, edge_attr1, adj, l), LEAKY_GIN)
    for l in range(L):
        x = _leaky(gil(x, node_attr, edge_attr2, adj, L + l), LEAKY_GIN)
    gc = jnp.concatenate([x[:, 0, :], x[:, 1, :], x[:, 2, :]], axis=1)
    h = gc @ params["w1"] + params["b1"]
    h = h @ params["w2"] + params["b2"]
    h = h @ params["w3"] + params["b3"]
    return jax.nn.sigmoid(h)


if __name__ == "__main__":
    # args: len_hidden=32, len_node_attr=4, len_edge_attr=4, gnn_layers=2, dropout=0
    B, N, Da, De, H, L = 2, 8, 4, 4, 32, 2

    key = jax.random.PRNGKey(0)
    k_param, k_na, k_e1, k_e2, k_adj = jax.random.split(key, 5)

    params = make_params(k_param, nhid=H, n_node_attr=Da, n_edge_attr=De, gnn_layers=L)
    kparams = pack_params(params, N)

    node_attr = jax.random.normal(k_na, (B, N, Da), jnp.float32)
    edge_attr1 = jax.random.normal(k_e1, (B, N, N, De), jnp.float32)
    edge_attr2 = jax.random.normal(k_e2, (B, N, N, De), jnp.float32)
    adj = (jax.random.uniform(k_adj, (B, N, N)) < 0.5).astype(jnp.float32)

    fwd = jax.jit(seiral_gnn_4input_forward)
    out = jax.block_until_ready(fwd(kparams, node_attr, edge_attr1, edge_attr2, adj))

    ref = ref_forward(params, node_attr, edge_attr1, edge_attr2, adj)
    assert out.shape == (B, 1), out.shape
    assert jnp.allclose(out, ref, rtol=1e-3, atol=1e-4), (out, ref)

    print("KERNEL_OK")
</pallas_src>

<mosaic_0001>
module attributes {stable_mosaic.version = 11 : i64} {
  func.func @_fused_kernel(%arg0: i32, %arg1: memref<16x5xf32, #tpu.memory_space<vmem>>, %arg2: memref<16x32xf32, #tpu.memory_space<vmem>>, %arg3: memref<16x32xf32, #tpu.memory_space<vmem>>, %arg4: memref<16x256xf32, #tpu.memory_space<vmem>>, %arg5: memref<5x32xf32, #tpu.memory_space<vmem>>, %arg6: memref<4x32x256xf32, #tpu.memory_space<vmem>>, %arg7: memref<4x32x256xf32, #tpu.memory_space<vmem>>, %arg8: memref<4x5x256xf32, #tpu.memory_space<vmem>>, %arg9: memref<4x32x256xf32, #tpu.memory_space<vmem>>, %arg10: memref<4x5x256xf32, #tpu.memory_space<vmem>>, %arg11: memref<4x32x32xf32, #tpu.memory_space<vmem>>, %arg12: memref<4x5x32xf32, #tpu.memory_space<vmem>>, %arg13: memref<4x32x32xf32, #tpu.memory_space<vmem>>, %arg14: memref<256x32xf32, #tpu.memory_space<vmem>>, %arg15: memref<16x256xf32, #tpu.memory_space<vmem>>, %arg16: memref<16x16xf32, #tpu.memory_space<vmem>>, %arg17: memref<3x2x16xf32, #tpu.memory_space<vmem>>, %arg18: memref<3x32x128xf32, #tpu.memory_space<vmem>>, %arg19: memref<1x128xf32, #tpu.memory_space<vmem>>, %arg20: memref<128x64xf32, #tpu.memory_space<vmem>>, %arg21: memref<1x64xf32, #tpu.memory_space<vmem>>, %arg22: memref<64x1xf32, #tpu.memory_space<vmem>>, %arg23: memref<1x1xf32, #tpu.memory_space<vmem>>, %arg24: memref<2x1xf32, #tpu.memory_space<vmem>>) attributes {dimension_semantics = [#tpu.dimension_semantics<parallel>], iteration_bounds = array<i64: 1>, scalar_prefetch = 0 : i64, scratch_operands = 0 : i64, tpu.core_type = #tpu.core_type<tc>, window_params = [{transform_indices = @transform_0, window_bounds = array<i64: 16, 5>}, {transform_indices = @transform_1, window_bounds = array<i64: 16, 32>}, {transform_indices = @transform_2, window_bounds = array<i64: 16, 32>}, {transform_indices = @transform_3, window_bounds = array<i64: 16, 256>}, {pipeline_mode = #tpu.pipeline_mode<synchronous>, transform_indices = @transform_4, window_bounds = array<i64: 5, 32>}, {pipeline_mode = #tpu.pipeline_mode<synchronous>, transform_indices = @transform_5, window_bounds = array<i64: 4, 32, 256>}, {pipeline_mode = #tpu.pipeline_mode<synchronous>, transform_indices = @transform_6, window_bounds = array<i64: 4, 32, 256>}, {pipeline_mode = #tpu.pipeline_mode<synchronous>, transform_indices = @transform_7, window_bounds = array<i64: 4, 5, 256>}, {pipeline_mode = #tpu.pipeline_mode<synchronous>, transform_indices = @transform_8, window_bounds = array<i64: 4, 32, 256>}, {pipeline_mode = #tpu.pipeline_mode<synchronous>, transform_indices = @transform_9, window_bounds = array<i64: 4, 5, 256>}, {pipeline_mode = #tpu.pipeline_mode<synchronous>, transform_indices = @transform_10, window_bounds = array<i64: 4, 32, 32>}, {pipeline_mode = #tpu.pipeline_mode<synchronous>, transform_indices = @transform_11, window_bounds = array<i64: 4, 5, 32>}, {pipeline_mode = #tpu.pipeline_mode<synchronous>, transform_indices = @transform_12, window_bounds = array<i64: 4, 32, 32>}, {pipeline_mode = #tpu.pipeline_mode<synchronous>, transform_indices = @transform_13, window_bounds = array<i64: 256, 32>}, {pipeline_mode = #tpu.pipeline_mode<synchronous>, transform_indices = @transform_14, window_bounds = array<i64: 16, 256>}, {pipeline_mode = #tpu.pipeline_mode<synchronous>, transform_indices = @transform_15, window_bounds = array<i64: 16, 16>}, {pipeline_mode = #tpu.pipeline_mode<synchronous>, transform_indices = @transform_16, window_bounds = array<i64: 3, 2, 16>}, {pipeline_mode = #tpu.pipeline_mode<synchronous>, transform_indices = @transform_17, window_bounds = array<i64: 3, 32, 128>}, {pipeline_mode = #tpu.pipeline_mode<synchronous>, transform_indices = @transform_18, window_bounds = array<i64: 1, 128>}, {pipeline_mode = #tpu.pipeline_mode<synchronous>, transform_indices = @transform_19, window_bounds = array<i64: 128, 64>}, {pipeline_mode = #tpu.pipeline_mode<synchronous>, transform_indices = @transform_20, window_bounds = array<i64: 1, 64>}, {pipeline_mode = #tpu.pipeline_mode<synchronous>, transform_indices = @transform_21, window_bounds = array<i64: 64, 1>}, {pipeline_mode = #tpu.pipeline_mode<synchronous>, transform_indices = @transform_22, window_bounds = array<i64: 1, 1>}, {transform_indices = @transform_23, window_bounds = array<i64: 2, 1>}]} {
    %c0 = arith.constant 0 : index
    %c0_0 = arith.constant 0 : index
    %0 = vector.load %arg1[%c0, %c0_0] : memref<16x5xf32, #tpu.memory_space<vmem>>, vector<16x5xf32>
    %c0_1 = arith.constant 0 : index
    %c0_2 = arith.constant 0 : index
    %1 = vector.load %arg4[%c0_1, %c0_2] : memref<16x256xf32, #tpu.memory_space<vmem>>, vector<16x256xf32>
    %c0_3 = arith.constant 0 : index
    %c0_4 = arith.constant 0 : index
    %2 = vector.load %arg14[%c0_3, %c0_4] : memref<256x32xf32, #tpu.memory_space<vmem>>, vector<256x32xf32>
    %c0_5 = arith.constant 0 : index
    %c0_6 = arith.constant 0 : index
    %3 = vector.load %arg15[%c0_5, %c0_6] : memref<16x256xf32, #tpu.memory_space<vmem>>, vector<16x256xf32>
    %c0_7 = arith.constant 0 : index
    %c0_8 = arith.constant 0 : index
    %4 = vector.load %arg16[%c0_7, %c0_8] : memref<16x16xf32, #tpu.memory_space<vmem>>, vector<16x16xf32>
    %c0_9 = arith.constant 0 : index
    %c0_10 = arith.constant 0 : index
    %5 = vector.load %arg5[%c0_9, %c0_10] : memref<5x32xf32, #tpu.memory_space<vmem>>, vector<5x32xf32>
    %cst = arith.constant dense<0.000000e+00> : vector<16x32xf32>
    %6 = tpu.matmul %0, %5, %cst {dimension_numbers = #tpu.dot_dimension_numbers<[1], [0], [0], [1], [0, 0, 1, 1], [], []>} : vector<16x5xf32>, vector<5x32xf32>, vector<16x32xf32> -> vector<16x32xf32>
    %cst_11 = arith.constant 0.000000e+00 : f32
    %7 = vector.broadcast %cst_11 : f32 to vector<16x32xf32>
    %8 = arith.cmpf ogt, %6, %7 : vector<16x32xf32>
    %cst_12 = arith.constant 1.000000e-01 : f32
    %9 = vector.broadcast %cst_12 : f32 to vector<16x32xf32>
    %10 = arith.mulf %9, %6 : vector<16x32xf32>
    %11 = arith.select %8, %6, %10 : vector<16x32xi1>, vector<16x32xf32>
    %c0_13 = arith.constant 0 : index
    %c0_14 = arith.constant 0 : index
    %12 = vector.load %arg2[%c0_13, %c0_14] : memref<16x32xf32, #tpu.memory_space<vmem>>, vector<16x32xf32>
    %c0_15 = arith.constant 0 : index
    %c0_16 = arith.constant 0 : index
    %13 = vector.load %arg3[%c0_15, %c0_16] : memref<16x32xf32, #tpu.memory_space<vmem>>, vector<16x32xf32>
    %c0_17 = arith.constant 0 : index
    %c0_18 = arith.constant 0 : index
    %c0_19 = arith.constant 0 : index
    %14 = vector.load %arg6[%c0_17, %c0_18, %c0_19] : memref<4x32x256xf32, #tpu.memory_space<vmem>>, vector<1x32x256xf32>
    %15 = vector.shape_cast %14 : vector<1x32x256xf32> to vector<32x256xf32>
    %cst_20 = arith.constant dense<0.000000e+00> : vector<16x256xf32>
    %16 = tpu.matmul %12, %15, %cst_20 {dimension_numbers = #tpu.dot_dimension_numbers<[1], [0], [0], [1], [0, 0, 1, 1], [], []>} : vector<16x32xf32>, vector<32x256xf32>, vector<16x256xf32> -> vector<16x256xf32>
    %c1 = arith.constant 1 : index
    %c0_21 = arith.constant 0 : index
    %c0_22 = arith.constant 0 : index
    %17 = vector.load %arg6[%c1, %c0_21, %c0_22] : memref<4x32x256xf32, #tpu.memory_space<vmem>>, vector<1x32x256xf32>
    %18 = vector.shape_cast %17 : vector<1x32x256xf32> to vector<32x256xf32>
    %cst_23 = arith.constant dense<0.000000e+00> : vector<16x256xf32>
    %19 = tpu.matmul %12, %18, %cst_23 {dimension_numbers = #tpu.dot_dimension_numbers<[1], [0], [0], [1], [0, 0, 1, 1], [], []>} : vector<16x32xf32>, vector<32x256xf32>, vector<16x256xf32> -> vector<16x256xf32>
    %c2 = arith.constant 2 : index
    %c0_24 = arith.constant 0 : index
    %c0_25 = arith.constant 0 : index
    %20 = vector.load %arg6[%c2, %c0_24, %c0_25] : memref<4x32x256xf32, #tpu.memory_space<vmem>>, vector<1x32x256xf32>
    %21 = vector.shape_cast %20 : vector<1x32x256xf32> to vector<32x256xf32>
    %cst_26 = arith.constant dense<0.000000e+00> : vector<16x256xf32>
    %22 = tpu.matmul %13, %21, %cst_26 {dimension_numbers = #tpu.dot_dimension_numbers<[1], [0], [0], [1], [0, 0, 1, 1], [], []>} : vector<16x32xf32>, vector<32x256xf32>, vector<16x256xf32> -> vector<16x256xf32>
    %c3 = arith.constant 3 : index
    %c0_27 = arith.constant 0 : index
    %c0_28 = arith.constant 0 : index
    %23 = vector.load %arg6[%c3, %c0_27, %c0_28] : memref<4x32x256xf32, #tpu.memory_space<vmem>>, vector<1x32x256xf32>
    %24 = vector.shape_cast %23 : vector<1x32x256xf32> to vector<32x256xf32>
    %cst_29 = arith.constant dense<0.000000e+00> : vector<16x256xf32>
    %25 = tpu.matmul %13, %24, %cst_29 {dimension_numbers = #tpu.dot_dimension_numbers<[1], [0], [0], [1], [0, 0, 1, 1], [], []>} : vector<16x32xf32>, vector<32x256xf32>, vector<16x256xf32> -> vector<16x256xf32>
    %c0_30 = arith.constant 0 : index
    %c0_31 = arith.constant 0 : index
    %c0_32 = arith.constant 0 : index
    %26 = vector.load %arg8[%c0_30, %c0_31, %c0_32] : memref<4x5x256xf32, #tpu.memory_space<vmem>>, vector<1x5x256xf32>
    %27 = vector.shape_cast %26 : vector<1x5x256xf32> to vector<5x256xf32>
    %cst_33 = arith.constant dense<0.000000e+00> : vector<16x256xf32>
    %28 = tpu.matmul %0, %27, %cst_33 {dimension_numbers = #tpu.dot_dimension_numbers<[1], [0], [0], [1], [0, 0, 1, 1], [], []>} : vector<16x5xf32>, vector<5x256xf32>, vector<16x256xf32> -> vector<16x256xf32>
    %c1_34 = arith.constant 1 : index
    %c0_35 = arith.constant 0 : index
    %c0_36 = arith.constant 0 : index
    %29 = vector.load %arg8[%c1_34, %c0_35, %c0_36] : memref<4x5x256xf32, #tpu.memory_space<vmem>>, vector<1x5x256xf32>
    %30 = vector.shape_cast %29 : vector<1x5x256xf32> to vector<5x256xf32>
    %cst_37 = arith.constant dense<0.000000e+00> : vector<16x256xf32>
    %31 = tpu.matmul %0, %30, %cst_37 {dimension_numbers = #tpu.dot_dimension_numbers<[1], [0], [0], [1], [0, 0, 1, 1], [], []>} : vector<16x5xf32>, vector<5x256xf32>, vector<16x256xf32> -> vector<16x256xf32>
    %c2_38 = arith.constant 2 : index
    %c0_39 = arith.constant 0 : index
    %c0_40 = arith.constant 0 : index
    %32 = vector.load %arg8[%c2_38, %c0_39, %c0_40] : memref<4x5x256xf32, #tpu.memory_space<vmem>>, vector<1x5x256xf32>
    %33 = vector.shape_cast %32 : vector<1x5x256xf32> to vector<5x256xf32>
    %cst_41 = arith.constant dense<0.000000e+00> : vector<16x256xf32>
    %34 = tpu.matmul %0, %33, %cst_41 {dimension_numbers = #tpu.dot_dimension_numbers<[1], [0], [0], [1], [0, 0, 1, 1], [], []>} : vector<16x5xf32>, vector<5x256xf32>, vector<16x256xf32> -> vector<16x256xf32>
    %c3_42 = arith.constant 3 : index
    %c0_43 = arith.constant 0 : index
    %c0_44 = arith.constant 0 : index
    %35 = vector.load %arg8[%c3_42, %c0_43, %c0_44] : memref<4x5x256xf32, #tpu.memory_space<vmem>>, vector<1x5x256xf32>
    %36 = vector.shape_cast %35 : vector<1x5x256xf32> to vector<5x256xf32>
    %cst_45 = arith.constant dense<0.000000e+00> : vector<16x256xf32>
    %37 = tpu.matmul %0, %36, %cst_45 {dimension_numbers = #tpu.dot_dimension_numbers<[1], [0], [0], [1], [0, 0, 1, 1], [], []>} : vector<16x5xf32>, vector<5x256xf32>, vector<16x256xf32> -> vector<16x256xf32>
    %c0_46 = arith.constant 0 : index
    %c0_47 = arith.constant 0 : index
    %c0_48 = arith.constant 0 : index
    %38 = vector.load %arg10[%c0_46, %c0_47, %c0_48] : memref<4x5x256xf32, #tpu.memory_space<vmem>>, vector<1x5x256xf32>
    %39 = vector.shape_cast %38 : vector<1x5x256xf32> to vector<5x256xf32>
    %cst_49 = arith.constant dense<0.000000e+00> : vector<16x256xf32>
    %40 = tpu.matmul %0, %39, %cst_49 {dimension_numbers = #tpu.dot_dimension_numbers<[1], [0], [0], [1], [0, 0, 1, 1], [], []>} : vector<16x5xf32>, vector<5x256xf32>, vector<16x256xf32> -> vector<16x256xf32>
    %c1_50 = arith.constant 1 : index
    %c0_51 = arith.constant 0 : index
    %c0_52 = arith.constant 0 : index
    %41 = vector.load %arg10[%c1_50, %c0_51, %c0_52] : memref<4x5x256xf32, #tpu.memory_space<vmem>>, vector<1x5x256xf32>
    %42 = vector.shape_cast %41 : vector<1x5x256xf32> to vector<5x256xf32>
    %cst_53 = arith.constant dense<0.000000e+00> : vector<16x256xf32>
    %43 = tpu.matmul %0, %42, %cst_53 {dimension_numbers = #tpu.dot_dimension_numbers<[1], [0], [0], [1], [0, 0, 1, 1], [], []>} : vector<16x5xf32>, vector<5x256xf32>, vector<16x256xf32> -> vector<16x256xf32>
    %c2_54 = arith.constant 2 : index
    %c0_55 = arith.constant 0 : index
    %c0_56 = arith.constant 0 : index
    %44 = vector.load %arg10[%c2_54, %c0_55, %c0_56] : memref<4x5x256xf32, #tpu.memory_space<vmem>>, vector<1x5x256xf32>
    %45 = vector.shape_cast %44 : vector<1x5x256xf32> to vector<5x256xf32>
    %cst_57 = arith.constant dense<0.000000e+00> : vector<16x256xf32>
    %46 = tpu.matmul %0, %45, %cst_57 {dimension_numbers = #tpu.dot_dimension_numbers<[1], [0], [0], [1], [0, 0, 1, 1], [], []>} : vector<16x5xf32>, vector<5x256xf32>, vector<16x256xf32> -> vector<16x256xf32>
    %c3_58 = arith.constant 3 : index
    %c0_59 = arith.constant 0 : index
    %c0_60 = arith.constant 0 : index
    %47 = vector.load %arg10[%c3_58, %c0_59, %c0_60] : memref<4x5x256xf32, #tpu.memory_space<vmem>>, vector<1x5x256xf32>
    %48 = vector.shape_cast %47 : vector<1x5x256xf32> to vector<5x256xf32>
    %cst_61 = arith.constant dense<0.000000e+00> : vector<16x256xf32>
    %49 = tpu.matmul %0, %48, %cst_61 {dimension_numbers = #tpu.dot_dimension_numbers<[1], [0], [0], [1], [0, 0, 1, 1], [], []>} : vector<16x5xf32>, vector<5x256xf32>, vector<16x256xf32> -> vector<16x256xf32>
    %c0_62 = arith.constant 0 : index
    %c0_63 = arith.constant 0 : index
    %c0_64 = arith.constant 0 : index
    %50 = vector.load %arg12[%c0_62, %c0_63, %c0_64] : memref<4x5x32xf32, #tpu.memory_space<vmem>>, vector<1x5x32xf32>
    %51 = vector.shape_cast %50 : vector<1x5x32xf32> to vector<5x32xf32>
    %cst_65 = arith.constant dense<0.000000e+00> : vector<16x32xf32>
    %52 = tpu.matmul %0, %51, %cst_65 {dimension_numbers = #tpu.dot_dimension_numbers<[1], [0], [0], [1], [0, 0, 1, 1], [], []>} : vector<16x5xf32>, vector<5x32xf32>, vector<16x32xf32> -> vector<16x32xf32>
    %c1_66 = arith.constant 1 : index
    %c0_67 = arith.constant 0 : index
    %c0_68 = arith.constant 0 : index
    %53 = vector.load %arg12[%c1_66, %c0_67, %c0_68] : memref<4x5x32xf32, #tpu.memory_space<vmem>>, vector<1x5x32xf32>
    %54 = vector.shape_cast %53 : vector<1x5x32xf32> to vector<5x32xf32>
    %cst_69 = arith.constant dense<0.000000e+00> : vector<16x32xf32>
    %55 = tpu.matmul %0, %54, %cst_69 {dimension_numbers = #tpu.dot_dimension_numbers<[1], [0], [0], [1], [0, 0, 1, 1], [], []>} : vector<16x5xf32>, vector<5x32xf32>, vector<16x32xf32> -> vector<16x32xf32>
    %c2_70 = arith.constant 2 : index
    %c0_71 = arith.constant 0 : index
    %c0_72 = arith.constant 0 : index
    %56 = vector.load %arg12[%c2_70, %c0_71, %c0_72] : memref<4x5x32xf32, #tpu.memory_space<vmem>>, vector<1x5x32xf32>
    %57 = vector.shape_cast %56 : vector<1x5x32xf32> to vector<5x32xf32>
    %cst_73 = arith.constant dense<0.000000e+00> : vector<16x32xf32>
    %58 = tpu.matmul %0, %57, %cst_73 {dimension_numbers = #tpu.dot_dimension_numbers<[1], [0], [0], [1], [0, 0, 1, 1], [], []>} : vector<16x5xf32>, vector<5x32xf32>, vector<16x32xf32> -> vector<16x32xf32>
    %c3_74 = arith.constant 3 : index
    %c0_75 = arith.constant 0 : index
    %c0_76 = arith.constant 0 : index
    %59 = vector.load %arg12[%c3_74, %c0_75, %c0_76] : memref<4x5x32xf32, #tpu.memory_space<vmem>>, vector<1x5x32xf32>
    %60 = vector.shape_cast %59 : vector<1x5x32xf32> to vector<5x32xf32>
    %cst_77 = arith.constant dense<0.000000e+00> : vector<16x32xf32>
    %61 = tpu.matmul %0, %60, %cst_77 {dimension_numbers = #tpu.dot_dimension_numbers<[1], [0], [0], [1], [0, 0, 1, 1], [], []>} : vector<16x5xf32>, vector<5x32xf32>, vector<16x32xf32> -> vector<16x32xf32>
    %c0_78 = arith.constant 0 : index
    %c0_79 = arith.constant 0 : index
    %c0_80 = arith.constant 0 : index
    %62 = vector.load %arg7[%c0_78, %c0_79, %c0_80] : memref<4x32x256xf32, #tpu.memory_space<vmem>>, vector<1x32x256xf32>
    %63 = vector.shape_cast %62 : vector<1x32x256xf32> to vector<32x256xf32>
    %cst_81 = arith.constant dense<0.000000e+00> : vector<16x256xf32>
    %64 = tpu.matmul %11, %63, %cst_81 {dimension_numbers = #tpu.dot_dimension_numbers<[1], [0], [0], [1], [0, 0, 1, 1], [], []>} : vector<16x32xf32>, vector<32x256xf32>, vector<16x256xf32> -> vector<16x256xf32>
    %65 = arith.addf %64, %28 : vector<16x256xf32>
    %c0_82 = arith.constant 0 : index
    %c0_83 = arith.constant 0 : index
    %c0_84 = arith.constant 0 : index
    %66 = vector.load %arg9[%c0_82, %c0_83, %c0_84] : memref<4x32x256xf32, #tpu.memory_space<vmem>>, vector<1x32x256xf32>
    %67 = vector.shape_cast %66 : vector<1x32x256xf32> to vector<32x256xf32>
    %cst_85 = arith.constant dense<0.000000e+00> : vector<16x256xf32>
    %68 = tpu.matmul %11, %67, %cst_85 {dimension_numbers = #tpu.dot_dimension_numbers<[1], [0], [0], [1], [0, 0, 1, 1], [], []>} : vector<16x32xf32>, vector<32x256xf32>, vector<16x256xf32> -> vector<16x256xf32>
    %69 = arith.addf %68, %40 : vector<16x256xf32>
    %70 = arith.mulf %69, %3 : vector<16x256xf32>
    %cst_86 = arith.constant dense<0.000000e+00> : vector<16x256xf32>
    %71 = tpu.matmul %4, %70, %cst_86 {dimension_numbers = #tpu.dot_dimension_numbers<[1], [0], [0], [1], [0, 0, 1, 1], [], []>} : vector<16x16xf32>, vector<16x256xf32>, vector<16x256xf32> -> vector<16x256xf32>
    %72 = arith.addf %16, %65 : vector<16x256xf32>
    %73 = arith.addf %72, %71 : vector<16x256xf32>
    %cst_87 = arith.constant 0.000000e+00 : f32
    %74 = vector.broadcast %cst_87 : f32 to vector<16x256xf32>
    %75 = arith.cmpf ogt, %73, %74 : vector<16x256xf32>
    %cst_88 = arith.constant 0.00999999977 : f32
    %76 = vector.broadcast %cst_88 : f32 to vector<16x256xf32>
    %77 = arith.mulf %76, %73 : vector<16x256xf32>
    %78 = arith.select %75, %73, %77 : vector<16x256xi1>, vector<16x256xf32>
    %79 = arith.mulf %78, %1 : vector<16x256xf32>
    %cst_89 = arith.constant dense<0.000000e+00> : vector<16x32xf32>
    %80 = tpu.matmul %79, %2, %cst_89 {dimension_numbers = #tpu.dot_dimension_numbers<[1], [0], [0], [1], [0, 0, 1, 1], [], []>} : vector<16x256xf32>, vector<256x32xf32>, vector<16x32xf32> -> vector<16x32xf32>
    %c0_90 = arith.constant 0 : index
    %c0_91 = arith.constant 0 : index
    %c0_92 = arith.constant 0 : index
    %81 = vector.load %arg11[%c0_90, %c0_91, %c0_92] : memref<4x32x32xf32, #tpu.memory_space<vmem>>, vector<1x32x32xf32>
    %82 = vector.shape_cast %81 : vector<1x32x32xf32> to vector<32x32xf32>
    %cst_93 = arith.constant dense<0.000000e+00> : vector<16x32xf32>
    %83 = tpu.matmul %11, %82, %cst_93 {dimension_numbers = #tpu.dot_dimension_numbers<[1], [0], [0], [1], [0, 0, 1, 1], [], []>} : vector<16x32xf32>, vector<32x32xf32>, vector<16x32xf32> -> vector<16x32xf32>
    %c0_94 = arith.constant 0 : index
    %c0_95 = arith.constant 0 : index
    %c0_96 = arith.constant 0 : index
    %84 = vector.load %arg13[%c0_94, %c0_95, %c0_96] : memref<4x32x32xf32, #tpu.memory_space<vmem>>, vector<1x32x32xf32>
    %85 = vector.shape_cast %84 : vector<1x32x32xf32> to vector<32x32xf32>
    %cst_97 = arith.constant dense<0.000000e+00> : vector<16x32xf32>
    %86 = tpu.matmul %80, %85, %cst_97 {dimension_numbers = #tpu.dot_dimension_numbers<[1], [0], [0], [1], [0, 0, 1, 1], [], []>} : vector<16x32xf32>, vector<32x32xf32>, vector<16x32xf32> -> vector<16x32xf32>
    %87 = arith.addf %83, %86 : vector<16x32xf32>
    %88 = arith.addf %87, %52 : vector<16x32xf32>
    %cst_98 = arith.constant 0.000000e+00 : f32
    %89 = vector.broadcast %cst_98 : f32 to vector<16x32xf32>
    %90 = arith.cmpf ogt, %88, %89 : vector<16x32xf32>
    %cst_99 = arith.constant 0.00999999977 : f32
    %91 = vector.broadcast %cst_99 : f32 to vector<16x32xf32>
    %92 = arith.mulf %91, %88 : vector<16x32xf32>
    %93 = arith.select %90, %88, %92 : vector<16x32xi1>, vector<16x32xf32>
    %c1_100 = arith.constant 1 : index
    %c0_101 = arith.constant 0 : index
    %c0_102 = arith.constant 0 : index
    %94 = vector.load %arg7[%c1_100, %c0_101, %c0_102] : memref<4x32x256xf32, #tpu.memory_space<vmem>>, vector<1x32x256xf32>
    %95 = vector.shape_cast %94 : vector<1x32x256xf32> to vector<32x256xf32>
    %cst_103 = arith.constant dense<0.000000e+00> : vector<16x256xf32>
    %96 = tpu.matmul %93, %95, %cst_103 {dimension_numbers = #tpu.dot_dimension_numbers<[1], [0], [0], [1], [0, 0, 1, 1], [], []>} : vector<16x32xf32>, vector<32x256xf32>, vector<16x256xf32> -> vector<16x256xf32>
    %97 = arith.addf %96, %31 : vector<16x256xf32>
    %c1_104 = arith.constant 1 : index
    %c0_105 = arith.constant 0 : index
    %c0_106 = arith.constant 0 : index
    %98 = vector.load %arg9[%c1_104, %c0_105, %c0_106] : memref<4x32x256xf32, #tpu.memory_space<vmem>>, vector<1x32x256xf32>
    %99 = vector.shape_cast %98 : vector<1x32x256xf32> to vector<32x256xf32>
    %cst_107 = arith.constant dense<0.000000e+00> : vector<16x256xf32>
    %100 = tpu.matmul %93, %99, %cst_107 {dimension_numbers = #tpu.dot_dimension_numbers<[1], [0], [0], [1], [0, 0, 1, 1], [], []>} : vector<16x32xf32>, vector<32x256xf32>, vector<16x256xf32> -> vector<16x256xf32>
    %101 = arith.addf %100, %43 : vector<16x256xf32>
    %102 = arith.mulf %101, %3 : vector<16x256xf32>
    %cst_108 = arith.constant dense<0.000000e+00> : vector<16x256xf32>
    %103 = tpu.matmul %4, %102, %cst_108 {dimension_numbers = #tpu.dot_dimension_numbers<[1], [0], [0], [1], [0, 0, 1, 1], [], []>} : vector<16x16xf32>, vector<16x256xf32>, vector<16x256xf32> -> vector<16x256xf32>
    %104 = arith.addf %19, %97 : vector<16x256xf32>
    %105 = arith.addf %104, %103 : vector<16x256xf32>
    %cst_109 = arith.constant 0.000000e+00 : f32
    %106 = vector.broadcast %cst_109 : f32 to vector<16x256xf32>
    %107 = arith.cmpf ogt, %105, %106 : vector<16x256xf32>
    %cst_110 = arith.constant 0.00999999977 : f32
    %108 = vector.broadcast %cst_110 : f32 to vector<16x256xf32>
    %109 = arith.mulf %108, %105 : vector<16x256xf32>
    %110 = arith.select %107, %105, %109 : vector<16x256xi1>, vector<16x256xf32>
    %111 = arith.mulf %110, %1 : vector<16x256xf32>
    %cst_111 = arith.constant dense<0.000000e+00> : vector<16x32xf32>
    %112 = tpu.matmul %111, %2, %cst_111 {dimension_numbers = #tpu.dot_dimension_numbers<[1], [0], [0], [1], [0, 0, 1, 1], [], []>} : vector<16x256xf32>, vector<256x32xf32>, vector<16x32xf32> -> vector<16x32xf32>
    %c1_112 = arith.constant 1 : index
    %c0_113 = arith.constant 0 : index
    %c0_114 = arith.constant 0 : index
    %113 = vector.load %arg11[%c1_112, %c0_113, %c0_114] : memref<4x32x32xf32, #tpu.memory_space<vmem>>, vector<1x32x32xf32>
    %114 = vector.shape_cast %113 : vector<1x32x32xf32> to vector<32x32xf32>
    %cst_115 = arith.constant dense<0.000000e+00> : vector<16x32xf32>
    %115 = tpu.matmul %93, %114, %cst_115 {dimension_numbers = #tpu.dot_dimension_numbers<[1], [0], [0], [1], [0, 0, 1, 1], [], []>} : vector<16x32xf32>, vector<32x32xf32>, vector<16x32xf32> -> vector<16x32xf32>
    %c1_116 = arith.constant 1 : index
    %c0_117 = arith.constant 0 : index
    %c0_118 = arith.constant 0 : index
    %116 = vector.load %arg13[%c1_116, %c0_117, %c0_118] : memref<4x32x32xf32, #tpu.memory_space<vmem>>, vector<1x32x32xf32>
    %117 = vector.shape_cast %116 : vector<1x32x32xf32> to vector<32x32xf32>
    %cst_119 = arith.constant dense<0.000000e+00> : vector<16x32xf32>
    %118 = tpu.matmul %112, %117, %cst_119 {dimension_numbers = #tpu.dot_dimension_numbers<[1], [0], [0], [1], [0, 0, 1, 1], [], []>} : vector<16x32xf32>, vector<32x32xf32>, vector<16x32xf32> -> vector<16x32xf32>
    %119 = arith.addf %115, %118 : vector<16x32xf32>
    %120 = arith.addf %119, %55 : vector<16x32xf32>
    %cst_120 = arith.constant 0.000000e+00 : f32
    %121 = vector.broadcast %cst_120 : f32 to vector<16x32xf32>
    %122 = arith.cmpf ogt, %120, %121 : vector<16x32xf32>
    %cst_121 = arith.constant 0.00999999977 : f32
    %123 = vector.broadcast %cst_121 : f32 to vector<16x32xf32>
    %124 = arith.mulf %123, %120 : vector<16x32xf32>
    %125 = arith.select %122, %120, %124 : vector<16x32xi1>, vector<16x32xf32>
    %c2_122 = arith.constant 2 : index
    %c0_123 = arith.constant 0 : index
    %c0_124 = arith.constant 0 : index
    %126 = vector.load %arg7[%c2_122, %c0_123, %c0_124] : memref<4x32x256xf32, #tpu.memory_space<vmem>>, vector<1x32x256xf32>
    %127 = vector.shape_cast %126 : vector<1x32x256xf32> to vector<32x256xf32>
    %cst_125 = arith.constant dense<0.000000e+00> : vector<16x256xf32>
    %128 = tpu.matmul %125, %127, %cst_125 {dimension_numbers = #tpu.dot_dimension_numbers<[1], [0], [0], [1], [0, 0, 1, 1], [], []>} : vector<16x32xf32>, vector<32x256xf32>, vector<16x256xf32> -> vector<16x256xf32>
    %129 = arith.addf %128, %34 : vector<16x256xf32>
    %c2_126 = arith.constant 2 : index
    %c0_127 = arith.constant 0 : index
    %c0_128 = arith.constant 0 : index
    %130 = vector.load %arg9[%c2_126, %c0_127, %c0_128] : memref<4x32x256xf32, #tpu.memory_space<vmem>>, vector<1x32x256xf32>
    %131 = vector.shape_cast %130 : vector<1x32x256xf32> to vector<32x256xf32>
    %cst_129 = arith.constant dense<0.000000e+00> : vector<16x256xf32>
    %132 = tpu.matmul %125, %131, %cst_129 {dimension_numbers = #tpu.dot_dimension_numbers<[1], [0], [0], [1], [0, 0, 1, 1], [], []>} : vector<16x32xf32>, vector<32x256xf32>, vector<16x256xf32> -> vector<16x256xf32>
    %133 = arith.addf %132, %46 : vector<16x256xf32>
    %134 = arith.mulf %133, %3 : vector<16x256xf32>
    %cst_130 = arith.constant dense<0.000000e+00> : vector<16x256xf32>
    %135 = tpu.matmul %4, %134, %cst_130 {dimension_numbers = #tpu.dot_dimension_numbers<[1], [0], [0], [1], [0, 0, 1, 1], [], []>} : vector<16x16xf32>, vector<16x256xf32>, vector<16x256xf32> -> vector<16x256xf32>
    %136 = arith.addf %22, %129 : vector<16x256xf32>
    %137 = arith.addf %136, %135 : vector<16x256xf32>
    %cst_131 = arith.constant 0.000000e+00 : f32
    %138 = vector.broadcast %cst_131 : f32 to vector<16x256xf32>
    %139 = arith.cmpf ogt, %137, %138 : vector<16x256xf32>
    %cst_132 = arith.constant 0.00999999977 : f32
    %140 = vector.broadcast %cst_132 : f32 to vector<16x256xf32>
    %141 = arith.mulf %140, %137 : vector<16x256xf32>
    %142 = arith.select %139, %137, %141 : vector<16x256xi1>, vector<16x256xf32>
    %143 = arith.mulf %142, %1 : vector<16x256xf32>
    %cst_133 = arith.constant dense<0.000000e+00> : vector<16x32xf32>
    %144 = tpu.matmul %143, %2, %cst_133 {dimension_numbers = #tpu.dot_dimension_numbers<[1], [0], [0], [1], [0, 0, 1, 1], [], []>} : vector<16x256xf32>, vector<256x32xf32>, vector<16x32xf32> -> vector<16x32xf32>
    %c2_134 = arith.constant 2 : index
    %c0_135 = arith.constant 0 : index
    %c0_136 = arith.constant 0 : index
    %145 = vector.load %arg11[%c2_134, %c0_135, %c0_136] : memref<4x32x32xf32, #tpu.memory_space<vmem>>, vector<1x32x32xf32>
    %146 = vector.shape_cast %145 : vector<1x32x32xf32> to vector<32x32xf32>
    %cst_137 = arith.constant dense<0.000000e+00> : vector<16x32xf32>
    %147 = tpu.matmul %125, %146, %cst_137 {dimension_numbers = #tpu.dot_dimension_numbers<[1], [0], [0], [1], [0, 0, 1, 1], [], []>} : vector<16x32xf32>, vector<32x32xf32>, vector<16x32xf32> -> vector<16x32xf32>
    %c2_138 = arith.constant 2 : index
    %c0_139 = arith.constant 0 : index
    %c0_140 = arith.constant 0 : index
    %148 = vector.load %arg13[%c2_138, %c0_139, %c0_140] : memref<4x32x32xf32, #tpu.memory_space<vmem>>, vector<1x32x32xf32>
    %149 = vector.shape_cast %148 : vector<1x32x32xf32> to vector<32x32xf32>
    %cst_141 = arith.constant dense<0.000000e+00> : vector<16x32xf32>
    %150 = tpu.matmul %144, %149, %cst_141 {dimension_numbers = #tpu.dot_dimension_numbers<[1], [0], [0], [1], [0, 0, 1, 1], [], []>} : vector<16x32xf32>, vector<32x32xf32>, vector<16x32xf32> -> vector<16x32xf32>
    %151 = arith.addf %147, %150 : vector<16x32xf32>
    %152 = arith.addf %151, %58 : vector<16x32xf32>
    %cst_142 = arith.constant 0.000000e+00 : f32
    %153 = vector.broadcast %cst_142 : f32 to vector<16x32xf32>
    %154 = arith.cmpf ogt, %152, %153 : vector<16x32xf32>
    %cst_143 = arith.constant 0.00999999977 : f32
    %155 = vector.broadcast %cst_143 : f32 to vector<16x32xf32>
    %156 = arith.mulf %155, %152 : vector<16x32xf32>
    %157 = arith.select %154, %152, %156 : vector<16x32xi1>, vector<16x32xf32>
    %c3_144 = arith.constant 3 : index
    %c0_145 = arith.constant 0 : index
    %c0_146 = arith.constant 0 : index
    %158 = vector.load %arg7[%c3_144, %c0_145, %c0_146] : memref<4x32x256xf32, #tpu.memory_space<vmem>>, vector<1x32x256xf32>
    %159 = vector.shape_cast %158 : vector<1x32x256xf32> to vector<32x256xf32>
    %cst_147 = arith.constant dense<0.000000e+00> : vector<16x256xf32>
    %160 = tpu.matmul %157, %159, %cst_147 {dimension_numbers = #tpu.dot_dimension_numbers<[1], [0], [0], [1], [0, 0, 1, 1], [], []>} : vector<16x32xf32>, vector<32x256xf32>, vector<16x256xf32> -> vector<16x256xf32>
    %161 = arith.addf %160, %37 : vector<16x256xf32>
    %c3_148 = arith.constant 3 : index
    %c0_149 = arith.constant 0 : index
    %c0_150 = arith.constant 0 : index
    %162 = vector.load %arg9[%c3_148, %c0_149, %c0_150] : memref<4x32x256xf32, #tpu.memory_space<vmem>>, vector<1x32x256xf32>
    %163 = vector.shape_cast %162 : vector<1x32x256xf32> to vector<32x256xf32>
    %cst_151 = arith.constant dense<0.000000e+00> : vector<16x256xf32>
    %164 = tpu.matmul %157, %163, %cst_151 {dimension_numbers = #tpu.dot_dimension_numbers<[1], [0], [0], [1], [0, 0, 1, 1], [], []>} : vector<16x32xf32>, vector<32x256xf32>, vector<16x256xf32> -> vector<16x256xf32>
    %165 = arith.addf %164, %49 : vector<16x256xf32>
    %166 = arith.mulf %165, %3 : vector<16x256xf32>
    %cst_152 = arith.constant dense<0.000000e+00> : vector<16x256xf32>
    %167 = tpu.matmul %4, %166, %cst_152 {dimension_numbers = #tpu.dot_dimension_numbers<[1], [0], [0], [1], [0, 0, 1, 1], [], []>} : vector<16x16xf32>, vector<16x256xf32>, vector<16x256xf32> -> vector<16x256xf32>
    %168 = arith.addf %25, %161 : vector<16x256xf32>
    %169 = arith.addf %168, %167 : vector<16x256xf32>
    %cst_153 = arith.constant 0.000000e+00 : f32
    %170 = vector.broadcast %cst_153 : f32 to vector<16x256xf32>
    %171 = arith.cmpf ogt, %169, %170 : vector<16x256xf32>
    %cst_154 = arith.constant 0.00999999977 : f32
    %172 = vector.broadcast %cst_154 : f32 to vector<16x256xf32>
    %173 = arith.mulf %172, %169 : vector<16x256xf32>
    %174 = arith.select %171, %169, %173 : vector<16x256xi1>, vector<16x256xf32>
    %175 = arith.mulf %174, %1 : vector<16x256xf32>
    %cst_155 = arith.constant dense<0.000000e+00> : vector<16x32xf32>
    %176 = tpu.matmul %175, %2, %cst_155 {dimension_numbers = #tpu.dot_dimension_numbers<[1], [0], [0], [1], [0, 0, 1, 1], [], []>} : vector<16x256xf32>, vector<256x32xf32>, vector<16x32xf32> -> vector<16x32xf32>
    %c3_156 = arith.constant 3 : index
    %c0_157 = arith.constant 0 : index
    %c0_158 = arith.constant 0 : index
    %177 = vector.load %arg11[%c3_156, %c0_157, %c0_158] : memref<4x32x32xf32, #tpu.memory_space<vmem>>, vector<1x32x32xf32>
    %178 = vector.shape_cast %177 : vector<1x32x32xf32> to vector<32x32xf32>
    %cst_159 = arith.constant dense<0.000000e+00> : vector<16x32xf32>
    %179 = tpu.matmul %157, %178, %cst_159 {dimension_numbers = #tpu.dot_dimension_numbers<[1], [0], [0], [1], [0, 0, 1, 1], [], []>} : vector<16x32xf32>, vector<32x32xf32>, vector<16x32xf32> -> vector<16x32xf32>
    %c3_160 = arith.constant 3 : index
    %c0_161 = arith.constant 0 : index
    %c0_162 = arith.constant 0 : index
    %180 = vector.load %arg13[%c3_160, %c0_161, %c0_162] : memref<4x32x32xf32, #tpu.memory_space<vmem>>, vector<1x32x32xf32>
    %181 = vector.shape_cast %180 : vector<1x32x32xf32> to vector<32x32xf32>
    %cst_163 = arith.constant dense<0.000000e+00> : vector<16x32xf32>
    %182 = tpu.matmul %176, %181, %cst_163 {dimension_numbers = #tpu.dot_dimension_numbers<[1], [0], [0], [1], [0, 0, 1, 1], [], []>} : vector<16x32xf32>, vector<32x32xf32>, vector<16x32xf32> -> vector<16x32xf32>
    %183 = arith.addf %179, %182 : vector<16x32xf32>
    %184 = arith.addf %183, %61 : vector<16x32xf32>
    %cst_164 = arith.constant 0.000000e+00 : f32
    %185 = vector.broadcast %cst_164 : f32 to vector<16x32xf32>
    %186 = arith.cmpf ogt, %184, %185 : vector<16x32xf32>
    %cst_165 = arith.constant 0.00999999977 : f32
    %187 = vector.broadcast %cst_165 : f32 to vector<16x32xf32>
    %188 = arith.mulf %187, %184 : vector<16x32xf32>
    %189 = arith.select %186, %184, %188 : vector<16x32xi1>, vector<16x32xf32>
    %c0_166 = arith.constant 0 : index
    %c0_167 = arith.constant 0 : index
    %190 = vector.load %arg19[%c0_166, %c0_167] : memref<1x128xf32, #tpu.memory_space<vmem>>, vector<1x128xf32>
    %c0_168 = arith.constant 0 : index
    %c0_169 = arith.constant 0 : index
    %c0_170 = arith.constant 0 : index
    %191 = vector.load %arg17[%c0_168, %c0_169, %c0_170] : memref<3x2x16xf32, #tpu.memory_space<vmem>>, vector<1x2x16xf32>
    %192 = vector.shape_cast %191 : vector<1x2x16xf32> to vector<2x16xf32>
    %cst_171 = arith.constant dense<0.000000e+00> : vector<2x32xf32>
    %193 = tpu.matmul %192, %189, %cst_171 {dimension_numbers = #tpu.dot_dimension_numbers<[1], [0], [0], [1], [0, 0, 1, 1], [], []>} : vector<2x16xf32>, vector<16x32xf32>, vector<2x32xf32> -> vector<2x32xf32>
    %c0_172 = arith.constant 0 : index
    %c0_173 = arith.constant 0 : index
    %c0_174 = arith.constant 0 : index
    %194 = vector.load %arg18[%c0_172, %c0_173, %c0_174] : memref<3x32x128xf32, #tpu.memory_space<vmem>>, vector<1x32x128xf32>
    %195 = vector.shape_cast %194 : vector<1x32x128xf32> to vector<32x128xf32>
    %cst_175 = arith.constant dense<0.000000e+00> : vector<2x128xf32>
    %196 = tpu.matmul %193, %195, %cst_175 {dimension_numbers = #tpu.dot_dimension_numbers<[1], [0], [0], [1], [0, 0, 1, 1], [], []>} : vector<2x32xf32>, vector<32x128xf32>, vector<2x128xf32> -> vector<2x128xf32>
    %197 = vector.broadcast %190 : vector<1x128xf32> to vector<2x128xf32>
    %198 = arith.addf %197, %196 : vector<2x128xf32>
    %c1_176 = arith.constant 1 : index
    %c0_177 = arith.constant 0 : index
    %c0_178 = arith.constant 0 : index
    %199 = vector.load %arg17[%c1_176, %c0_177, %c0_178] : memref<3x2x16xf32, #tpu.memory_space<vmem>>, vector<1x2x16xf32>
    %200 = vector.shape_cast %199 : vector<1x2x16xf32> to vector<2x16xf32>
    %cst_179 = arith.constant dense<0.000000e+00> : vector<2x32xf32>
    %201 = tpu.matmul %200, %189, %cst_179 {dimension_numbers = #tpu.dot_dimension_numbers<[1], [0], [0], [1], [0, 0, 1, 1], [], []>} : vector<2x16xf32>, vector<16x32xf32>, vector<2x32xf32> -> vector<2x32xf32>
    %c1_180 = arith.constant 1 : index
    %c0_181 = arith.constant 0 : index
    %c0_182 = arith.constant 0 : index
    %202 = vector.load %arg18[%c1_180, %c0_181, %c0_182] : memref<3x32x128xf32, #tpu.memory_space<vmem>>, vector<1x32x128xf32>
    %203 = vector.shape_cast %202 : vector<1x32x128xf32> to vector<32x128xf32>
    %cst_183 = arith.constant dense<0.000000e+00> : vector<2x128xf32>
    %204 = tpu.matmul %201, %203, %cst_183 {dimension_numbers = #tpu.dot_dimension_numbers<[1], [0], [0], [1], [0, 0, 1, 1], [], []>} : vector<2x32xf32>, vector<32x128xf32>, vector<2x128xf32> -> vector<2x128xf32>
    %205 = arith.addf %198, %204 : vector<2x128xf32>
    %c2_184 = arith.constant 2 : index
    %c0_185 = arith.constant 0 : index
    %c0_186 = arith.constant 0 : index
    %206 = vector.load %arg17[%c2_184, %c0_185, %c0_186] : memref<3x2x16xf32, #tpu.memory_space<vmem>>, vector<1x2x16xf32>
    %207 = vector.shape_cast %206 : vector<1x2x16xf32> to vector<2x16xf32>
    %cst_187 = arith.constant dense<0.000000e+00> : vector<2x32xf32>
    %208 = tpu.matmul %207, %189, %cst_187 {dimension_numbers = #tpu.dot_dimension_numbers<[1], [0], [0], [1], [0, 0, 1, 1], [], []>} : vector<2x16xf32>, vector<16x32xf32>, vector<2x32xf32> -> vector<2x32xf32>
    %c2_188 = arith.constant 2 : index
    %c0_189 = arith.constant 0 : index
    %c0_190 = arith.constant 0 : index
    %209 = vector.load %arg18[%c2_188, %c0_189, %c0_190] : memref<3x32x128xf32, #tpu.memory_space<vmem>>, vector<1x32x128xf32>
    %210 = vector.shape_cast %209 : vector<1x32x128xf32> to vector<32x128xf32>
    %cst_191 = arith.constant dense<0.000000e+00> : vector<2x128xf32>
    %211 = tpu.matmul %208, %210, %cst_191 {dimension_numbers = #tpu.dot_dimension_numbers<[1], [0], [0], [1], [0, 0, 1, 1], [], []>} : vector<2x32xf32>, vector<32x128xf32>, vector<2x128xf32> -> vector<2x128xf32>
    %212 = arith.addf %205, %211 : vector<2x128xf32>
    %c0_192 = arith.constant 0 : index
    %c0_193 = arith.constant 0 : index
    %213 = vector.load %arg20[%c0_192, %c0_193] : memref<128x64xf32, #tpu.memory_space<vmem>>, vector<128x64xf32>
    %cst_194 = arith.constant dense<0.000000e+00> : vector<2x64xf32>
    %214 = tpu.matmul %212, %213, %cst_194 {dimension_numbers = #tpu.dot_dimension_numbers<[1], [0], [0], [1], [0, 0, 1, 1], [], []>} : vector<2x128xf32>, vector<128x64xf32>, vector<2x64xf32> -> vector<2x64xf32>
    %c0_195 = arith.constant 0 : index
    %c0_196 = arith.constant 0 : index
    %215 = vector.load %arg21[%c0_195, %c0_196] : memref<1x64xf32, #tpu.memory_space<vmem>>, vector<1x64xf32>
    %216 = vector.broadcast %215 : vector<1x64xf32> to vector<2x64xf32>
    %217 = arith.addf %214, %216 : vector<2x64xf32>
    %c0_197 = arith.constant 0 : index
    %c0_198 = arith.constant 0 : index
    %218 = vector.load %arg22[%c0_197, %c0_198] : memref<64x1xf32, #tpu.memory_space<vmem>>, vector<64x1xf32>
    %cst_199 = arith.constant dense<0.000000e+00> : vector<2x1xf32>
    %219 = tpu.matmul %217, %218, %cst_199 {dimension_numbers = #tpu.dot_dimension_numbers<[1], [0], [0], [1], [0, 0, 1, 1], [], []>} : vector<2x64xf32>, vector<64x1xf32>, vector<2x1xf32> -> vector<2x1xf32>
    %c0_200 = arith.constant 0 : index
    %c0_201 = arith.constant 0 : index
    %220 = vector.load %arg23[%c0_200, %c0_201] : memref<1x1xf32, #tpu.memory_space<vmem>>, vector<1x1xf32>
    %221 = vector.broadcast %220 : vector<1x1xf32> to vector<2x1xf32>
    %222 = arith.addf %219, %221 : vector<2x1xf32>
    %223 = arith.negf %222 : vector<2x1xf32>
    %224 = math.exp %223 : vector<2x1xf32>
    %cst_202 = arith.constant 1.000000e+00 : f32
    %225 = vector.broadcast %cst_202 : f32 to vector<2x1xf32>
    %226 = arith.addf %225, %224 : vector<2x1xf32>
    %227 = arith.divf %225, %226 : vector<2x1xf32>
    %c0_203 = arith.constant 0 : index
    %c0_204 = arith.constant 0 : index
    %228 = vector.load %arg24[%c0_203, %c0_204] : memref<2x1xf32, #tpu.memory_space<vmem>>, vector<2x1xf32>
    tpu.vector_store %arg24[%c0_203, %c0_204], %227 {strides = array<i32>} : memref<2x1xf32, #tpu.memory_space<vmem>>, vector<2x1xf32>,
    return
  }
  func.func @transform_0(%arg0: i32) -> (i32, i32) {
    %c0_i32 = arith.constant 0 : i32
    %c0_i32_0 = arith.constant 0 : i32
    return %arg0, %c0_i32 : i32, i32
  }
  func.func @transform_1(%arg0: i32) -> (i32, i32) {
    %c0_i32 = arith.constant 0 : i32
    %c0_i32_0 = arith.constant 0 : i32
    return %arg0, %c0_i32 : i32, i32
  }
  func.func @transform_2(%arg0: i32) -> (i32, i32) {
    %c0_i32 = arith.constant 0 : i32
    %c0_i32_0 = arith.constant 0 : i32
    return %arg0, %c0_i32 : i32, i32
  }
  func.func @transform_3(%arg0: i32) -> (i32, i32) {
    %c0_i32 = arith.constant 0 : i32
    %c0_i32_0 = arith.constant 0 : i32
    return %arg0, %c0_i32 : i32, i32
  }
  func.func @transform_4(%arg0: i32) -> (i32, i32) {
    %c0_i32 = arith.constant 0 : i32
    %c0_i32_0 = arith.constant 0 : i32
    %c0_i32_1 = arith.constant 0 : i32
    return %c0_i32, %c0_i32_0 : i32, i32
  }
  func.func @transform_5(%arg0: i32) -> (i32, i32, i32) {
    %c0_i32 = arith.constant 0 : i32
    %c0_i32_0 = arith.constant 0 : i32
    %c0_i32_1 = arith.constant 0 : i32
    %c0_i32_2 = arith.constant 0 : i32
    return %c0_i32, %c0_i32_0, %c0_i32_1 : i32, i32, i32
  }
  func.func @transform_6(%arg0: i32) -> (i32, i32, i32) {
    %c0_i32 = arith.constant 0 : i32
    %c0_i32_0 = arith.constant 0 : i32
    %c0_i32_1 = arith.constant 0 : i32
    %c0_i32_2 = arith.constant 0 : i32
    return %c0_i32, %c0_i32_0, %c0_i32_1 : i32, i32, i32
  }
  func.func @transform_7(%arg0: i32) -> (i32, i32, i32) {
    %c0_i32 = arith.constant 0 : i32
    %c0_i32_0 = arith.constant 0 : i32
    %c0_i32_1 = arith.constant 0 : i32
    %c0_i32_2 = arith.constant 0 : i32
    return %c0_i32, %c0_i32_0, %c0_i32_1 : i32, i32, i32
  }
  func.func @transform_8(%arg0: i32) -> (i32, i32, i32) {
    %c0_i32 = arith.constant 0 : i32
    %c0_i32_0 = arith.constant 0 : i32
    %c0_i32_1 = arith.constant 0 : i32
    %c0_i32_2 = arith.constant 0 : i32
    return %c0_i32, %c0_i32_0, %c0_i32_1 : i32, i32, i32
  }
  func.func @transform_9(%arg0: i32) -> (i32, i32, i32) {
    %c0_i32 = arith.constant 0 : i32
    %c0_i32_0 = arith.constant 0 : i32
    %c0_i32_1 = arith.constant 0 : i32
    %c0_i32_2 = arith.constant 0 : i32
    return %c0_i32, %c0_i32_0, %c0_i32_1 : i32, i32, i32
  }
  func.func @transform_10(%arg0: i32) -> (i32, i32, i32) {
    %c0_i32 = arith.constant 0 : i32
    %c0_i32_0 = arith.constant 0 : i32
    %c0_i32_1 = arith.constant 0 : i32
    %c0_i32_2 = arith.constant 0 : i32
    return %c0_i32, %c0_i32_0, %c0_i32_1 : i32, i32, i32
  }
  func.func @transform_11(%arg0: i32) -> (i32, i32, i32) {
    %c0_i32 = arith.constant 0 : i32
    %c0_i32_0 = arith.constant 0 : i32
    %c0_i32_1 = arith.constant 0 : i32
    %c0_i32_2 = arith.constant 0 : i32
    return %c0_i32, %c0_i32_0, %c0_i32_1 : i32, i32, i32
  }
  func.func @transform_12(%arg0: i32) -> (i32, i32, i32) {
    %c0_i32 = arith.constant 0 : i32
    %c0_i32_0 = arith.constant 0 : i32
    %c0_i32_1 = arith.constant 0 : i32
    %c0_i32_2 = arith.constant 0 : i32
    return %c0_i32, %c0_i32_0, %c0_i32_1 : i32, i32, i32
  }
  func.func @transform_13(%arg0: i32) -> (i32, i32) {
    %c0_i32 = arith.constant 0 : i32
    %c0_i32_0 = arith.constant 0 : i32
    %c0_i32_1 = arith.constant 0 : i32
    return %c0_i32, %c0_i32_0 : i32, i32
  }
  func.func @transform_14(%arg0: i32) -> (i32, i32) {
    %c0_i32 = arith.constant 0 : i32
    %c0_i32_0 = arith.constant 0 : i32
    %c0_i32_1 = arith.constant 0 : i32
    return %c0_i32, %c0_i32_0 : i32, i32
  }
  func.func @transform_15(%arg0: i32) -> (i32, i32) {
    %c0_i32 = arith.constant 0 : i32
    %c0_i32_0 = arith.constant 0 : i32
    %c0_i32_1 = arith.constant 0 : i32
    return %c0_i32, %c0_i32_0 : i32, i32
  }
  func.func @transform_16(%arg0: i32) -> (i32, i32, i32) {
    %c0_i32 = arith.constant 0 : i32
    %c0_i32_0 = arith.constant 0 : i32
    %c0_i32_1 = arith.constant 0 : i32
    %c0_i32_2 = arith.constant 0 : i32
    return %c0_i32, %c0_i32_0, %c0_i32_1 : i32, i32, i32
  }
  func.func @transform_17(%arg0: i32) -> (i32, i32, i32) {
    %c0_i32 = arith.constant 0 : i32
    %c0_i32_0 = arith.constant 0 : i32
    %c0_i32_1 = arith.constant 0 : i32
    %c0_i32_2 = arith.constant 0 : i32
    return %c0_i32, %c0_i32_0, %c0_i32_1 : i32, i32, i32
  }
  func.func @transform_18(%arg0: i32) -> (i32, i32) {
    %c0_i32 = arith.constant 0 : i32
    %c0_i32_0 = arith.constant 0 : i32
    %c0_i32_1 = arith.constant 0 : i32
    return %c0_i32, %c0_i32_0 : i32, i32
  }
  func.func @transform_19(%arg0: i32) -> (i32, i32) {
    %c0_i32 = arith.constant 0 : i32
    %c0_i32_0 = arith.constant 0 : i32
    %c0_i32_1 = arith.constant 0 : i32
    return %c0_i32, %c0_i32_0 : i32, i32
  }
  func.func @transform_20(%arg0: i32) -> (i32, i32) {
    %c0_i32 = arith.constant 0 : i32
    %c0_i32_0 = arith.constant 0 : i32
    %c0_i32_1 = arith.constant 0 : i32
    return %c0_i32, %c0_i32_0 : i32, i32
  }
  func.func @transform_21(%arg0: i32) -> (i32, i32) {
    %c0_i32 = arith.constant 0 : i32
    %c0_i32_0 = arith.constant 0 : i32
    %c0_i32_1 = arith.constant 0 : i32
    return %c0_i32, %c0_i32_0 : i32, i32
  }
  func.func @transform_22(%arg0: i32) -> (i32, i32) {
    %c0_i32 = arith.constant 0 : i32
    %c0_i32_0 = arith.constant 0 : i32
    %c0_i32_1 = arith.constant 0 : i32
    return %c0_i32, %c0_i32_0 : i32, i32
  }
  func.func @transform_23(%arg0: i32) -> (i32, i32) {
    %c0_i32 = arith.constant 0 : i32
    %c0_i32_0 = arith.constant 0 : i32
    return %arg0, %c0_i32 : i32, i32
  }
}

</mosaic_0001>

<llo_original>
// kernel: seiral_gnn_4input_forward.1
$region0: #{seiral_gnn_4input_forward.1}
  #allocation0 [shape = 'u32[]', space=smem, size = 0x4, offset = 0x4, fixed_abs, tag = 'smem constant byte address 0x4 - core index']
  #allocation1 [shape = 'u32[72,128]{1,0:T(1,128)}', space=vmem, size = 0x9000, scoped, tag = 'internal scratch']
  #allocation2 [shape = 'f32[1,1]{1,0:T(1,128)S(1)}', space=vmem, size = 0x200, scoped, tag = 'scoped memory for seiral_gnn_4input_forward.1']
  %s0 = inlined_call_operand.vmem [shape: f32[16,5], index: 0, kind: input, shape index: {}]
  %s1 = inlined_call_operand.vmem [shape: f32[16,32], index: 1, kind: input, shape index: {}]
  %s2 = inlined_call_operand.vmem [shape: f32[16,32], index: 2, kind: input, shape index: {}]
  %s3 = inlined_call_operand.vmem [shape: f32[16,256], index: 3, kind: input, shape index: {}]
  %s4 = inlined_call_operand.vmem [shape: f32[5,32], index: 4, kind: input, shape index: {}]
  %s5 = inlined_call_operand.vmem [shape: f32[4,32,256], index: 5, kind: input, shape index: {}]
  %s6 = inlined_call_operand.vmem [shape: f32[4,32,256], index: 6, kind: input, shape index: {}]
  %s7 = inlined_call_operand.vmem [shape: f32[4,5,256], index: 7, kind: input, shape index: {}]
  %s8 = inlined_call_operand.vmem [shape: f32[4,32,256], index: 8, kind: input, shape index: {}]
  %s9 = inlined_call_operand.vmem [shape: f32[4,5,256], index: 9, kind: input, shape index: {}]
  %s10 = inlined_call_operand.vmem [shape: f32[4,32,32], index: 10, kind: input, shape index: {}]
  %s11 = inlined_call_operand.vmem [shape: f32[4,5,32], index: 11, kind: input, shape index: {}]
  %s12 = inlined_call_operand.vmem [shape: f32[4,32,32], index: 12, kind: input, shape index: {}]
  %s13 = inlined_call_operand.vmem [shape: f32[256,32], index: 13, kind: input, shape index: {}]
  %s14 = inlined_call_operand.vmem [shape: f32[16,256], index: 14, kind: input, shape index: {}]
  %s15 = inlined_call_operand.vmem [shape: f32[16,16], index: 15, kind: input, shape index: {}]
  %s16 = inlined_call_operand.vmem [shape: f32[3,2,16], index: 16, kind: input, shape index: {}]
  %s17 = inlined_call_operand.vmem [shape: f32[3,32,128], index: 17, kind: input, shape index: {}]
  %s18 = inlined_call_operand.vmem [shape: f32[1,128], index: 18, kind: input, shape index: {}]
  %s19 = inlined_call_operand.vmem [shape: f32[128,64], index: 19, kind: input, shape index: {}]
  %s20 = inlined_call_operand.vmem [shape: f32[1,64], index: 20, kind: input, shape index: {}]
  %s21 = inlined_call_operand.vmem [shape: f32[64,1], index: 21, kind: input, shape index: {}]
  %s22 = inlined_call_operand.<no memory space> [shape: f32[1,1], index: 22, kind: input, shape index: {}]
  %s23 = inlined_call_operand.vmem [shape: f32[2,1], index: 23, kind: output, shape index: {}]
  %s24 = sld [smem:[#allocation0]]
  $region102: #{seiral_gnn_4input_forward.1} parent=0
    _
  %s26 = ssub.s32 1, %s24
  %s27 = scalar_select 0, %s26, %s24
  %v28 = vstv %s22
  %29 = vst [vmem:[#allocation2] sm:$0x1] %v28
  // Predicated region
  $region2: #{seiral_gnn_4input_forward.1} parent=0 // pred_check
    _
  $region3: #{seiral_gnn_4input_forward.1} parent=0 // pred_check_branch
    %31 = sbr.rel (0) target = $region5
  $region4: #{seiral_gnn_4input_forward.1} parent=0 // pred_region
    _
  $region5: #{seiral_gnn_4input_forward.1} parent=0 // pred_fallthru
    _
  // Predicated region
  $region6: #{seiral_gnn_4input_forward.1} parent=0 // pred_check
    _
  $region7: #{seiral_gnn_4input_forward.1} parent=0 // pred_check_branch
    %33 = sbr.rel (0) target = $region9
  $region8: #{seiral_gnn_4input_forward.1} parent=0 // pred_region
    _
  $region9: #{seiral_gnn_4input_forward.1} parent=0 // pred_fallthru
    _
  // Predicated region
  $region10: #{seiral_gnn_4input_forward.1} parent=0 // pred_check
    _
  $region11: #{seiral_gnn_4input_forward.1} parent=0 // pred_check_branch
    %35 = sbr.rel (0) target = $region13
  $region12: #{seiral_gnn_4input_forward.1} parent=0 // pred_region
    _
  $region13: #{seiral_gnn_4input_forward.1} parent=0 // pred_fallthru
    _
  // Predicated region
  $region14: #{seiral_gnn_4input_forward.1} parent=0 // pred_check
    _
  $region15: #{seiral_gnn_4input_forward.1} parent=0 // pred_check_branch
    %37 = sbr.rel (0) target = $region17
  $region16: #{seiral_gnn_4input_forward.1} parent=0 // pred_region
    _
  $region17: #{seiral_gnn_4input_forward.1} parent=0 // pred_fallthru
    _
  // Predicated region
  $region18: #{seiral_gnn_4input_forward.1} parent=0 // pred_check
    _
  $region19: #{seiral_gnn_4input_forward.1} parent=0 // pred_check_branch
    %39 = sbr.rel (0) target = $region21
  $region20: #{seiral_gnn_4input_forward.1} parent=0 // pred_region
    _
  $region21: #{seiral_gnn_4input_forward.1} parent=0 // pred_fallthru
    _
  // Predicated region
  $region22: #{seiral_gnn_4input_forward.1} parent=0 // pred_check
    _
  $region23: #{seiral_gnn_4input_forward.1} parent=0 // pred_check_branch
    %41 = sbr.rel (0) target = $region25
  $region24: #{seiral_gnn_4input_forward.1} parent=0 // pred_region
    _
  $region25: #{seiral_gnn_4input_forward.1} parent=0 // pred_fallthru
    _
  // Predicated region
  $region26: #{seiral_gnn_4input_forward.1} parent=0 // pred_check
    _
  $region27: #{seiral_gnn_4input_forward.1} parent=0 // pred_check_branch
    %43 = sbr.rel (0) target = $region29
  $region28: #{seiral_gnn_4input_forward.1} parent=0 // pred_region
    _
  $region29: #{seiral_gnn_4input_forward.1} parent=0 // pred_fallthru
    _
  // Predicated region
  $region30: #{seiral_gnn_4input_forward.1} parent=0 // pred_check
    _
  $region31: #{seiral_gnn_4input_forward.1} parent=0 // pred_check_branch
    %45 = sbr.rel (0) target = $region33
  $region32: #{seiral_gnn_4input_forward.1} parent=0 // pred_region
    _
  $region33: #{seiral_gnn_4input_forward.1} parent=0 // pred_fallthru
    _
  // Predicated region
  $region34: #{seiral_gnn_4input_forward.1} parent=0 // pred_check
    _
  $region35: #{seiral_gnn_4input_forward.1} parent=0 // pred_check_branch
    %47 = sbr.rel (0) target = $region37
  $region36: #{seiral_gnn_4input_forward.1} parent=0 // pred_region
    _
  $region37: #{seiral_gnn_4input_forward.1} parent=0 // pred_fallthru
    _
  // Predicated region
  $region38: #{seiral_gnn_4input_forward.1} parent=0 // pred_check
    _
  $region39: #{seiral_gnn_4input_forward.1} parent=0 // pred_check_branch
    %49 = sbr.rel (0) target = $region41
  $region40: #{seiral_gnn_4input_forward.1} parent=0 // pred_region
    _
  $region41: #{seiral_gnn_4input_forward.1} parent=0 // pred_fallthru
    _
  // Predicated region
  $region42: #{seiral_gnn_4input_forward.1} parent=0 // pred_check
    _
  $region43: #{seiral_gnn_4input_forward.1} parent=0 // pred_check_branch
    %51 = sbr.rel (0) target = $region45
  $region44: #{seiral_gnn_4input_forward.1} parent=0 // pred_region
    _
  $region45: #{seiral_gnn_4input_forward.1} parent=0 // pred_fallthru
    _
  // Predicated region
  $region46: #{seiral_gnn_4input_forward.1} parent=0 // pred_check
    _
  $region47: #{seiral_gnn_4input_forward.1} parent=0 // pred_check_branch
    %53 = sbr.rel (0) target = $region49
  $region48: #{seiral_gnn_4input_forward.1} parent=0 // pred_region
    _
  $region49: #{seiral_gnn_4input_forward.1} parent=0 // pred_fallthru
    _
  // Predicated region
  $region50: #{seiral_gnn_4input_forward.1} parent=0 // pred_check
    _
  $region51: #{seiral_gnn_4input_forward.1} parent=0 // pred_check_branch
    %55 = sbr.rel (0) target = $region53
  $region52: #{seiral_gnn_4input_forward.1} parent=0 // pred_region
    _
  $region53: #{seiral_gnn_4input_forward.1} parent=0 // pred_fallthru
    _
  // Predicated region
  $region54: #{seiral_gnn_4input_forward.1} parent=0 // pred_check
    _
  $region55: #{seiral_gnn_4input_forward.1} parent=0 // pred_check_branch
    %57 = sbr.rel (0) target = $region57
  $region56: #{seiral_gnn_4input_forward.1} parent=0 // pred_region
    _
  $region57: #{seiral_gnn_4input_forward.1} parent=0 // pred_fallthru
    _
  // Predicated region
  $region58: #{seiral_gnn_4input_forward.1} parent=0 // pred_check
    _
  $region59: #{seiral_gnn_4input_forward.1} parent=0 // pred_check_branch
    %59 = sbr.rel (0) target = $region61
  $region60: #{seiral_gnn_4input_forward.1} parent=0 // pred_region
    _
  $region61: #{seiral_gnn_4input_forward.1} parent=0 // pred_fallthru
    _
  // Predicated region
  $region62: #{seiral_gnn_4input_forward.1} parent=0 // pred_check
    _
  $region63: #{seiral_gnn_4input_forward.1} parent=0 // pred_check_branch
    %61 = sbr.rel (0) target = $region65
  $region64: #{seiral_gnn_4input_forward.1} parent=0 // pred_region
    _
  $region65: #{seiral_gnn_4input_forward.1} parent=0 // pred_fallthru
    _
  // Predicated region
  $region66: #{seiral_gnn_4input_forward.1} parent=0 // pred_check
    _
  $region67: #{seiral_gnn_4input_forward.1} parent=0 // pred_check_branch
    %63 = sbr.rel (0) target = $region69
  $region68: #{seiral_gnn_4input_forward.1} parent=0 // pred_region
    _
  $region69: #{seiral_gnn_4input_forward.1} parent=0 // pred_fallthru
    _
  // Predicated region
  $region70: #{seiral_gnn_4input_forward.1} parent=0 // pred_check
    _
  $region71: #{seiral_gnn_4input_forward.1} parent=0 // pred_check_branch
    %65 = sbr.rel (0) target = $region73
  $region72: #{seiral_gnn_4input_forward.1} parent=0 // pred_region
    _
  $region73: #{seiral_gnn_4input_forward.1} parent=0 // pred_fallthru
    _
  // Predicated region
  $region74: #{seiral_gnn_4input_forward.1} parent=0 // pred_check
    _
  $region75: #{seiral_gnn_4input_forward.1} parent=0 // pred_check_branch
    %67 = sbr.rel (0) target = $region77
  $region76: #{seiral_gnn_4input_forward.1} parent=0 // pred_region
    _
  $region77: #{seiral_gnn_4input_forward.1} parent=0 // pred_fallthru
    _
  // Predicated region
  $region78: #{seiral_gnn_4input_forward.1} parent=0 // pred_check
    _
  $region79: #{seiral_gnn_4input_forward.1} parent=0 // pred_check_branch
    %69 = sbr.rel (0) target = $region81
  $region80: #{seiral_gnn_4input_forward.1} parent=0 // pred_region
    _
  $region81: #{seiral_gnn_4input_forward.1} parent=0 // pred_fallthru
    _
  // Predicated region
  $region82: #{seiral_gnn_4input_forward.1} parent=0 // pred_check
    _
  $region83: #{seiral_gnn_4input_forward.1} parent=0 // pred_check_branch
    %71 = sbr.rel (0) target = $region85
  $region84: #{seiral_gnn_4input_forward.1} parent=0 // pred_region
    _
  $region85: #{seiral_gnn_4input_forward.1} parent=0 // pred_fallthru
    _
  // Predicated region
  $region86: #{seiral_gnn_4input_forward.1} parent=0 // pred_check
    _
  $region87: #{seiral_gnn_4input_forward.1} parent=0 // pred_check_branch
    %73 = sbr.rel (0) target = $region89
  $region88: #{seiral_gnn_4input_forward.1} parent=0 // pred_region
    _
  $region89: #{seiral_gnn_4input_forward.1} parent=0 // pred_fallthru
    _
  // Predicated region
  $region90: #{seiral_gnn_4input_forward.1} parent=0 // pred_check
    _
  $region91: #{seiral_gnn_4input_forward.1} parent=0 // pred_check_branch
    %75 = sbr.rel (0) target = $region93
  $region92: #{seiral_gnn_4input_forward.1} parent=0 // pred_region
    _
  $region93: #{seiral_gnn_4input_forward.1} parent=0 // pred_fallthru
    _
  %v76 = vld [vmem:[%s0] sm:$0xff]
  %v77 = vld [vmem:[%s0 + $0x8] sm:$0xff]
  %v78 = vld [vmem:[%s3] sm:$0xff]
  %v79 = vld [vmem:[%s3 + $0x8] sm:$0xff]
  %v80 = vld [vmem:[%s3 + $0x10] sm:$0xff]
  %v81 = vld [vmem:[%s3 + $0x18] sm:$0xff]
  %v82 = vld [vmem:[%s13] sm:$0xff]
  %v83 = vld [vmem:[%s13 + $0x8] sm:$0xff]
  %v84 = vld [vmem:[%s13 + $0x10] sm:$0xff]
  %v85 = vld [vmem:[%s13 + $0x18] sm:$0xff]
  %v86 = vld [vmem:[%s13 + $0x20] sm:$0xff]
  %v87 = vld [vmem:[%s13 + $0x28] sm:$0xff]
  %v88 = vld [vmem:[%s13 + $0x30] sm:$0xff]
  %v89 = vld [vmem:[%s13 + $0x38] sm:$0xff]
  %v90 = vld [vmem:[%s13 + $0x40] sm:$0xff]
  %v91 = vld [vmem:[%s13 + $0x48] sm:$0xff]
  %v92 = vld [vmem:[%s13 + $0x50] sm:$0xff]
  %v93 = vld [vmem:[%s13 + $0x58] sm:$0xff]
  %v94 = vld [vmem:[%s13 + $0x60] sm:$0xff]
  %v95 = vld [vmem:[%s13 + $0x68] sm:$0xff]
  %v96 = vld [vmem:[%s13 + $0x70] sm:$0xff]
  %v97 = vld [vmem:[%s13 + $0x78] sm:$0xff]
  %v98 = vld [vmem:[%s13 + $0x80] sm:$0xff]
  %v99 = vld [vmem:[%s13 + $0x88] sm:$0xff]
  %v100 = vld [vmem:[%s13 + $0x90] sm:$0xff]
  %v101 = vld [vmem:[%s13 + $0x98] sm:$0xff]
  %v102 = vld [vmem:[%s13 + $0xa0] sm:$0xff]
  %v103 = vld [vmem:[%s13 + $0xa8] sm:$0xff]
  %v104 = vld [vmem:[%s13 + $0xb0] sm:$0xff]
  %v105 = vld [vmem:[%s13 + $0xb8] sm:$0xff]
  %v106 = vld [vmem:[%s13 + $0xc0] sm:$0xff]
  %v107 = vld [vmem:[%s13 + $0xc8] sm:$0xff]
  %v108 = vld [vmem:[%s13 + $0xd0] sm:$0xff]
  %v109 = vld [vmem:[%s13 + $0xd8] sm:$0xff]
  %v110 = vld [vmem:[%s13 + $0xe0] sm:$0xff]
  %v111 = vld [vmem:[%s13 + $0xe8] sm:$0xff]
  %v112 = vld [vmem:[%s13 + $0xf0] sm:$0xff]
  %v113 = vld [vmem:[%s13 + $0xf8] sm:$0xff]
  %v114 = vld [vmem:[%s14] sm:$0xff]
  %v115 = vld [vmem:[%s14 + $0x8] sm:$0xff]
  %v116 = vld [vmem:[%s14 + $0x10] sm:$0xff]
  %v117 = vld [vmem:[%s14 + $0x18] sm:$0xff]
  %v118 = vld [vmem:[%s15] sm:$0xff]
  %v119 = vld [vmem:[%s15 + $0x8] sm:$0xff]
  %v120 = vld [vmem:[%s4] sm:$0x1f]
  %vm121 = vcmask 39936
  %v123 = vsel %vm121, %v76, 0
  %v126 = vsel %vm121, %v77, 0
  %vm128 = vcmask 1044480
  %v130 = vsel %vm128, %v120, 0
  %132 = vmatpush.msra.mxu0 0.0
  %133 = vmatpush.msra.mxu0 0.0
  %134 = vmatpush.msra.mxu0 0.0
  %135 = vmatpush.msra.mxu0 0.0
  %136 = vmatpush.msra.mxu0 0.0
  %137 = vmatpush.msra.mxu0 0.0
  %138 = vmatpush.msra.mxu0 0.0
  %139 = vmatpush.msra.mxu0 0.0
  %140 = vmatpush.msra.mxu0 0.0
  %141 = vmatpush.msra.mxu0 0.0
  %142 = vmatpush.msra.mxu0 0.0
  %143 = vmatpush.msra.mxu0 0.0
  %144 = vmatpush.msra.mxu0 0.0
  %145 = vmatpush.msra.mxu0 0.0
  %146 = vmatpush.msra.mxu0 0.0
  %147 = vmatpush.msra.mxu0 %v130
  %148 = vmatmul.f32.gmra.mxu0 %v123
  %v149 = vpop.f32.mrf.mxu0
  %v150 = vadd.f32 0.0, %v149
  %151 = vmatmul.f32.gmra.mxu0 %v126
  %v152 = vpop.f32.mrf.mxu0
  %v153 = vadd.f32 0.0, %v152
  %154 = vdwg.mxu0
  %vm155 = vcmp.gt.f32.partialorder %v150, 0.0
  %vm156 = vcmp.gt.f32.partialorder %v153, 0.0
  %v157 = vmul.f32 %v150, 0.1
  %v158 = vmul.f32 %v153, 0.1
  %v159 = vsel %vm155, %v150, %v157
  %v160 = vsel %vm156, %v153, %v158
  %v161 = vld [vmem:[%s1] sm:$0xff]
  %v162 = vld [vmem:[%s1 + $0x8] sm:$0xff]
  %v163 = vld [vmem:[%s2] sm:$0xff]
  %v164 = vld [vmem:[%s2 + $0x8] sm:$0xff]
  %v165 = vld [vmem:[%s5] sm:$0xff]
  %v166 = vld [vmem:[%s5 + $0x8] sm:$0xff]
  %v167 = vld [vmem:[%s5 + $0x10] sm:$0xff]
  %v168 = vld [vmem:[%s5 + $0x18] sm:$0xff]
  %v169 = vld [vmem:[%s5 + $0x20] sm:$0xff]
  %v170 = vld [vmem:[%s5 + $0x28] sm:$0xff]
  %v171 = vld [vmem:[%s5 + $0x30] sm:$0xff]
  %v172 = vld [vmem:[%s5 + $0x38] sm:$0xff]
  %s173 = scalar_lea.vmem %s5, 64
  %v174 = vld [vmem:[%s173] sm:$0xff]
  %v175 = vld [vmem:[%s173 + $0x8] sm:$0xff]
  %v176 = vld [vmem:[%s173 + $0x10] sm:$0xff]
  %v177 = vld [vmem:[%s173 + $0x18] sm:$0xff]
  %v178 = vld [vmem:[%s173 + $0x20] sm:$0xff]
  %v179 = vld [vmem:[%s173 + $0x28] sm:$0xff]
  %v180 = vld [vmem:[%s173 + $0x30] sm:$0xff]
  %v181 = vld [vmem:[%s173 + $0x38] sm:$0xff]
  %s182 = scalar_lea.vmem %s5, 128
  %v183 = vld [vmem:[%s182] sm:$0xff]
  %v184 = vld [vmem:[%s182 + $0x8] sm:$0xff]
  %v185 = vld [vmem:[%s182 + $0x10] sm:$0xff]
  %v186 = vld [vmem:[%s182 + $0x18] sm:$0xff]
  %v187 = vld [vmem:[%s182 + $0x20] sm:$0xff]
  %v188 = vld [vmem:[%s182 + $0x28] sm:$0xff]
  %v189 = vld [vmem:[%s182 + $0x30] sm:$0xff]
  %v190 = vld [vmem:[%s182 + $0x38] sm:$0xff]
  %s191 = scalar_lea.vmem %s5, 192
  %v192 = vld [vmem:[%s191] sm:$0xff]
  %v193 = vld [vmem:[%s191 + $0x8] sm:$0xff]
  %v194 = vld [vmem:[%s191 + $0x10] sm:$0xff]
  %v195 = vld [vmem:[%s191 + $0x18] sm:$0xff]
  %v196 = vld [vmem:[%s191 + $0x20] sm:$0xff]
  %v197 = vld [vmem:[%s191 + $0x28] sm:$0xff]
  %v198 = vld [vmem:[%s191 + $0x30] sm:$0xff]
  %v199 = vld [vmem:[%s191 + $0x38] sm:$0xff]
  %v200 = vld [vmem:[%s7] sm:$0x1f]
  %v201 = vld [vmem:[%s7 + $0x8] sm:$0x1f]
  %v203 = vsel %vm128, %v200, 0
  %v206 = vsel %vm128, %v201, 0
  %208 = vmatpush.msra.mxu0 0.0
  %209 = vmatpush.msra.mxu0 0.0
  %210 = vmatpush.msra.mxu0 0.0
  %211 = vmatpush.msra.mxu0 0.0
  %212 = vmatpush.msra.mxu0 0.0
  %213 = vmatpush.msra.mxu0 0.0
  %214 = vmatpush.msra.mxu0 0.0
  %215 = vmatpush.msra.mxu0 0.0
  %216 = vmatpush.msra.mxu0 0.0
  %217 = vmatpush.msra.mxu0 0.0
  %218 = vmatpush.msra.mxu0 0.0
  %219 = vmatpush.msra.mxu0 0.0
  %220 = vmatpush.msra.mxu0 0.0
  %221 = vmatpush.msra.mxu0 0.0
  %222 = vmatpush.msra.mxu0 0.0
  %223 = vmatpush.msra.mxu0 %v203
  %224 = vmatmul.f32.gmra.mxu0 %v123
  %v225 = vpop.f32.mrf.mxu0
  %v226 = vadd.f32 0.0, %v225
  %227 = vmatmul.f32.gmra.mxu0 %v126
  %v228 = vpop.f32.mrf.mxu0
  %v229 = vadd.f32 0.0, %v228
  %230 = vdwg.mxu0
  %231 = vmatpush.msra.mxu0 0.0
  %232 = vmatpush.msra.mxu0 0.0
  %233 = vmatpush.msra.mxu0 0.0
  %234 = vmatpush.msra.mxu0 0.0
  %235 = vmatpush.msra.mxu0 0.0
  %236 = vmatpush.msra.mxu0 0.0
  %237 = vmatpush.msra.mxu0 0.0
  %238 = vmatpush.msra.mxu0 0.0
  %239 = vmatpush.msra.mxu0 0.0
  %240 = vmatpush.msra.mxu0 0.0
  %241 = vmatpush.msra.mxu0 0.0
  %242 = vmatpush.msra.mxu0 0.0
  %243 = vmatpush.msra.mxu0 0.0
  %244 = vmatpush.msra.mxu0 0.0
  %245 = vmatpush.msra.mxu0 0.0
  %246 = vmatpush.msra.mxu0 %v206
  %247 = vmatmul.f32.gmra.mxu0 %v123
  %v248 = vpop.f32.mrf.mxu0
  %v249 = vadd.f32 0.0, %v248
  %250 = vmatmul.f32.gmra.mxu0 %v126
  %v251 = vpop.f32.mrf.mxu0
  %v252 = vadd.f32 0.0, %v251
  %253 = vdwg.mxu0
  %s254 = scalar_lea.vmem %s7, 16
  %v255 = vld [vmem:[%s254] sm:$0x1f]
  %v256 = vld [vmem:[%s254 + $0x8] sm:$0x1f]
  %v258 = vsel %vm128, %v255, 0
  %v261 = vsel %vm128, %v256, 0
  %263 = vmatpush.msra.mxu0 0.0
  %264 = vmatpush.msra.mxu0 0.0
  %265 = vmatpush.msra.mxu0 0.0
  %266 = vmatpush.msra.mxu0 0.0
  %267 = vmatpush.msra.mxu0 0.0
  %268 = vmatpush.msra.mxu0 0.0
  %269 = vmatpush.msra.mxu0 0.0
  %270 = vmatpush.msra.mxu0 0.0
  %271 = vmatpush.msra.mxu0 0.0
  %272 = vmatpush.msra.mxu0 0.0
  %273 = vmatpush.msra.mxu0 0.0
  %274 = vmatpush.msra.mxu0 0.0
  %275 = vmatpush.msra.mxu0 0.0
  %276 = vmatpush.msra.mxu0 0.0
  %277 = vmatpush.msra.mxu0 0.0
  %278 = vmatpush.msra.mxu0 %v258
  %279 = vmatmul.f32.gmra.mxu0 %v123
  %v280 = vpop.f32.mrf.mxu0
  %v281 = vadd.f32 0.0, %v280
  %282 = vmatmul.f32.gmra.mxu0 %v126
  %v283 = vpop.f32.mrf.mxu0
  %v284 = vadd.f32 0.0, %v283
  %285 = vdwg.mxu0
  %286 = vmatpush.msra.mxu0 0.0
  %287 = vmatpush.msra.mxu0 0.0
  %288 = vmatpush.msra.mxu0 0.0
  %289 = vmatpush.msra.mxu0 0.0
  %290 = vmatpush.msra.mxu0 0.0
  %291 = vmatpush.msra.mxu0 0.0
  %292 = vmatpush.msra.mxu0 0.0
  %293 = vmatpush.msra.mxu0 0.0
  %294 = vmatpush.msra.mxu0 0.0
  %295 = vmatpush.msra.mxu0 0.0
  %296 = vmatpush.msra.mxu0 0.0
  %297 = vmatpush.msra.mxu0 0.0
  %298 = vmatpush.msra.mxu0 0.0
  %299 = vmatpush.msra.mxu0 0.0
  %300 = vmatpush.msra.mxu0 0.0
  %301 = vmatpush.msra.mxu0 %v261
  %302 = vmatmul.f32.gmra.mxu0 %v123
  %v303 = vpop.f32.mrf.mxu0
  %v304 = vadd.f32 0.0, %v303
  %305 = vmatmul.f32.gmra.mxu0 %v126
  %v306 = vpop.f32.mrf.mxu0
  %v307 = vadd.f32 0.0, %v306
  %308 = vdwg.mxu0
  %s309 = scalar_lea.vmem %s7, 32
  %v310 = vld [vmem:[%s309] sm:$0x1f]
  %v311 = vld [vmem:[%s309 + $0x8] sm:$0x1f]
  %v313 = vsel %vm128, %v310, 0
  %v316 = vsel %vm128, %v311, 0
  %318 = vmatpush.msra.mxu0 0.0
  %319 = vmatpush.msra.mxu0 0.0
  %320 = vmatpush.msra.mxu0 0.0
  %321 = vmatpush.msra.mxu0 0.0
  %322 = vmatpush.msra.mxu0 0.0
  %323 = vmatpush.msra.mxu0 0.0
  %324 = vmatpush.msra.mxu0 0.0
  %325 = vmatpush.msra.mxu0 0.0
  %326 = vmatpush.msra.mxu0 0.0
  %327 = vmatpush.msra.mxu0 0.0
  %328 = vmatpush.msra.mxu0 0.0
  %329 = vmatpush.msra.mxu0 0.0
  %330 = vmatpush.msra.mxu0 0.0
  %331 = vmatpush.msra.mxu0 0.0
  %332 = vmatpush.msra.mxu0 0.0
  %333 = vmatpush.msra.mxu0 %v313
  %334 = vmatmul.f32.gmra.mxu0 %v123
  %v335 = vpop.f32.mrf.mxu0
  %v336 = vadd.f32 0.0, %v335
  %337 = vmatmul.f32.gmra.mxu0 %v126
  %v338 = vpop.f32.mrf.mxu0
  %v339 = vadd.f32 0.0, %v338
  %340 = vdwg.mxu0
  %341 = vmatpush.msra.mxu0 0.0
  %342 = vmatpush.msra.mxu0 0.0
  %343 = vmatpush.msra.mxu0 0.0
  %344 = vmatpush.msra.mxu0 0.0
  %345 = vmatpush.msra.mxu0 0.0
  %346 = vmatpush.msra.mxu0 0.0
  %347 = vmatpush.msra.mxu0 0.0
  %348 = vmatpush.msra.mxu0 0.0
  %349 = vmatpush.msra.mxu0 0.0
  %350 = vmatpush.msra.mxu0 0.0
  %351 = vmatpush.msra.mxu0 0.0
  %352 = vmatpush.msra.mxu0 0.0
  %353 = vmatpush.msra.mxu0 0.0
  %354 = vmatpush.msra.mxu0 0.0
  %355 = vmatpush.msra.mxu0 0.0
  %356 = vmatpush.msra.mxu0 %v316
  %357 = vmatmul.f32.gmra.mxu0 %v123
  %v358 = vpop.f32.mrf.mxu0
  %v359 = vadd.f32 0.0, %v358
  %360 = vmatmul.f32.gmra.mxu0 %v126
  %v361 = vpop.f32.mrf.mxu0
  %v362 = vadd.f32 0.0, %v361
  %363 = vdwg.mxu0
  %s364 = scalar_lea.vmem %s7, 48
  %v365 = vld [vmem:[%s364] sm:$0x1f]
  %v366 = vld [vmem:[%s364 + $0x8] sm:$0x1f]
  %v368 = vsel %vm128, %v365, 0
  %v371 = vsel %vm128, %v366, 0
  %373 = vmatpush.msra.mxu0 0.0
  %374 = vmatpush.msra.mxu0 0.0
  %375 = vmatpush.msra.mxu0 0.0
  %376 = vmatpush.msra.mxu0 0.0
  %377 = vmatpush.msra.mxu0 0.0
  %378 = vmatpush.msra.mxu0 0.0
  %379 = vmatpush.msra.mxu0 0.0
  %380 = vmatpush.msra.mxu0 0.0
  %381 = vmatpush.msra.mxu0 0.0
  %382 = vmatpush.msra.mxu0 0.0
  %383 = vmatpush.msra.mxu0 0.0
  %384 = vmatpush.msra.mxu0 0.0
  %385 = vmatpush.msra.mxu0 0.0
  %386 = vmatpush.msra.mxu0 0.0
  %387 = vmatpush.msra.mxu0 0.0
  %388 = vmatpush.msra.mxu0 %v368
  %389 = vmatmul.f32.gmra.mxu0 %v123
  %v390 = vpop.f32.mrf.mxu0
  %v391 = vadd.f32 0.0, %v390
  %392 = vmatmul.f32.gmra.mxu0 %v126
  %v393 = vpop.f32.mrf.mxu0
  %v394 = vadd.f32 0.0, %v393
  %395 = vdwg.mxu0
  %396 = vmatpush.msra.mxu0 0.0
  %397 = vmatpush.msra.mxu0 0.0
  %398 = vmatpush.msra.mxu0 0.0
  %399 = vmatpush.msra.mxu0 0.0
  %400 = vmatpush.msra.mxu0 0.0
  %401 = vmatpush.msra.mxu0 0.0
  %402 = vmatpush.msra.mxu0 0.0
  %403 = vmatpush.msra.mxu0 0.0
  %404 = vmatpush.msra.mxu0 0.0
  %405 = vmatpush.msra.mxu0 0.0
  %406 = vmatpush.msra.mxu0 0.0
  %407 = vmatpush.msra.mxu0 0.0
  %408 = vmatpush.msra.mxu0 0.0
  %409 = vmatpush.msra.mxu0 0.0
  %410 = vmatpush.msra.mxu0 0.0
  %411 = vmatpush.msra.mxu0 %v371
  %412 = vmatmul.f32.gmra.mxu0 %v123
  %v413 = vpop.f32.mrf.mxu0
  %v414 = vadd.f32 0.0, %v413
  %415 = vmatmul.f32.gmra.mxu0 %v126
  %v416 = vpop.f32.mrf.mxu0
  %v417 = vadd.f32 0.0, %v416
  %418 = vdwg.mxu0
  %v419 = vld [vmem:[%s9] sm:$0x1f]
  %v420 = vld [vmem:[%s9 + $0x8] sm:$0x1f]
  %v422 = vsel %vm128, %v419, 0
  %v425 = vsel %vm128, %v420, 0
  %427 = vmatpush.msra.mxu0 0.0
  %428 = vmatpush.msra.mxu0 0.0
  %429 = vmatpush.msra.mxu0 0.0
  %430 = vmatpush.msra.mxu0 0.0
  %431 = vmatpush.msra.mxu0 0.0
  %432 = vmatpush.msra.mxu0 0.0
  %433 = vmatpush.msra.mxu0 0.0
  %434 = vmatpush.msra.mxu0 0.0
  %435 = vmatpush.msra.mxu0 0.0
  %436 = vmatpush.msra.mxu0 0.0
  %437 = vmatpush.msra.mxu0 0.0
  %438 = vmatpush.msra.mxu0 0.0
  %439 = vmatpush.msra.mxu0 0.0
  %440 = vmatpush.msra.mxu0 0.0
  %441 = vmatpush.msra.mxu0 0.0
  %442 = vmatpush.msra.mxu0 %v422
  %443 = vmatmul.f32.gmra.mxu0 %v123
  %v444 = vpop.f32.mrf.mxu0
  %v445 = vadd.f32 0.0, %v444
  %446 = vmatmul.f32.gmra.mxu0 %v126
  %v447 = vpop.f32.mrf.mxu0
  %v448 = vadd.f32 0.0, %v447
  %449 = vdwg.mxu0
  %450 = vmatpush.msra.mxu0 0.0
  %451 = vmatpush.msra.mxu0 0.0
  %452 = vmatpush.msra.mxu0 0.0
  %453 = vmatpush.msra.mxu0 0.0
  %454 = vmatpush.msra.mxu0 0.0
  %455 = vmatpush.msra.mxu0 0.0
  %456 = vmatpush.msra.mxu0 0.0
  %457 = vmatpush.msra.mxu0 0.0
  %458 = vmatpush.msra.mxu0 0.0
  %459 = vmatpush.msra.mxu0 0.0
  %460 = vmatpush.msra.mxu0 0.0
  %461 = vmatpush.msra.mxu0 0.0
  %462 = vmatpush.msra.mxu0 0.0
  %463 = vmatpush.msra.mxu0 0.0
  %464 = vmatpush.msra.mxu0 0.0
  %465 = vmatpush.msra.mxu0 %v425
  %466 = vmatmul.f32.gmra.mxu0 %v123
  %v467 = vpop.f32.mrf.mxu0
  %v468 = vadd.f32 0.0, %v467
  %469 = vmatmul.f32.gmra.mxu0 %v126
  %v470 = vpop.f32.mrf.mxu0
  %v471 = vadd.f32 0.0, %v470
  %472 = vdwg.mxu0
  %s473 = scalar_lea.vmem %s9, 16
  %v474 = vld [vmem:[%s473] sm:$0x1f]
  %v475 = vld [vmem:[%s473 + $0x8] sm:$0x1f]
  %v477 = vsel %vm128, %v474, 0
  %v480 = vsel %vm128, %v475, 0
  %482 = vmatpush.msra.mxu0 0.0
  %483 = vmatpush.msra.mxu0 0.0
  %484 = vmatpush.msra.mxu0 0.0
  %485 = vmatpush.msra.mxu0 0.0
  %486 = vmatpush.msra.mxu0 0.0
  %487 = vmatpush.msra.mxu0 0.0
  %488 = vmatpush.msra.mxu0 0.0
  %489 = vmatpush.msra.mxu0 0.0
  %490 = vmatpush.msra.mxu0 0.0
  %491 = vmatpush.msra.mxu0 0.0
  %492 = vmatpush.msra.mxu0 0.0
  %493 = vmatpush.msra.mxu0 0.0
  %494 = vmatpush.msra.mxu0 0.0
  %495 = vmatpush.msra.mxu0 0.0
  %496 = vmatpush.msra.mxu0 0.0
  %497 = vmatpush.msra.mxu0 %v477
  %498 = vmatmul.f32.gmra.mxu0 %v123
  %v499 = vpop.f32.mrf.mxu0
  %v500 = vadd.f32 0.0, %v499
  %501 = vmatmul.f32.gmra.mxu0 %v126
  %v502 = vpop.f32.mrf.mxu0
  %v503 = vadd.f32 0.0, %v502
  %504 = vdwg.mxu0
  %505 = vmatpush.msra.mxu0 0.0
  %506 = vmatpush.msra.mxu0 0.0
  %507 = vmatpush.msra.mxu0 0.0
  %508 = vmatpush.msra.mxu0 0.0
  %509 = vmatpush.msra.mxu0 0.0
  %510 = vmatpush.msra.mxu0 0.0
  %511 = vmatpush.msra.mxu0 0.0
  %512 = vmatpush.msra.mxu0 0.0
  %513 = vmatpush.msra.mxu0 0.0
  %514 = vmatpush.msra.mxu0 0.0
  %515 = vmatpush.msra.mxu0 0.0
  %516 = vmatpush.msra.mxu0 0.0
  %517 = vmatpush.msra.mxu0 0.0
  %518 = vmatpush.msra.mxu0 0.0
  %519 = vmatpush.msra.mxu0 0.0
  %520 = vmatpush.msra.mxu0 %v480
  %521 = vmatmul.f32.gmra.mxu0 %v123
  %v522 = vpop.f32.mrf.mxu0
  %v523 = vadd.f32 0.0, %v522
  %524 = vmatmul.f32.gmra.mxu0 %v126
  %v525 = vpop.f32.mrf.mxu0
  %v526 = vadd.f32 0.0, %v525
  %527 = vdwg.mxu0
  %s528 = scalar_lea.vmem %s9, 32
  %v529 = vld [vmem:[%s528] sm:$0x1f]
  %v530 = vld [vmem:[%s528 + $0x8] sm:$0x1f]
  %v532 = vsel %vm128, %v529, 0
  %v535 = vsel %vm128, %v530, 0
  %537 = vmatpush.msra.mxu0 0.0
  %538 = vmatpush.msra.mxu0 0.0
  %539 = vmatpush.msra.mxu0 0.0
  %540 = vmatpush.msra.mxu0 0.0
  %541 = vmatpush.msra.mxu0 0.0
  %542 = vmatpush.msra.mxu0 0.0
  %543 = vmatpush.msra.mxu0 0.0
  %544 = vmatpush.msra.mxu0 0.0
  %545 = vmatpush.msra.mxu0 0.0
  %546 = vmatpush.msra.mxu0 0.0
  %547 = vmatpush.msra.mxu0 0.0
  %548 = vmatpush.msra.mxu0 0.0
  %549 = vmatpush.msra.mxu0 0.0
  %550 = vmatpush.msra.mxu0 0.0
  %551 = vmatpush.msra.mxu0 0.0
  %552 = vmatpush.msra.mxu0 %v532
  %553 = vmatmul.f32.gmra.mxu0 %v123
  %v554 = vpop.f32.mrf.mxu0
  %v555 = vadd.f32 0.0, %v554
  %556 = vmatmul.f32.gmra.mxu0 %v126
  %v557 = vpop.f32.mrf.mxu0
  %v558 = vadd.f32 0.0, %v557
  %559 = vdwg.mxu0
  %560 = vmatpush.msra.mxu0 0.0
  %561 = vmatpush.msra.mxu0 0.0
  %562 = vmatpush.msra.mxu0 0.0
  %563 = vmatpush.msra.mxu0 0.0
  %564 = vmatpush.msra.mxu0 0.0
  %565 = vmatpush.msra.mxu0 0.0
  %566 = vmatpush.msra.mxu0 0.0
  %567 = vmatpush.msra.mxu0 0.0
  %568 = vmatpush.msra.mxu0 0.0
  %569 = vmatpush.msra.mxu0 0.0
  %570 = vmatpush.msra.mxu0 0.0
  %571 = vmatpush.msra.mxu0 0.0
  %572 = vmatpush.msra.mxu0 0.0
  %573 = vmatpush.msra.mxu0 0.0
  %574 = vmatpush.msra.mxu0 0.0
  %575 = vmatpush.msra.mxu0 %v535
  %576 = vmatmul.f32.gmra.mxu0 %v123
  %v577 = vpop.f32.mrf.mxu0
  %v578 = vadd.f32 0.0, %v577
  %579 = vmatmul.f32.gmra.mxu0 %v126
  %v580 = vpop.f32.mrf.mxu0
  %v581 = vadd.f32 0.0, %v580
  %582 = vdwg.mxu0
  %s583 = scalar_lea.vmem %s9, 48
  %v584 = vld [vmem:[%s583] sm:$0x1f]
  %v585 = vld [vmem:[%s583 + $0x8] sm:$0x1f]
  %v587 = vsel %vm128, %v584, 0
  %v590 = vsel %vm128, %v585, 0
  %592 = vmatpush.msra.mxu0 0.0
  %593 = vmatpush.msra.mxu0 0.0
  %594 = vmatpush.msra.mxu0 0.0
  %595 = vmatpush.msra.mxu0 0.0
  %596 = vmatpush.msra.mxu0 0.0
  %597 = vmatpush.msra.mxu0 0.0
  %598 = vmatpush.msra.mxu0 0.0
  %599 = vmatpush.msra.mxu0 0.0
  %600 = vmatpush.msra.mxu0 0.0
  %601 = vmatpush.msra.mxu0 0.0
  %602 = vmatpush.msra.mxu0 0.0
  %603 = vmatpush.msra.mxu0 0.0
  %604 = vmatpush.msra.mxu0 0.0
  %605 = vmatpush.msra.mxu0 0.0
  %606 = vmatpush.msra.mxu0 0.0
  %607 = vmatpush.msra.mxu0 %v587
  %608 = vmatmul.f32.gmra.mxu0 %v123
  %v609 = vpop.f32.mrf.mxu0
  %v610 = vadd.f32 0.0, %v609
  %611 = vmatmul.f32.gmra.mxu0 %v126
  %v612 = vpop.f32.mrf.mxu0
  %v613 = vadd.f32 0.0, %v612
  %614 = vdwg.mxu0
  %615 = vmatpush.msra.mxu0 0.0
  %616 = vmatpush.msra.mxu0 0.0
  %617 = vmatpush.msra.mxu0 0.0
  %618 = vmatpush.msra.mxu0 0.0
  %619 = vmatpush.msra.mxu0 0.0
  %620 = vmatpush.msra.mxu0 0.0
  %621 = vmatpush.msra.mxu0 0.0
  %622 = vmatpush.msra.mxu0 0.0
  %623 = vmatpush.msra.mxu0 0.0
  %624 = vmatpush.msra.mxu0 0.0
  %625 = vmatpush.msra.mxu0 0.0
  %626 = vmatpush.msra.mxu0 0.0
  %627 = vmatpush.msra.mxu0 0.0
  %628 = vmatpush.msra.mxu0 0.0
  %629 = vmatpush.msra.mxu0 0.0
  %630 = vmatpush.msra.mxu0 %v590
  %631 = vmatmul.f32.gmra.mxu0 %v123
  %v632 = vpop.f32.mrf.mxu0
  %v633 = vadd.f32 0.0, %v632
  %634 = vmatmul.f32.gmra.mxu0 %v126
  %v635 = vpop.f32.mrf.mxu0
  %v636 = vadd.f32 0.0, %v635
  %637 = vdwg.mxu0
  %v638 = vld [vmem:[%s11] sm:$0x1f]
  %v640 = vsel %vm128, %v638, 0
  %642 = vmatpush.msra.mxu0 0.0
  %643 = vmatpush.msra.mxu0 0.0
  %644 = vmatpush.msra.mxu0 0.0
  %645 = vmatpush.msra.mxu0 0.0
  %646 = vmatpush.msra.mxu0 0.0
  %647 = vmatpush.msra.mxu0 0.0
  %648 = vmatpush.msra.mxu0 0.0
  %649 = vmatpush.msra.mxu0 0.0
  %650 = vmatpush.msra.mxu0 0.0
  %651 = vmatpush.msra.mxu0 0.0
  %652 = vmatpush.msra.mxu0 0.0
  %653 = vmatpush.msra.mxu0 0.0
  %654 = vmatpush.msra.mxu0 0.0
  %655 = vmatpush.msra.mxu0 0.0
  %656 = vmatpush.msra.mxu0 0.0
  %657 = vmatpush.msra.mxu0 %v640
  %658 = vmatmul.f32.gmra.mxu0 %v123
  %v659 = vpop.f32.mrf.mxu0
  %v660 = vadd.f32 0.0, %v659
  %661 = vmatmul.f32.gmra.mxu0 %v126
  %v662 = vpop.f32.mrf.mxu0
  %v663 = vadd.f32 0.0, %v662
  %664 = vdwg.mxu0
  %s665 = scalar_lea.vmem %s11, 8
  %v666 = vld [vmem:[%s665] sm:$0x1f]
  %v668 = vsel %vm128, %v666, 0
  %670 = vmatpush.msra.mxu0 0.0
  %671 = vmatpush.msra.mxu0 0.0
  %672 = vmatpush.msra.mxu0 0.0
  %673 = vmatpush.msra.mxu0 0.0
  %674 = vmatpush.msra.mxu0 0.0
  %675 = vmatpush.msra.mxu0 0.0
  %676 = vmatpush.msra.mxu0 0.0
  %677 = vmatpush.msra.mxu0 0.0
  %678 = vmatpush.msra.mxu0 0.0
  %679 = vmatpush.msra.mxu0 0.0
  %680 = vmatpush.msra.mxu0 0.0
  %681 = vmatpush.msra.mxu0 0.0
  %682 = vmatpush.msra.mxu0 0.0
  %683 = vmatpush.msra.mxu0 0.0
  %684 = vmatpush.msra.mxu0 0.0
  %685 = vmatpush.msra.mxu0 %v668
  %686 = vmatmul.f32.gmra.mxu0 %v123
  %v687 = vpop.f32.mrf.mxu0
  %v688 = vadd.f32 0.0, %v687
  %689 = vmatmul.f32.gmra.mxu0 %v126
  %v690 = vpop.f32.mrf.mxu0
  %v691 = vadd.f32 0.0, %v690
  %692 = vdwg.mxu0
  %s693 = scalar_lea.vmem %s11, 16
  %v694 = vld [vmem:[%s693] sm:$0x1f]
  %v696 = vsel %vm128, %v694, 0
  %698 = vmatpush.msra.mxu0 0.0
  %699 = vmatpush.msra.mxu0 0.0
  %700 = vmatpush.msra.mxu0 0.0
  %701 = vmatpush.msra.mxu0 0.0
  %702 = vmatpush.msra.mxu0 0.0
  %703 = vmatpush.msra.mxu0 0.0
  %704 = vmatpush.msra.mxu0 0.0
  %705 = vmatpush.msra.mxu0 0.0
  %706 = vmatpush.msra.mxu0 0.0
  %707 = vmatpush.msra.mxu0 0.0
  %708 = vmatpush.msra.mxu0 0.0
  %709 = vmatpush.msra.mxu0 0.0
  %710 = vmatpush.msra.mxu0 0.0
  %711 = vmatpush.msra.mxu0 0.0
  %712 = vmatpush.msra.mxu0 0.0
  %713 = vmatpush.msra.mxu0 %v696
  %714 = vmatmul.f32.gmra.mxu0 %v123
  %v715 = vpop.f32.mrf.mxu0
  %v716 = vadd.f32 0.0, %v715
  %717 = vmatmul.f32.gmra.mxu0 %v126
  %v718 = vpop.f32.mrf.mxu0
  %v719 = vadd.f32 0.0, %v718
  %720 = vdwg.mxu0
  %s721 = scalar_lea.vmem %s11, 24
  %v722 = vld [vmem:[%s721] sm:$0x1f]
  %v724 = vsel %vm128, %v722, 0
  %726 = vmatpush.msra.mxu0 0.0
  %727 = vmatpush.msra.mxu0 0.0
  %728 = vmatpush.msra.mxu0 0.0
  %729 = vmatpush.msra.mxu0 0.0
  %730 = vmatpush.msra.mxu0 0.0
  %731 = vmatpush.msra.mxu0 0.0
  %732 = vmatpush.msra.mxu0 0.0
  %733 = vmatpush.msra.mxu0 0.0
  %734 = vmatpush.msra.mxu0 0.0
  %735 = vmatpush.msra.mxu0 0.0
  %736 = vmatpush.msra.mxu0 0.0
  %737 = vmatpush.msra.mxu0 0.0
  %738 = vmatpush.msra.mxu0 0.0
  %739 = vmatpush.msra.mxu0 0.0
  %740 = vmatpush.msra.mxu0 0.0
  %741 = vmatpush.msra.mxu0 %v724
  %742 = vmatmul.f32.gmra.mxu0 %v123
  %v743 = vpop.f32.mrf.mxu0
  %v744 = vadd.f32 0.0, %v743
  %745 = vmatmul.f32.gmra.mxu0 %v126
  %v746 = vpop.f32.mrf.mxu0
  %v747 = vadd.f32 0.0, %v746
  %748 = vdwg.mxu0
  %v749 = vld [vmem:[%s6] sm:$0xff]
  %v750 = vld [vmem:[%s6 + $0x8] sm:$0xff]
  %v751 = vld [vmem:[%s6 + $0x10] sm:$0xff]
  %v752 = vld [vmem:[%s6 + $0x18] sm:$0xff]
  %v753 = vld [vmem:[%s6 + $0x20] sm:$0xff]
  %v754 = vld [vmem:[%s6 + $0x28] sm:$0xff]
  %v755 = vld [vmem:[%s6 + $0x30] sm:$0xff]
  %v756 = vld [vmem:[%s6 + $0x38] sm:$0xff]
  %vm757 = vcmask 261120
  %v759 = vsel %vm757, %v159, 0
  %v762 = vsel %vm757, %v160, 0
  %764 = vmatpush.msra.mxu0 0.0
  %765 = vmatpush.msra.mxu0 0.0
  %766 = vmatpush.msra.mxu0 0.0
  %767 = vmatpush.msra.mxu0 0.0
  %768 = vmatpush.msra.mxu0 0.0
  %769 = vmatpush.msra.mxu0 0.0
  %770 = vmatpush.msra.mxu0 0.0
  %771 = vmatpush.msra.mxu0 0.0
  %772 = vmatpush.msra.mxu0 0.0
  %773 = vmatpush.msra.mxu0 0.0
  %774 = vmatpush.msra.mxu0 0.0
  %775 = vmatpush.msra.mxu0 0.0
  %776 = vmatpush.msra.mxu0 %v755
  %777 = vmatpush.msra.mxu0 %v753
  %778 = vmatpush.msra.mxu0 %v751
  %779 = vmatpush.msra.mxu0 %v749
  %780 = vmatmul.f32.gmra.mxu0 %v759
  %v781 = vpop.f32.mrf.mxu0
  %v782 = vadd.f32 %v226, %v781
  %783 = vmatmul.f32.gmra.mxu0 %v762
  %v784 = vpop.f32.mrf.mxu0
  %v785 = vadd.f32 %v229, %v784
  %786 = vdwg.mxu0
  %787 = vmatpush.msra.mxu0 0.0
  %788 = vmatpush.msra.mxu0 0.0
  %789 = vmatpush.msra.mxu0 0.0
  %790 = vmatpush.msra.mxu0 0.0
  %791 = vmatpush.msra.mxu0 0.0
  %792 = vmatpush.msra.mxu0 0.0
  %793 = vmatpush.msra.mxu0 0.0
  %794 = vmatpush.msra.mxu0 0.0
  %795 = vmatpush.msra.mxu0 0.0
  %796 = vmatpush.msra.mxu0 0.0
  %797 = vmatpush.msra.mxu0 0.0
  %798 = vmatpush.msra.mxu0 0.0
  %799 = vmatpush.msra.mxu0 %v756
  %800 = vmatpush.msra.mxu0 %v754
  %801 = vmatpush.msra.mxu0 %v752
  %802 = vmatpush.msra.mxu0 %v750
  %803 = vmatmul.f32.gmra.mxu0 %v759
  %v804 = vpop.f32.mrf.mxu0
  %v805 = vadd.f32 %v249, %v804
  %806 = vmatmul.f32.gmra.mxu0 %v762
  %v807 = vpop.f32.mrf.mxu0
  %v808 = vadd.f32 %v252, %v807
  %809 = vdwg.mxu0
  %v810 = vld [vmem:[%s8] sm:$0xff]
  %v811 = vld [vmem:[%s8 + $0x8] sm:$0xff]
  %v812 = vld [vmem:[%s8 + $0x10] sm:$0xff]
  %v813 = vld [vmem:[%s8 + $0x18] sm:$0xff]
  %v814 = vld [vmem:[%s8 + $0x20] sm:$0xff]
  %v815 = vld [vmem:[%s8 + $0x28] sm:$0xff]
  %v816 = vld [vmem:[%s8 + $0x30] sm:$0xff]
  %v817 = vld [vmem:[%s8 + $0x38] sm:$0xff]
  %818 = vmatpush.msra.mxu0 0.0
  %819 = vmatpush.msra.mxu0 0.0
  %820 = vmatpush.msra.mxu0 0.0
  %821 = vmatpush.msra.mxu0 0.0
  %822 = vmatpush.msra.mxu0 0.0
  %823 = vmatpush.msra.mxu0 0.0
  %824 = vmatpush.msra.mxu0 0.0
  %825 = vmatpush.msra.mxu0 0.0
  %826 = vmatpush.msra.mxu0 0.0
  %827 = vmatpush.msra.mxu0 0.0
  %828 = vmatpush.msra.mxu0 0.0
  %829 = vmatpush.msra.mxu0 0.0
  %830 = vmatpush.msra.mxu0 %v816
  %831 = vmatpush.msra.mxu0 %v814
  %832 = vmatpush.msra.mxu0 %v812
  %833 = vmatpush.msra.mxu0 %v810
  %834 = vmatmul.f32.gmra.mxu0 %v759
  %v835 = vpop.f32.mrf.mxu0
  %v836 = vadd.f32 %v445, %v835
  %837 = vmatmul.f32.gmra.mxu0 %v762
  %v838 = vpop.f32.mrf.mxu0
  %v839 = vadd.f32 %v448, %v838
  %840 = vdwg.mxu0
  %841 = vmatpush.msra.mxu0 0.0
  %842 = vmatpush.msra.mxu0 0.0
  %843 = vmatpush.msra.mxu0 0.0
  %844 = vmatpush.msra.mxu0 0.0
  %845 = vmatpush.msra.mxu0 0.0
  %846 = vmatpush.msra.mxu0 0.0
  %847 = vmatpush.msra.mxu0 0.0
  %848 = vmatpush.msra.mxu0 0.0
  %849 = vmatpush.msra.mxu0 0.0
  %850 = vmatpush.msra.mxu0 0.0
  %851 = vmatpush.msra.mxu0 0.0
  %852 = vmatpush.msra.mxu0 0.0
  %853 = vmatpush.msra.mxu0 %v817
  %854 = vmatpush.msra.mxu0 %v815
  %855 = vmatpush.msra.mxu0 %v813
  %856 = vmatpush.msra.mxu0 %v811
  %857 = vmatmul.f32.gmra.mxu0 %v759
  %v858 = vpop.f32.mrf.mxu0
  %v859 = vadd.f32 %v468, %v858
  %860 = vmatmul.f32.gmra.mxu0 %v762
  %v861 = vpop.f32.mrf.mxu0
  %v862 = vadd.f32 %v471, %v861
  %863 = vdwg.mxu0
  %v864 = vmul.f32 %v836, %v114
  %v865 = vmul.f32 %v859, %v115
  %v866 = vmul.f32 %v839, %v116
  %v867 = vmul.f32 %v862, %v117
  %vm868 = vcmask 130048
  %v870 = vsel %vm868, %v118, 0
  %v873 = vsel %vm868, %v119, 0
  %875 = vmatpush.msra.mxu0 0.0
  %876 = vmatpush.msra.mxu0 0.0
  %877 = vmatpush.msra.mxu0 0.0
  %878 = vmatpush.msra.mxu0 0.0
  %879 = vmatpush.msra.mxu0 0.0
  %880 = vmatpush.msra.mxu0 0.0
  %881 = vmatpush.msra.mxu0 0.0
  %882 = vmatpush.msra.mxu0 0.0
  %883 = vmatpush.msra.mxu0 0.0
  %884 = vmatpush.msra.mxu0 0.0
  %885 = vmatpush.msra.mxu0 0.0
  %886 = vmatpush.msra.mxu0 0.0
  %887 = vmatpush.msra.mxu0 0.0
  %888 = vmatpush.msra.mxu0 0.0
  %889 = vmatpush.msra.mxu0 %v866
  %890 = vmatpush.msra.mxu0 %v864
  %891 = vmatmul.f32.gmra.mxu0 %v870
  %v892 = vpop.f32.mrf.mxu0
  %v893 = vadd.f32 0.0, %v892
  %894 = vmatmul.f32.gmra.mxu0 %v873
  %v895 = vpop.f32.mrf.mxu0
  %v896 = vadd.f32 0.0, %v895
  %897 = vdwg.mxu0
  %898 = vmatpush.msra.mxu0 0.0
  %899 = vmatpush.msra.mxu0 0.0
  %900 = vmatpush.msra.mxu0 0.0
  %901 = vmatpush.msra.mxu0 0.0
  %902 = vmatpush.msra.mxu0 0.0
  %903 = vmatpush.msra.mxu0 0.0
  %904 = vmatpush.msra.mxu0 0.0
  %905 = vmatpush.msra.mxu0 0.0
  %906 = vmatpush.msra.mxu0 0.0
  %907 = vmatpush.msra.mxu0 0.0
  %908 = vmatpush.msra.mxu0 0.0
  %909 = vmatpush.msra.mxu0 0.0
  %910 = vmatpush.msra.mxu0 0.0
  %911 = vmatpush.msra.mxu0 0.0
  %912 = vmatpush.msra.mxu0 %v867
  %913 = vmatpush.msra.mxu0 %v865
  %914 = vmatmul.f32.gmra.mxu0 %v870
  %v915 = vpop.f32.mrf.mxu0
  %v916 = vadd.f32 0.0, %v915
  %917 = vmatmul.f32.gmra.mxu0 %v873
  %v918 = vpop.f32.mrf.mxu0
  %v919 = vadd.f32 0.0, %v918
  %920 = vdwg.mxu0
  %v922 = vsel %vm757, %v161, 0
  %v925 = vsel %vm757, %v162, 0
  %927 = vmatpush.msra.mxu0 0.0
  %928 = vmatpush.msra.mxu0 0.0
  %929 = vmatpush.msra.mxu0 0.0
  %930 = vmatpush.msra.mxu0 0.0
  %931 = vmatpush.msra.mxu0 0.0
  %932 = vmatpush.msra.mxu0 0.0
  %933 = vmatpush.msra.mxu0 0.0
  %934 = vmatpush.msra.mxu0 0.0
  %935 = vmatpush.msra.mxu0 0.0
  %936 = vmatpush.msra.mxu0 0.0
  %937 = vmatpush.msra.mxu0 0.0
  %938 = vmatpush.msra.mxu0 0.0
  %939 = vmatpush.msra.mxu0 %v171
  %940 = vmatpush.msra.mxu0 %v169
  %941 = vmatpush.msra.mxu0 %v167
  %942 = vmatpush.msra.mxu0 %v165
  %943 = vmatmul.f32.gmra.mxu0 %v922
  %v944 = vpop.f32.mrf.mxu0
  %v945 = vadd.f32 %v782, %v944
  %946 = vmatmul.f32.gmra.mxu0 %v925
  %v947 = vpop.f32.mrf.mxu0
  %v948 = vadd.f32 %v785, %v947
  %949 = vdwg.mxu0
  %950 = vmatpush.msra.mxu0 0.0
  %951 = vmatpush.msra.mxu0 0.0
  %952 = vmatpush.msra.mxu0 0.0
  %953 = vmatpush.msra.mxu0 0.0
  %954 = vmatpush.msra.mxu0 0.0
  %955 = vmatpush.msra.mxu0 0.0
  %956 = vmatpush.msra.mxu0 0.0
  %957 = vmatpush.msra.mxu0 0.0
  %958 = vmatpush.msra.mxu0 0.0
  %959 = vmatpush.msra.mxu0 0.0
  %960 = vmatpush.msra.mxu0 0.0
  %961 = vmatpush.msra.mxu0 0.0
  %962 = vmatpush.msra.mxu0 %v172
  %963 = vmatpush.msra.mxu0 %v170
  %964 = vmatpush.msra.mxu0 %v168
  %965 = vmatpush.msra.mxu0 %v166
  %966 = vmatmul.f32.gmra.mxu0 %v922
  %v967 = vpop.f32.mrf.mxu0
  %v968 = vadd.f32 %v805, %v967
  %969 = vmatmul.f32.gmra.mxu0 %v925
  %v970 = vpop.f32.mrf.mxu0
  %v971 = vadd.f32 %v808, %v970
  %972 = vdwg.mxu0
  %v973 = vadd.f32 %v945, %v893
  %v974 = vadd.f32 %v968, %v916
  %v975 = vadd.f32 %v948, %v896
  %v976 = vadd.f32 %v971, %v919
  %vm977 = vcmp.gt.f32.partialorder %v973, 0.0
  %vm978 = vcmp.gt.f32.partialorder %v974, 0.0
  %vm979 = vcmp.gt.f32.partialorder %v975, 0.0
  %vm980 = vcmp.gt.f32.partialorder %v976, 0.0
  %v981 = vmul.f32 %v973, 0.01
  %v982 = vmul.f32 %v974, 0.01
  %v983 = vmul.f32 %v975, 0.01
  %v984 = vmul.f32 %v976, 0.01
  %v985 = vsel %vm977, %v973, %v981
  %v986 = vsel %vm978, %v974, %v982
  %v987 = vsel %vm979, %v975, %v983
  %v988 = vsel %vm980, %v976, %v984
  %v989 = vmul.f32 %v985, %v78
  %v990 = vmul.f32 %v986, %v79
  %v991 = vmul.f32 %v987, %v80
  %v992 = vmul.f32 %v988, %v81
  %993 = vmatpush.msra.mxu0 %v97
  %994 = vmatpush.msra.mxu0 %v96
  %995 = vmatpush.msra.mxu0 %v95
  %996 = vmatpush.msra.mxu0 %v94
  %997 = vmatpush.msra.mxu0 %v93
  %998 = vmatpush.msra.mxu0 %v92
  %999 = vmatpush.msra.mxu0 %v91
  %1000 = vmatpush.msra.mxu0 %v90
  %1001 = vmatpush.msra.mxu0 %v89
  %1002 = vmatpush.msra.mxu0 %v88
  %1003 = vmatpush.msra.mxu0 %v87
  %1004 = vmatpush.msra.mxu0 %v86
  %1005 = vmatpush.msra.mxu0 %v85
  %1006 = vmatpush.msra.mxu0 %v84
  %1007 = vmatpush.msra.mxu0 %v83
  %1008 = vmatpush.msra.mxu0 %v82
  %1009 = vmatmul.f32.gmra.mxu0 %v989
  %v1010 = vpop.f32.mrf.mxu0
  %v1011 = vadd.f32 0.0, %v1010
  %1012 = vmatmul.f32.gmra.mxu0 %v991
  %v1013 = vpop.f32.mrf.mxu0
  %v1014 = vadd.f32 0.0, %v1013
  %1015 = vdwg.mxu0
  %1016 = vmatpush.msra.mxu0 %v113
  %1017 = vmatpush.msra.mxu0 %v112
  %1018 = vmatpush.msra.mxu0 %v111
  %1019 = vmatpush.msra.mxu0 %v110
  %1020 = vmatpush.msra.mxu0 %v109
  %1021 = vmatpush.msra.mxu0 %v108
  %1022 = vmatpush.msra.mxu0 %v107
  %1023 = vmatpush.msra.mxu0 %v106
  %1024 = vmatpush.msra.mxu0 %v105
  %1025 = vmatpush.msra.mxu0 %v104
  %1026 = vmatpush.msra.mxu0 %v103
  %1027 = vmatpush.msra.mxu0 %v102
  %1028 = vmatpush.msra.mxu0 %v101
  %1029 = vmatpush.msra.mxu0 %v100
  %1030 = vmatpush.msra.mxu0 %v99
  %1031 = vmatpush.msra.mxu0 %v98
  %1032 = vmatmul.f32.gmra.mxu0 %v990
  %v1033 = vpop.f32.mrf.mxu0
  %v1034 = vadd.f32 %v1011, %v1033
  %1035 = vmatmul.f32.gmra.mxu0 %v992
  %v1036 = vpop.f32.mrf.mxu0
  %v1037 = vadd.f32 %v1014, %v1036
  %1038 = vdwg.mxu0
  %v1039 = vld [vmem:[%s10] sm:$0xff]
  %v1040 = vld [vmem:[%s10 + $0x8] sm:$0xff]
  %v1041 = vld [vmem:[%s10 + $0x10] sm:$0xff]
  %v1042 = vld [vmem:[%s10 + $0x18] sm:$0xff]
  %v1043 = vld [vmem:[%s12] sm:$0xff]
  %v1044 = vld [vmem:[%s12 + $0x8] sm:$0xff]
  %v1045 = vld [vmem:[%s12 + $0x10] sm:$0xff]
  %v1046 = vld [vmem:[%s12 + $0x18] sm:$0xff]
  %v1048 = vsel %vm757, %v1034, 0
  %v1051 = vsel %vm757, %v1037, 0
  %1053 = vmatpush.msra.mxu0 0.0
  %1054 = vmatpush.msra.mxu0 0.0
  %1055 = vmatpush.msra.mxu0 0.0
  %1056 = vmatpush.msra.mxu0 0.0
  %1057 = vmatpush.msra.mxu0 0.0
  %1058 = vmatpush.msra.mxu0 0.0
  %1059 = vmatpush.msra.mxu0 0.0
  %1060 = vmatpush.msra.mxu0 0.0
  %1061 = vmatpush.msra.mxu0 0.0
  %1062 = vmatpush.msra.mxu0 0.0
  %1063 = vmatpush.msra.mxu0 0.0
  %1064 = vmatpush.msra.mxu0 0.0
  %1065 = vmatpush.msra.mxu0 %v1046
  %1066 = vmatpush.msra.mxu0 %v1045
  %1067 = vmatpush.msra.mxu0 %v1044
  %1068 = vmatpush.msra.mxu0 %v1043
  %1069 = vmatmul.f32.gmra.mxu0 %v1048
  %v1070 = vpop.f32.mrf.mxu0
  %v1071 = vadd.f32 0.0, %v1070
  %1072 = vmatmul.f32.gmra.mxu0 %v1051
  %v1073 = vpop.f32.mrf.mxu0
  %v1074 = vadd.f32 0.0, %v1073
  %1075 = vdwg.mxu0
  %1076 = vmatpush.msra.mxu0 0.0
  %1077 = vmatpush.msra.mxu0 0.0
  %1078 = vmatpush.msra.mxu0 0.0
  %1079 = vmatpush.msra.mxu0 0.0
  %1080 = vmatpush.msra.mxu0 0.0
  %1081 = vmatpush.msra.mxu0 0.0
  %1082 = vmatpush.msra.mxu0 0.0
  %1083 = vmatpush.msra.mxu0 0.0
  %1084 = vmatpush.msra.mxu0 0.0
  %1085 = vmatpush.msra.mxu0 0.0
  %1086 = vmatpush.msra.mxu0 0.0
  %1087 = vmatpush.msra.mxu0 0.0
  %1088 = vmatpush.msra.mxu0 %v1042
  %1089 = vmatpush.msra.mxu0 %v1041
  %1090 = vmatpush.msra.mxu0 %v1040
  %1091 = vmatpush.msra.mxu0 %v1039
  %1092 = vmatmul.f32.gmra.mxu0 %v759
  %v1093 = vpop.f32.mrf.mxu0
  %v1094 = vadd.f32 %v1071, %v1093
  %1095 = vmatmul.f32.gmra.mxu0 %v762
  %v1096 = vpop.f32.mrf.mxu0
  %v1097 = vadd.f32 %v1074, %v1096
  %1098 = vdwg.mxu0
  %v1099 = vadd.f32 %v1094, %v660
  %v1100 = vadd.f32 %v1097, %v663
  %vm1101 = vcmp.gt.f32.partialorder %v1099, 0.0
  %vm1102 = vcmp.gt.f32.partialorder %v1100, 0.0
  %v1103 = vmul.f32 %v1099, 0.01
  %v1104 = vmul.f32 %v1100, 0.01
  %v1105 = vsel %vm1101, %v1099, %v1103
  %v1106 = vsel %vm1102, %v1100, %v1104
  %s1107 = scalar_lea.vmem %s6, 64
  %v1108 = vld [vmem:[%s1107] sm:$0xff]
  %v1109 = vld [vmem:[%s1107 + $0x8] sm:$0xff]
  %v1110 = vld [vmem:[%s1107 + $0x10] sm:$0xff]
  %v1111 = vld [vmem:[%s1107 + $0x18] sm:$0xff]
  %v1112 = vld [vmem:[%s1107 + $0x20] sm:$0xff]
  %v1113 = vld [vmem:[%s1107 + $0x28] sm:$0xff]
  %v1114 = vld [vmem:[%s1107 + $0x30] sm:$0xff]
  %v1115 = vld [vmem:[%s1107 + $0x38] sm:$0xff]
  %v1117 = vsel %vm757, %v1105, 0
  %v1120 = vsel %vm757, %v1106, 0
  %1122 = vmatpush.msra.mxu0 0.0
  %1123 = vmatpush.msra.mxu0 0.0
  %1124 = vmatpush.msra.mxu0 0.0
  %1125 = vmatpush.msra.mxu0 0.0
  %1126 = vmatpush.msra.mxu0 0.0
  %1127 = vmatpush.msra.mxu0 0.0
  %1128 = vmatpush.msra.mxu0 0.0
  %1129 = vmatpush.msra.mxu0 0.0
  %1130 = vmatpush.msra.mxu0 0.0
  %1131 = vmatpush.msra.mxu0 0.0
  %1132 = vmatpush.msra.mxu0 0.0
  %1133 = vmatpush.msra.mxu0 0.0
  %1134 = vmatpush.msra.mxu0 %v1114
  %1135 = vmatpush.msra.mxu0 %v1112
  %1136 = vmatpush.msra.mxu0 %v1110
  %1137 = vmatpush.msra.mxu0 %v1108
  %1138 = vmatmul.f32.gmra.mxu0 %v1117
  %v1139 = vpop.f32.mrf.mxu0
  %v1140 = vadd.f32 %v281, %v1139
  %1141 = vmatmul.f32.gmra.mxu0 %v1120
  %v1142 = vpop.f32.mrf.mxu0
  %v1143 = vadd.f32 %v284, %v1142
  %1144 = vdwg.mxu0
  %1145 = vmatpush.msra.mxu0 0.0
  %1146 = vmatpush.msra.mxu0 0.0
  %1147 = vmatpush.msra.mxu0 0.0
  %1148 = vmatpush.msra.mxu0 0.0
  %1149 = vmatpush.msra.mxu0 0.0
  %1150 = vmatpush.msra.mxu0 0.0
  %1151 = vmatpush.msra.mxu0 0.0
  %1152 = vmatpush.msra.mxu0 0.0
  %1153 = vmatpush.msra.mxu0 0.0
  %1154 = vmatpush.msra.mxu0 0.0
  %1155 = vmatpush.msra.mxu0 0.0
  %1156 = vmatpush.msra.mxu0 0.0
  %1157 = vmatpush.msra.mxu0 %v1115
  %1158 = vmatpush.msra.mxu0 %v1113
  %1159 = vmatpush.msra.mxu0 %v1111
  %1160 = vmatpush.msra.mxu0 %v1109
  %1161 = vmatmul.f32.gmra.mxu0 %v1117
  %v1162 = vpop.f32.mrf.mxu0
  %v1163 = vadd.f32 %v304, %v1162
  %1164 = vmatmul.f32.gmra.mxu0 %v1120
  %v1165 = vpop.f32.mrf.mxu0
  %v1166 = vadd.f32 %v307, %v1165
  %1167 = vdwg.mxu0
  %s1168 = scalar_lea.vmem %s8, 64
  %v1169 = vld [vmem:[%s1168] sm:$0xff]
  %v1170 = vld [vmem:[%s1168 + $0x8] sm:$0xff]
  %v1171 = vld [vmem:[%s1168 + $0x10] sm:$0xff]
  %v1172 = vld [vmem:[%s1168 + $0x18] sm:$0xff]
  %v1173 = vld [vmem:[%s1168 + $0x20] sm:$0xff]
  %v1174 = vld [vmem:[%s1168 + $0x28] sm:$0xff]
  %v1175 = vld [vmem:[%s1168 + $0x30] sm:$0xff]
  %v1176 = vld [vmem:[%s1168 + $0x38] sm:$0xff]
  %1177 = vmatpush.msra.mxu0 0.0
  %1178 = vmatpush.msra.mxu0 0.0
  %1179 = vmatpush.msra.mxu0 0.0
  %1180 = vmatpush.msra.mxu0 0.0
  %1181 = vmatpush.msra.mxu0 0.0
  %1182 = vmatpush.msra.mxu0 0.0
  %1183 = vmatpush.msra.mxu0 0.0
  %1184 = vmatpush.msra.mxu0 0.0
  %1185 = vmatpush.msra.mxu0 0.0
  %1186 = vmatpush.msra.mxu0 0.0
  %1187 = vmatpush.msra.mxu0 0.0
  %1188 = vmatpush.msra.mxu0 0.0
  %1189 = vmatpush.msra.mxu0 %v1175
  %1190 = vmatpush.msra.mxu0 %v1173
  %1191 = vmatpush.msra.mxu0 %v1171
  %1192 = vmatpush.msra.mxu0 %v1169
  %1193 = vmatmul.f32.gmra.mxu0 %v1117
  %v1194 = vpop.f32.mrf.mxu0
  %v1195 = vadd.f32 %v500, %v1194
  %1196 = vmatmul.f32.gmra.mxu0 %v1120
  %v1197 = vpop.f32.mrf.mxu0
  %v1198 = vadd.f32 %v503, %v1197
  %1199 = vdwg.mxu0
  %1200 = vmatpush.msra.mxu0 0.0
  %1201 = vmatpush.msra.mxu0 0.0
  %1202 = vmatpush.msra.mxu0 0.0
  %1203 = vmatpush.msra.mxu0 0.0
  %1204 = vmatpush.msra.mxu0 0.0
  %1205 = vmatpush.msra.mxu0 0.0
  %1206 = vmatpush.msra.mxu0 0.0
  %1207 = vmatpush.msra.mxu0 0.0
  %1208 = vmatpush.msra.mxu0 0.0
  %1209 = vmatpush.msra.mxu0 0.0
  %1210 = vmatpush.msra.mxu0 0.0
  %1211 = vmatpush.msra.mxu0 0.0
  %1212 = vmatpush.msra.mxu0 %v1176
  %1213 = vmatpush.msra.mxu0 %v1174
  %1214 = vmatpush.msra.mxu0 %v1172
  %1215 = vmatpush.msra.mxu0 %v1170
  %1216 = vmatmul.f32.gmra.mxu0 %v1117
  %v1217 = vpop.f32.mrf.mxu0
  %v1218 = vadd.f32 %v523, %v1217
  %1219 = vmatmul.f32.gmra.mxu0 %v1120
  %v1220 = vpop.f32.mrf.mxu0
  %v1221 = vadd.f32 %v526, %v1220
  %1222 = vdwg.mxu0
  %v1223 = vmul.f32 %v1195, %v114
  %v1224 = vmul.f32 %v1218, %v115
  %v1225 = vmul.f32 %v1198, %v116
  %v1226 = vmul.f32 %v1221, %v117
  %1227 = vmatpush.msra.mxu0 0.0
  %1228 = vmatpush.msra.mxu0 0.0
  %1229 = vmatpush.msra.mxu0 0.0
  %1230 = vmatpush.msra.mxu0 0.0
  %1231 = vmatpush.msra.mxu0 0.0
  %1232 = vmatpush.msra.mxu0 0.0
  %1233 = vmatpush.msra.mxu0 0.0
  %1234 = vmatpush.msra.mxu0 0.0
  %1235 = vmatpush.msra.mxu0 0.0
  %1236 = vmatpush.msra.mxu0 0.0
  %1237 = vmatpush.msra.mxu0 0.0
  %1238 = vmatpush.msra.mxu0 0.0
  %1239 = vmatpush.msra.mxu0 0.0
  %1240 = vmatpush.msra.mxu0 0.0
  %1241 = vmatpush.msra.mxu0 %v1225
  %1242 = vmatpush.msra.mxu0 %v1223
  %1243 = vmatmul.f32.gmra.mxu0 %v870
  %v1244 = vpop.f32.mrf.mxu0
  %v1245 = vadd.f32 0.0, %v1244
  %1246 = vmatmul.f32.gmra.mxu0 %v873
  %v1247 = vpop.f32.mrf.mxu0
  %v1248 = vadd.f32 0.0, %v1247
  %1249 = vdwg.mxu0
  %1250 = vmatpush.msra.mxu0 0.0
  %1251 = vmatpush.msra.mxu0 0.0
  %1252 = vmatpush.msra.mxu0 0.0
  %1253 = vmatpush.msra.mxu0 0.0
  %1254 = vmatpush.msra.mxu0 0.0
  %1255 = vmatpush.msra.mxu0 0.0
  %1256 = vmatpush.msra.mxu0 0.0
  %1257 = vmatpush.msra.mxu0 0.0
  %1258 = vmatpush.msra.mxu0 0.0
  %1259 = vmatpush.msra.mxu0 0.0
  %1260 = vmatpush.msra.mxu0 0.0
  %1261 = vmatpush.msra.mxu0 0.0
  %1262 = vmatpush.msra.mxu0 0.0
  %1263 = vmatpush.msra.mxu0 0.0
  %1264 = vmatpush.msra.mxu0 %v1226
  %1265 = vmatpush.msra.mxu0 %v1224
  %1266 = vmatmul.f32.gmra.mxu0 %v870
  %v1267 = vpop.f32.mrf.mxu0
  %v1268 = vadd.f32 0.0, %v1267
  %1269 = vmatmul.f32.gmra.mxu0 %v873
  %v1270 = vpop.f32.mrf.mxu0
  %v1271 = vadd.f32 0.0, %v1270
  %1272 = vdwg.mxu0
  %1273 = vmatpush.msra.mxu0 0.0
  %1274 = vmatpush.msra.mxu0 0.0
  %1275 = vmatpush.msra.mxu0 0.0
  %1276 = vmatpush.msra.mxu0 0.0
  %1277 = vmatpush.msra.mxu0 0.0
  %1278 = vmatpush.msra.mxu0 0.0
  %1279 = vmatpush.msra.mxu0 0.0
  %1280 = vmatpush.msra.mxu0 0.0
  %1281 = vmatpush.msra.mxu0 0.0
  %1282 = vmatpush.msra.mxu0 0.0
  %1283 = vmatpush.msra.mxu0 0.0
  %1284 = vmatpush.msra.mxu0 0.0
  %1285 = vmatpush.msra.mxu0 %v180
  %1286 = vmatpush.msra.mxu0 %v178
  %1287 = vmatpush.msra.mxu0 %v176
  %1288 = vmatpush.msra.mxu0 %v174
  %1289 = vmatmul.f32.gmra.mxu0 %v922
  %v1290 = vpop.f32.mrf.mxu0
  %v1291 = vadd.f32 %v1140, %v1290
  %1292 = vmatmul.f32.gmra.mxu0 %v925
  %v1293 = vpop.f32.mrf.mxu0
  %v1294 = vadd.f32 %v1143, %v1293
  %1295 = vdwg.mxu0
  %1296 = vmatpush.msra.mxu0 0.0
  %1297 = vmatpush.msra.mxu0 0.0
  %1298 = vmatpush.msra.mxu0 0.0
  %1299 = vmatpush.msra.mxu0 0.0
  %1300 = vmatpush.msra.mxu0 0.0
  %1301 = vmatpush.msra.mxu0 0.0
  %1302 = vmatpush.msra.mxu0 0.0
  %1303 = vmatpush.msra.mxu0 0.0
  %1304 = vmatpush.msra.mxu0 0.0
  %1305 = vmatpush.msra.mxu0 0.0
  %1306 = vmatpush.msra.mxu0 0.0
  %1307 = vmatpush.msra.mxu0 0.0
  %1308 = vmatpush.msra.mxu0 %v181
  %1309 = vmatpush.msra.mxu0 %v179
  %1310 = vmatpush.msra.mxu0 %v177
  %1311 = vmatpush.msra.mxu0 %v175
  %1312 = vmatmul.f32.gmra.mxu0 %v922
  %v1313 = vpop.f32.mrf.mxu0
  %v1314 = vadd.f32 %v1163, %v1313
  %1315 = vmatmul.f32.gmra.mxu0 %v925
  %v1316 = vpop.f32.mrf.mxu0
  %v1317 = vadd.f32 %v1166, %v1316
  %1318 = vdwg.mxu0
  %v1319 = vadd.f32 %v1291, %v1245
  %v1320 = vadd.f32 %v1314, %v1268
  %v1321 = vadd.f32 %v1294, %v1248
  %v1322 = vadd.f32 %v1317, %v1271
  %vm1323 = vcmp.gt.f32.partialorder %v1319, 0.0
  %vm1324 = vcmp.gt.f32.partialorder %v1320, 0.0
  %vm1325 = vcmp.gt.f32.partialorder %v1321, 0.0
  %vm1326 = vcmp.gt.f32.partialorder %v1322, 0.0
  %v1327 = vmul.f32 %v1319, 0.01
  %v1328 = vmul.f32 %v1320, 0.01
  %v1329 = vmul.f32 %v1321, 0.01
  %v1330 = vmul.f32 %v1322, 0.01
  %v1331 = vsel %vm1323, %v1319, %v1327
  %v1332 = vsel %vm1324, %v1320, %v1328
  %v1333 = vsel %vm1325, %v1321, %v1329
  %v1334 = vsel %vm1326, %v1322, %v1330
  %v1335 = vmul.f32 %v1331, %v78
  %v1336 = vmul.f32 %v1332, %v79
  %v1337 = vmul.f32 %v1333, %v80
  %v1338 = vmul.f32 %v1334, %v81
  %1339 = vmatpush.msra.mxu0 %v97
  %1340 = vmatpush.msra.mxu0 %v96
  %1341 = vmatpush.msra.mxu0 %v95
  %1342 = vmatpush.msra.mxu0 %v94
  %1343 = vmatpush.msra.mxu0 %v93
  %1344 = vmatpush.msra.mxu0 %v92
  %1345 = vmatpush.msra.mxu0 %v91
  %1346 = vmatpush.msra.mxu0 %v90
  %1347 = vmatpush.msra.mxu0 %v89
  %1348 = vmatpush.msra.mxu0 %v88
  %1349 = vmatpush.msra.mxu0 %v87
  %1350 = vmatpush.msra.mxu0 %v86
  %1351 = vmatpush.msra.mxu0 %v85
  %1352 = vmatpush.msra.mxu0 %v84
  %1353 = vmatpush.msra.mxu0 %v83
  %1354 = vmatpush.msra.mxu0 %v82
  %1355 = vmatmul.f32.gmra.mxu0 %v1335
  %v1356 = vpop.f32.mrf.mxu0
  %v1357 = vadd.f32 0.0, %v1356
  %1358 = vmatmul.f32.gmra.mxu0 %v1337
  %v1359 = vpop.f32.mrf.mxu0
  %v1360 = vadd.f32 0.0, %v1359
  %1361 = vdwg.mxu0
  %1362 = vmatpush.msra.mxu0 %v113
  %1363 = vmatpush.msra.mxu0 %v112
  %1364 = vmatpush.msra.mxu0 %v111
  %1365 = vmatpush.msra.mxu0 %v110
  %1366 = vmatpush.msra.mxu0 %v109
  %1367 = vmatpush.msra.mxu0 %v108
  %1368 = vmatpush.msra.mxu0 %v107
  %1369 = vmatpush.msra.mxu0 %v106
  %1370 = vmatpush.msra.mxu0 %v105
  %1371 = vmatpush.msra.mxu0 %v104
  %1372 = vmatpush.msra.mxu0 %v103
  %1373 = vmatpush.msra.mxu0 %v102
  %1374 = vmatpush.msra.mxu0 %v101
  %1375 = vmatpush.msra.mxu0 %v100
  %1376 = vmatpush.msra.mxu0 %v99
  %1377 = vmatpush.msra.mxu0 %v98
  %1378 = vmatmul.f32.gmra.mxu0 %v1336
  %v1379 = vpop.f32.mrf.mxu0
  %v1380 = vadd.f32 %v1357, %v1379
  %1381 = vmatmul.f32.gmra.mxu0 %v1338
  %v1382 = vpop.f32.mrf.mxu0
  %v1383 = vadd.f32 %v1360, %v1382
  %1384 = vdwg.mxu0
  %s1385 = scalar_lea.vmem %s10, 32
  %v1386 = vld [vmem:[%s1385] sm:$0xff]
  %v1387 = vld [vmem:[%s1385 + $0x8] sm:$0xff]
  %v1388 = vld [vmem:[%s1385 + $0x10] sm:$0xff]
  %v1389 = vld [vmem:[%s1385 + $0x18] sm:$0xff]
  %s1390 = scalar_lea.vmem %s12, 32
  %v1391 = vld [vmem:[%s1390] sm:$0xff]
  %v1392 = vld [vmem:[%s1390 + $0x8] sm:$0xff]
  %v1393 = vld [vmem:[%s1390 + $0x10] sm:$0xff]
  %v1394 = vld [vmem:[%s1390 + $0x18] sm:$0xff]
  %v1396 = vsel %vm757, %v1380, 0
  %v1399 = vsel %vm757, %v1383, 0
  %1401 = vmatpush.msra.mxu0 0.0
  %1402 = vmatpush.msra.mxu0 0.0
  %1403 = vmatpush.msra.mxu0 0.0
  %1404 = vmatpush.msra.mxu0 0.0
  %1405 = vmatpush.msra.mxu0 0.0
  %1406 = vmatpush.msra.mxu0 0.0
  %1407 = vmatpush.msra.mxu0 0.0
  %1408 = vmatpush.msra.mxu0 0.0
  %1409 = vmatpush.msra.mxu0 0.0
  %1410 = vmatpush.msra.mxu0 0.0
  %1411 = vmatpush.msra.mxu0 0.0
  %1412 = vmatpush.msra.mxu0 0.0
  %1413 = vmatpush.msra.mxu0 %v1394
  %1414 = vmatpush.msra.mxu0 %v1393
  %1415 = vmatpush.msra.mxu0 %v1392
  %1416 = vmatpush.msra.mxu0 %v1391
  %1417 = vmatmul.f32.gmra.mxu0 %v1396
  %v1418 = vpop.f32.mrf.mxu0
  %v1419 = vadd.f32 0.0, %v1418
  %1420 = vmatmul.f32.gmra.mxu0 %v1399
  %v1421 = vpop.f32.mrf.mxu0
  %v1422 = vadd.f32 0.0, %v1421
  %1423 = vdwg.mxu0
  %1424 = vmatpush.msra.mxu0 0.0
  %1425 = vmatpush.msra.mxu0 0.0
  %1426 = vmatpush.msra.mxu0 0.0
  %1427 = vmatpush.msra.mxu0 0.0
  %1428 = vmatpush.msra.mxu0 0.0
  %1429 = vmatpush.msra.mxu0 0.0
  %1430 = vmatpush.msra.mxu0 0.0
  %1431 = vmatpush.msra.mxu0 0.0
  %1432 = vmatpush.msra.mxu0 0.0
  %1433 = vmatpush.msra.mxu0 0.0
  %1434 = vmatpush.msra.mxu0 0.0
  %1435 = vmatpush.msra.mxu0 0.0
  %1436 = vmatpush.msra.mxu0 %v1389
  %1437 = vmatpush.msra.mxu0 %v1388
  %1438 = vmatpush.msra.mxu0 %v1387
  %1439 = vmatpush.msra.mxu0 %v1386
  %1440 = vmatmul.f32.gmra.mxu0 %v1117
  %v1441 = vpop.f32.mrf.mxu0
  %v1442 = vadd.f32 %v1419, %v1441
  %1443 = vmatmul.f32.gmra.mxu0 %v1120
  %v1444 = vpop.f32.mrf.mxu0
  %v1445 = vadd.f32 %v1422, %v1444
  %1446 = vdwg.mxu0
  %v1447 = vadd.f32 %v1442, %v688
  %v1448 = vadd.f32 %v1445, %v691
  %vm1449 = vcmp.gt.f32.partialorder %v1447, 0.0
  %vm1450 = vcmp.gt.f32.partialorder %v1448, 0.0
  %v1451 = vmul.f32 %v1447, 0.01
  %v1452 = vmul.f32 %v1448, 0.01
  %v1453 = vsel %vm1449, %v1447, %v1451
  %v1454 = vsel %vm1450, %v1448, %v1452
  %s1455 = scalar_lea.vmem %s6, 128
  %v1456 = vld [vmem:[%s1455] sm:$0xff]
  %v1457 = vld [vmem:[%s1455 + $0x8] sm:$0xff]
  %v1458 = vld [vmem:[%s1455 + $0x10] sm:$0xff]
  %v1459 = vld [vmem:[%s1455 + $0x18] sm:$0xff]
  %v1460 = vld [vmem:[%s1455 + $0x20] sm:$0xff]
  %v1461 = vld [vmem:[%s1455 + $0x28] sm:$0xff]
  %v1462 = vld [vmem:[%s1455 + $0x30] sm:$0xff]
  %v1463 = vld [vmem:[%s1455 + $0x38] sm:$0xff]
  %v1465 = vsel %vm757, %v1453, 0
  %v1468 = vsel %vm757, %v1454, 0
  %1470 = vmatpush.msra.mxu0 0.0
  %1471 = vmatpush.msra.mxu0 0.0
  %1472 = vmatpush.msra.mxu0 0.0
  %1473 = vmatpush.msra.mxu0 0.0
  %1474 = vmatpush.msra.mxu0 0.0
  %1475 = vmatpush.msra.mxu0 0.0
  %1476 = vmatpush.msra.mxu0 0.0
  %1477 = vmatpush.msra.mxu0 0.0
  %1478 = vmatpush.msra.mxu0 0.0
  %1479 = vmatpush.msra.mxu0 0.0
  %1480 = vmatpush.msra.mxu0 0.0
  %1481 = vmatpush.msra.mxu0 0.0
  %1482 = vmatpush.msra.mxu0 %v1462
  %1483 = vmatpush.msra.mxu0 %v1460
  %1484 = vmatpush.msra.mxu0 %v1458
  %1485 = vmatpush.msra.mxu0 %v1456
  %1486 = vmatmul.f32.gmra.mxu0 %v1465
  %v1487 = vpop.f32.mrf.mxu0
  %v1488 = vadd.f32 %v336, %v1487
  %1489 = vmatmul.f32.gmra.mxu0 %v1468
  %v1490 = vpop.f32.mrf.mxu0
  %v1491 = vadd.f32 %v339, %v1490
  %1492 = vdwg.mxu0
  %1493 = vmatpush.msra.mxu0 0.0
  %1494 = vmatpush.msra.mxu0 0.0
  %1495 = vmatpush.msra.mxu0 0.0
  %1496 = vmatpush.msra.mxu0 0.0
  %1497 = vmatpush.msra.mxu0 0.0
  %1498 = vmatpush.msra.mxu0 0.0
  %1499 = vmatpush.msra.mxu0 0.0
  %1500 = vmatpush.msra.mxu0 0.0
  %1501 = vmatpush.msra.mxu0 0.0
  %1502 = vmatpush.msra.mxu0 0.0
  %1503 = vmatpush.msra.mxu0 0.0
  %1504 = vmatpush.msra.mxu0 0.0
  %1505 = vmatpush.msra.mxu0 %v1463
  %1506 = vmatpush.msra.mxu0 %v1461
  %1507 = vmatpush.msra.mxu0 %v1459
  %1508 = vmatpush.msra.mxu0 %v1457
  %1509 = vmatmul.f32.gmra.mxu0 %v1465
  %v1510 = vpop.f32.mrf.mxu0
  %v1511 = vadd.f32 %v359, %v1510
  %1512 = vmatmul.f32.gmra.mxu0 %v1468
  %v1513 = vpop.f32.mrf.mxu0
  %v1514 = vadd.f32 %v362, %v1513
  %1515 = vdwg.mxu0
  %s1516 = scalar_lea.vmem %s8, 128
  %v1517 = vld [vmem:[%s1516] sm:$0xff]
  %v1518 = vld [vmem:[%s1516 + $0x8] sm:$0xff]
  %v1519 = vld [vmem:[%s1516 + $0x10] sm:$0xff]
  %v1520 = vld [vmem:[%s1516 + $0x18] sm:$0xff]
  %v1521 = vld [vmem:[%s1516 + $0x20] sm:$0xff]
  %v1522 = vld [vmem:[%s1516 + $0x28] sm:$0xff]
  %v1523 = vld [vmem:[%s1516 + $0x30] sm:$0xff]
  %v1524 = vld [vmem:[%s1516 + $0x38] sm:$0xff]
  %1525 = vmatpush.msra.mxu0 0.0
  %1526 = vmatpush.msra.mxu0 0.0
  %1527 = vmatpush.msra.mxu0 0.0
  %1528 = vmatpush.msra.mxu0 0.0
  %1529 = vmatpush.msra.mxu0 0.0
  %1530 = vmatpush.msra.mxu0 0.0
  %1531 = vmatpush.msra.mxu0 0.0
  %1532 = vmatpush.msra.mxu0 0.0
  %1533 = vmatpush.msra.mxu0 0.0
  %1534 = vmatpush.msra.mxu0 0.0
  %1535 = vmatpush.msra.mxu0 0.0
  %1536 = vmatpush.msra.mxu0 0.0
  %1537 = vmatpush.msra.mxu0 %v1523
  %1538 = vmatpush.msra.mxu0 %v1521
  %1539 = vmatpush.msra.mxu0 %v1519
  %1540 = vmatpush.msra.mxu0 %v1517
  %1541 = vmatmul.f32.gmra.mxu0 %v1465
  %v1542 = vpop.f32.mrf.mxu0
  %v1543 = vadd.f32 %v555, %v1542
  %1544 = vmatmul.f32.gmra.mxu0 %v1468
  %v1545 = vpop.f32.mrf.mxu0
  %v1546 = vadd.f32 %v558, %v1545
  %1547 = vdwg.mxu0
  %1548 = vmatpush.msra.mxu0 0.0
  %1549 = vmatpush.msra.mxu0 0.0
  %1550 = vmatpush.msra.mxu0 0.0
  %1551 = vmatpush.msra.mxu0 0.0
  %1552 = vmatpush.msra.mxu0 0.0
  %1553 = vmatpush.msra.mxu0 0.0
  %1554 = vmatpush.msra.mxu0 0.0
  %1555 = vmatpush.msra.mxu0 0.0
  %1556 = vmatpush.msra.mxu0 0.0
  %1557 = vmatpush.msra.mxu0 0.0
  %1558 = vmatpush.msra.mxu0 0.0
  %1559 = vmatpush.msra.mxu0 0.0
  %1560 = vmatpush.msra.mxu0 %v1524
  %1561 = vmatpush.msra.mxu0 %v1522
  %1562 = vmatpush.msra.mxu0 %v1520
  %1563 = vmatpush.msra.mxu0 %v1518
  %1564 = vmatmul.f32.gmra.mxu0 %v1465
  %v1565 = vpop.f32.mrf.mxu0
  %v1566 = vadd.f32 %v578, %v1565
  %1567 = vmatmul.f32.gmra.mxu0 %v1468
  %v1568 = vpop.f32.mrf.mxu0
  %v1569 = vadd.f32 %v581, %v1568
  %1570 = vdwg.mxu0
  %v1571 = vmul.f32 %v1543, %v114
  %v1572 = vmul.f32 %v1566, %v115
  %v1573 = vmul.f32 %v1546, %v116
  %v1574 = vmul.f32 %v1569, %v117
  %1575 = vmatpush.msra.mxu0 0.0
  %1576 = vmatpush.msra.mxu0 0.0
  %1577 = vmatpush.msra.mxu0 0.0
  %1578 = vmatpush.msra.mxu0 0.0
  %1579 = vmatpush.msra.mxu0 0.0
  %1580 = vmatpush.msra.mxu0 0.0
  %1581 = vmatpush.msra.mxu0 0.0
  %1582 = vmatpush.msra.mxu0 0.0
  %1583 = vmatpush.msra.mxu0 0.0
  %1584 = vmatpush.msra.mxu0 0.0
  %1585 = vmatpush.msra.mxu0 0.0
  %1586 = vmatpush.msra.mxu0 0.0
  %1587 = vmatpush.msra.mxu0 0.0
  %1588 = vmatpush.msra.mxu0 0.0
  %1589 = vmatpush.msra.mxu0 %v1573
  %1590 = vmatpush.msra.mxu0 %v1571
  %1591 = vmatmul.f32.gmra.mxu0 %v870
  %v1592 = vpop.f32.mrf.mxu0
  %v1593 = vadd.f32 0.0, %v1592
  %1594 = vmatmul.f32.gmra.mxu0 %v873
  %v1595 = vpop.f32.mrf.mxu0
  %v1596 = vadd.f32 0.0, %v1595
  %1597 = vdwg.mxu0
  %1598 = vmatpush.msra.mxu0 0.0
  %1599 = vmatpush.msra.mxu0 0.0
  %1600 = vmatpush.msra.mxu0 0.0
  %1601 = vmatpush.msra.mxu0 0.0
  %1602 = vmatpush.msra.mxu0 0.0
  %1603 = vmatpush.msra.mxu0 0.0
  %1604 = vmatpush.msra.mxu0 0.0
  %1605 = vmatpush.msra.mxu0 0.0
  %1606 = vmatpush.msra.mxu0 0.0
  %1607 = vmatpush.msra.mxu0 0.0
  %1608 = vmatpush.msra.mxu0 0.0
  %1609 = vmatpush.msra.mxu0 0.0
  %1610 = vmatpush.msra.mxu0 0.0
  %1611 = vmatpush.msra.mxu0 0.0
  %1612 = vmatpush.msra.mxu0 %v1574
  %1613 = vmatpush.msra.mxu0 %v1572
  %1614 = vmatmul.f32.gmra.mxu0 %v870
  %v1615 = vpop.f32.mrf.mxu0
  %v1616 = vadd.f32 0.0, %v1615
  %1617 = vmatmul.f32.gmra.mxu0 %v873
  %v1618 = vpop.f32.mrf.mxu0
  %v1619 = vadd.f32 0.0, %v1618
  %1620 = vdwg.mxu0
  %v1622 = vsel %vm757, %v163, 0
  %v1625 = vsel %vm757, %v164, 0
  %1627 = vmatpush.msra.mxu0 0.0
  %1628 = vmatpush.msra.mxu0 0.0
  %1629 = vmatpush.msra.mxu0 0.0
  %1630 = vmatpush.msra.mxu0 0.0
  %1631 = vmatpush.msra.mxu0 0.0
  %1632 = vmatpush.msra.mxu0 0.0
  %1633 = vmatpush.msra.mxu0 0.0
  %1634 = vmatpush.msra.mxu0 0.0
  %1635 = vmatpush.msra.mxu0 0.0
  %1636 = vmatpush.msra.mxu0 0.0
  %1637 = vmatpush.msra.mxu0 0.0
  %1638 = vmatpush.msra.mxu0 0.0
  %1639 = vmatpush.msra.mxu0 %v189
  %1640 = vmatpush.msra.mxu0 %v187
  %1641 = vmatpush.msra.mxu0 %v185
  %1642 = vmatpush.msra.mxu0 %v183
  %1643 = vmatmul.f32.gmra.mxu0 %v1622
  %v1644 = vpop.f32.mrf.mxu0
  %v1645 = vadd.f32 %v1488, %v1644
  %1646 = vmatmul.f32.gmra.mxu0 %v1625
  %v1647 = vpop.f32.mrf.mxu0
  %v1648 = vadd.f32 %v1491, %v1647
  %1649 = vdwg.mxu0
  %1650 = vmatpush.msra.mxu0 0.0
  %1651 = vmatpush.msra.mxu0 0.0
  %1652 = vmatpush.msra.mxu0 0.0
  %1653 = vmatpush.msra.mxu0 0.0
  %1654 = vmatpush.msra.mxu0 0.0
  %1655 = vmatpush.msra.mxu0 0.0
  %1656 = vmatpush.msra.mxu0 0.0
  %1657 = vmatpush.msra.mxu0 0.0
  %1658 = vmatpush.msra.mxu0 0.0
  %1659 = vmatpush.msra.mxu0 0.0
  %1660 = vmatpush.msra.mxu0 0.0
  %1661 = vmatpush.msra.mxu0 0.0
  %1662 = vmatpush.msra.mxu0 %v190
  %1663 = vmatpush.msra.mxu0 %v188
  %1664 = vmatpush.msra.mxu0 %v186
  %1665 = vmatpush.msra.mxu0 %v184
  %1666 = vmatmul.f32.gmra.mxu0 %v1622
  %v1667 = vpop.f32.mrf.mxu0
  %v1668 = vadd.f32 %v1511, %v1667
  %1669 = vmatmul.f32.gmra.mxu0 %v1625
  %v1670 = vpop.f32.mrf.mxu0
  %v1671 = vadd.f32 %v1514, %v1670
  %1672 = vdwg.mxu0
  %v1673 = vadd.f32 %v1645, %v1593
  %v1674 = vadd.f32 %v1668, %v1616
  %v1675 = vadd.f32 %v1648, %v1596
  %v1676 = vadd.f32 %v1671, %v1619
  %vm1677 = vcmp.gt.f32.partialorder %v1673, 0.0
  %vm1678 = vcmp.gt.f32.partialorder %v1674, 0.0
  %vm1679 = vcmp.gt.f32.partialorder %v1675, 0.0
  %vm1680 = vcmp.gt.f32.partialorder %v1676, 0.0
  %v1681 = vmul.f32 %v1673, 0.01
  %v1682 = vmul.f32 %v1674, 0.01
  %v1683 = vmul.f32 %v1675, 0.01
  %v1684 = vmul.f32 %v1676, 0.01
  %v1685 = vsel %vm1677, %v1673, %v1681
  %v1686 = vsel %vm1678, %v1674, %v1682
  %v1687 = vsel %vm1679, %v1675, %v1683
  %v1688 = vsel %vm1680, %v1676, %v1684
  %v1689 = vmul.f32 %v1685, %v78
  %v1690 = vmul.f32 %v1686, %v79
  %v1691 = vmul.f32 %v1687, %v80
  %v1692 = vmul.f32 %v1688, %v81
  %1693 = vmatpush.msra.mxu0 %v97
  %1694 = vmatpush.msra.mxu0 %v96
  %1695 = vmatpush.msra.mxu0 %v95
  %1696 = vmatpush.msra.mxu0 %v94
  %1697 = vmatpush.msra.mxu0 %v93
  %1698 = vmatpush.msra.mxu0 %v92
  %1699 = vmatpush.msra.mxu0 %v91
  %1700 = vmatpush.msra.mxu0 %v90
  %1701 = vmatpush.msra.mxu0 %v89
  %1702 = vmatpush.msra.mxu0 %v88
  %1703 = vmatpush.msra.mxu0 %v87
  %1704 = vmatpush.msra.mxu0 %v86
  %1705 = vmatpush.msra.mxu0 %v85
  %1706 = vmatpush.msra.mxu0 %v84
  %1707 = vmatpush.msra.mxu0 %v83
  %1708 = vmatpush.msra.mxu0 %v82
  %1709 = vmatmul.f32.gmra.mxu0 %v1689
  %v1710 = vpop.f32.mrf.mxu0
  %v1711 = vadd.f32 0.0, %v1710
  %1712 = vmatmul.f32.gmra.mxu0 %v1691
  %v1713 = vpop.f32.mrf.mxu0
  %v1714 = vadd.f32 0.0, %v1713
  %1715 = vdwg.mxu0
  %1716 = vmatpush.msra.mxu0 %v113
  %1717 = vmatpush.msra.mxu0 %v112
  %1718 = vmatpush.msra.mxu0 %v111
  %1719 = vmatpush.msra.mxu0 %v110
  %1720 = vmatpush.msra.mxu0 %v109
  %1721 = vmatpush.msra.mxu0 %v108
  %1722 = vmatpush.msra.mxu0 %v107
  %1723 = vmatpush.msra.mxu0 %v106
  %1724 = vmatpush.msra.mxu0 %v105
  %1725 = vmatpush.msra.mxu0 %v104
  %1726 = vmatpush.msra.mxu0 %v103
  %1727 = vmatpush.msra.mxu0 %v102
  %1728 = vmatpush.msra.mxu0 %v101
  %1729 = vmatpush.msra.mxu0 %v100
  %1730 = vmatpush.msra.mxu0 %v99
  %1731 = vmatpush.msra.mxu0 %v98
  %1732 = vmatmul.f32.gmra.mxu0 %v1690
  %v1733 = vpop.f32.mrf.mxu0
  %v1734 = vadd.f32 %v1711, %v1733
  %1735 = vmatmul.f32.gmra.mxu0 %v1692
  %v1736 = vpop.f32.mrf.mxu0
  %v1737 = vadd.f32 %v1714, %v1736
  %1738 = vdwg.mxu0
  %s1739 = scalar_lea.vmem %s10, 64
  %v1740 = vld [vmem:[%s1739] sm:$0xff]
  %v1741 = vld [vmem:[%s1739 + $0x8] sm:$0xff]
  %v1742 = vld [vmem:[%s1739 + $0x10] sm:$0xff]
  %v1743 = vld [vmem:[%s1739 + $0x18] sm:$0xff]
  %s1744 = scalar_lea.vmem %s12, 64
  %v1745 = vld [vmem:[%s1744] sm:$0xff]
  %v1746 = vld [vmem:[%s1744 + $0x8] sm:$0xff]
  %v1747 = vld [vmem:[%s1744 + $0x10] sm:$0xff]
  %v1748 = vld [vmem:[%s1744 + $0x18] sm:$0xff]
  %v1750 = vsel %vm757, %v1734, 0
  %v1753 = vsel %vm757, %v1737, 0
  %1755 = vmatpush.msra.mxu0 0.0
  %1756 = vmatpush.msra.mxu0 0.0
  %1757 = vmatpush.msra.mxu0 0.0
  %1758 = vmatpush.msra.mxu0 0.0
  %1759 = vmatpush.msra.mxu0 0.0
  %1760 = vmatpush.msra.mxu0 0.0
  %1761 = vmatpush.msra.mxu0 0.0
  %1762 = vmatpush.msra.mxu0 0.0
  %1763 = vmatpush.msra.mxu0 0.0
  %1764 = vmatpush.msra.mxu0 0.0
  %1765 = vmatpush.msra.mxu0 0.0
  %1766 = vmatpush.msra.mxu0 0.0
  %1767 = vmatpush.msra.mxu0 %v1748
  %1768 = vmatpush.msra.mxu0 %v1747
  %1769 = vmatpush.msra.mxu0 %v1746
  %1770 = vmatpush.msra.mxu0 %v1745
  %1771 = vmatmul.f32.gmra.mxu0 %v1750
  %v1772 = vpop.f32.mrf.mxu0
  %v1773 = vadd.f32 0.0, %v1772
  %1774 = vmatmul.f32.gmra.mxu0 %v1753
  %v1775 = vpop.f32.mrf.mxu0
  %v1776 = vadd.f32 0.0, %v1775
  %1777 = vdwg.mxu0
  %1778 = vmatpush.msra.mxu0 0.0
  %1779 = vmatpush.msra.mxu0 0.0
  %1780 = vmatpush.msra.mxu0 0.0
  %1781 = vmatpush.msra.mxu0 0.0
  %1782 = vmatpush.msra.mxu0 0.0
  %1783 = vmatpush.msra.mxu0 0.0
  %1784 = vmatpush.msra.mxu0 0.0
  %1785 = vmatpush.msra.mxu0 0.0
  %1786 = vmatpush.msra.mxu0 0.0
  %1787 = vmatpush.msra.mxu0 0.0
  %1788 = vmatpush.msra.mxu0 0.0
  %1789 = vmatpush.msra.mxu0 0.0
  %1790 = vmatpush.msra.mxu0 %v1743
  %1791 = vmatpush.msra.mxu0 %v1742
  %1792 = vmatpush.msra.mxu0 %v1741
  %1793 = vmatpush.msra.mxu0 %v1740
  %1794 = vmatmul.f32.gmra.mxu0 %v1465
  %v1795 = vpop.f32.mrf.mxu0
  %v1796 = vadd.f32 %v1773, %v1795
  %1797 = vmatmul.f32.gmra.mxu0 %v1468
  %v1798 = vpop.f32.mrf.mxu0
  %v1799 = vadd.f32 %v1776, %v1798
  %1800 = vdwg.mxu0
  %v1801 = vadd.f32 %v1796, %v716
  %v1802 = vadd.f32 %v1799, %v719
  %vm1803 = vcmp.gt.f32.partialorder %v1801, 0.0
  %vm1804 = vcmp.gt.f32.partialorder %v1802, 0.0
  %v1805 = vmul.f32 %v1801, 0.01
  %v1806 = vmul.f32 %v1802, 0.01
  %v1807 = vsel %vm1803, %v1801, %v1805
  %v1808 = vsel %vm1804, %v1802, %v1806
  %s1809 = scalar_lea.vmem %s6, 192
  %v1810 = vld [vmem:[%s1809] sm:$0xff]
  %v1811 = vld [vmem:[%s1809 + $0x8] sm:$0xff]
  %v1812 = vld [vmem:[%s1809 + $0x10] sm:$0xff]
  %v1813 = vld [vmem:[%s1809 + $0x18] sm:$0xff]
  %v1814 = vld [vmem:[%s1809 + $0x20] sm:$0xff]
  %v1815 = vld [vmem:[%s1809 + $0x28] sm:$0xff]
  %v1816 = vld [vmem:[%s1809 + $0x30] sm:$0xff]
  %v1817 = vld [vmem:[%s1809 + $0x38] sm:$0xff]
  %v1819 = vsel %vm757, %v1807, 0
  %v1822 = vsel %vm757, %v1808, 0
  %1824 = vmatpush.msra.mxu0 0.0
  %1825 = vmatpush.msra.mxu0 0.0
  %1826 = vmatpush.msra.mxu0 0.0
  %1827 = vmatpush.msra.mxu0 0.0
  %1828 = vmatpush.msra.mxu0 0.0
  %1829 = vmatpush.msra.mxu0 0.0
  %1830 = vmatpush.msra.mxu0 0.0
  %1831 = vmatpush.msra.mxu0 0.0
  %1832 = vmatpush.msra.mxu0 0.0
  %1833 = vmatpush.msra.mxu0 0.0
  %1834 = vmatpush.msra.mxu0 0.0
  %1835 = vmatpush.msra.mxu0 0.0
  %1836 = vmatpush.msra.mxu0 %v1816
  %1837 = vmatpush.msra.mxu0 %v1814
  %1838 = vmatpush.msra.mxu0 %v1812
  %1839 = vmatpush.msra.mxu0 %v1810
  %1840 = vmatmul.f32.gmra.mxu0 %v1819
  %v1841 = vpop.f32.mrf.mxu0
  %v1842 = vadd.f32 %v391, %v1841
  %1843 = vmatmul.f32.gmra.mxu0 %v1822
  %v1844 = vpop.f32.mrf.mxu0
  %v1845 = vadd.f32 %v394, %v1844
  %1846 = vdwg.mxu0
  %1847 = vmatpush.msra.mxu0 0.0
  %1848 = vmatpush.msra.mxu0 0.0
  %1849 = vmatpush.msra.mxu0 0.0
  %1850 = vmatpush.msra.mxu0 0.0
  %1851 = vmatpush.msra.mxu0 0.0
  %1852 = vmatpush.msra.mxu0 0.0
  %1853 = vmatpush.msra.mxu0 0.0
  %1854 = vmatpush.msra.mxu0 0.0
  %1855 = vmatpush.msra.mxu0 0.0
  %1856 = vmatpush.msra.mxu0 0.0
  %1857 = vmatpush.msra.mxu0 0.0
  %1858 = vmatpush.msra.mxu0 0.0
  %1859 = vmatpush.msra.mxu0 %v1817
  %1860 = vmatpush.msra.mxu0 %v1815
  %1861 = vmatpush.msra.mxu0 %v1813
  %1862 = vmatpush.msra.mxu0 %v1811
  %1863 = vmatmul.f32.gmra.mxu0 %v1819
  %v1864 = vpop.f32.mrf.mxu0
  %v1865 = vadd.f32 %v414, %v1864
  %1866 = vmatmul.f32.gmra.mxu0 %v1822
  %v1867 = vpop.f32.mrf.mxu0
  %v1868 = vadd.f32 %v417, %v1867
  %1869 = vdwg.mxu0
  %s1870 = scalar_lea.vmem %s8, 192
  %v1871 = vld [vmem:[%s1870] sm:$0xff]
  %v1872 = vld [vmem:[%s1870 + $0x8] sm:$0xff]
  %v1873 = vld [vmem:[%s1870 + $0x10] sm:$0xff]
  %v1874 = vld [vmem:[%s1870 + $0x18] sm:$0xff]
  %v1875 = vld [vmem:[%s1870 + $0x20] sm:$0xff]
  %v1876 = vld [vmem:[%s1870 + $0x28] sm:$0xff]
  %v1877 = vld [vmem:[%s1870 + $0x30] sm:$0xff]
  %v1878 = vld [vmem:[%s1870 + $0x38] sm:$0xff]
  %1879 = vmatpush.msra.mxu0 0.0
  %1880 = vmatpush.msra.mxu0 0.0
  %1881 = vmatpush.msra.mxu0 0.0
  %1882 = vmatpush.msra.mxu0 0.0
  %1883 = vmatpush.msra.mxu0 0.0
  %1884 = vmatpush.msra.mxu0 0.0
  %1885 = vmatpush.msra.mxu0 0.0
  %1886 = vmatpush.msra.mxu0 0.0
  %1887 = vmatpush.msra.mxu0 0.0
  %1888 = vmatpush.msra.mxu0 0.0
  %1889 = vmatpush.msra.mxu0 0.0
  %1890 = vmatpush.msra.mxu0 0.0
  %1891 = vmatpush.msra.mxu0 %v1877
  %1892 = vmatpush.msra.mxu0 %v1875
  %1893 = vmatpush.msra.mxu0 %v1873
  %1894 = vmatpush.msra.mxu0 %v1871
  %1895 = vmatmul.f32.gmra.mxu0 %v1819
  %v1896 = vpop.f32.mrf.mxu0
  %v1897 = vadd.f32 %v610, %v1896
  %1898 = vmatmul.f32.gmra.mxu0 %v1822
  %v1899 = vpop.f32.mrf.mxu0
  %v1900 = vadd.f32 %v613, %v1899
  %1901 = vdwg.mxu0
  %1902 = vmatpush.msra.mxu0 0.0
  %1903 = vmatpush.msra.mxu0 0.0
  %1904 = vmatpush.msra.mxu0 0.0
  %1905 = vmatpush.msra.mxu0 0.0
  %1906 = vmatpush.msra.mxu0 0.0
  %1907 = vmatpush.msra.mxu0 0.0
  %1908 = vmatpush.msra.mxu0 0.0
  %1909 = vmatpush.msra.mxu0 0.0
  %1910 = vmatpush.msra.mxu0 0.0
  %1911 = vmatpush.msra.mxu0 0.0
  %1912 = vmatpush.msra.mxu0 0.0
  %1913 = vmatpush.msra.mxu0 0.0
  %1914 = vmatpush.msra.mxu0 %v1878
  %1915 = vmatpush.msra.mxu0 %v1876
  %1916 = vmatpush.msra.mxu0 %v1874
  %1917 = vmatpush.msra.mxu0 %v1872
  %1918 = vmatmul.f32.gmra.mxu0 %v1819
  %v1919 = vpop.f32.mrf.mxu0
  %v1920 = vadd.f32 %v633, %v1919
  %1921 = vmatmul.f32.gmra.mxu0 %v1822
  %v1922 = vpop.f32.mrf.mxu0
  %v1923 = vadd.f32 %v636, %v1922
  %1924 = vdwg.mxu0
  %v1925 = vmul.f32 %v1897, %v114
  %v1926 = vmul.f32 %v1920, %v115
  %v1927 = vmul.f32 %v1900, %v116
  %v1928 = vmul.f32 %v1923, %v117
  %1929 = vmatpush.msra.mxu0 0.0
  %1930 = vmatpush.msra.mxu0 0.0
  %1931 = vmatpush.msra.mxu0 0.0
  %1932 = vmatpush.msra.mxu0 0.0
  %1933 = vmatpush.msra.mxu0 0.0
  %1934 = vmatpush.msra.mxu0 0.0
  %1935 = vmatpush.msra.mxu0 0.0
  %1936 = vmatpush.msra.mxu0 0.0
  %1937 = vmatpush.msra.mxu0 0.0
  %1938 = vmatpush.msra.mxu0 0.0
  %1939 = vmatpush.msra.mxu0 0.0
  %1940 = vmatpush.msra.mxu0 0.0
  %1941 = vmatpush.msra.mxu0 0.0
  %1942 = vmatpush.msra.mxu0 0.0
  %1943 = vmatpush.msra.mxu0 %v1927
  %1944 = vmatpush.msra.mxu0 %v1925
  %1945 = vmatmul.f32.gmra.mxu0 %v870
  %v1946 = vpop.f32.mrf.mxu0
  %v1947 = vadd.f32 0.0, %v1946
  %1948 = vmatmul.f32.gmra.mxu0 %v873
  %v1949 = vpop.f32.mrf.mxu0
  %v1950 = vadd.f32 0.0, %v1949
  %1951 = vdwg.mxu0
  %1952 = vmatpush.msra.mxu0 0.0
  %1953 = vmatpush.msra.mxu0 0.0
  %1954 = vmatpush.msra.mxu0 0.0
  %1955 = vmatpush.msra.mxu0 0.0
  %1956 = vmatpush.msra.mxu0 0.0
  %1957 = vmatpush.msra.mxu0 0.0
  %1958 = vmatpush.msra.mxu0 0.0
  %1959 = vmatpush.msra.mxu0 0.0
  %1960 = vmatpush.msra.mxu0 0.0
  %1961 = vmatpush.msra.mxu0 0.0
  %1962 = vmatpush.msra.mxu0 0.0
  %1963 = vmatpush.msra.mxu0 0.0
  %1964 = vmatpush.msra.mxu0 0.0
  %1965 = vmatpush.msra.mxu0 0.0
  %1966 = vmatpush.msra.mxu0 %v1928
  %1967 = vmatpush.msra.mxu0 %v1926
  %1968 = vmatmul.f32.gmra.mxu0 %v870
  %v1969 = vpop.f32.mrf.mxu0
  %v1970 = vadd.f32 0.0, %v1969
  %1971 = vmatmul.f32.gmra.mxu0 %v873
  %v1972 = vpop.f32.mrf.mxu0
  %v1973 = vadd.f32 0.0, %v1972
  %1974 = vdwg.mxu0
  %1975 = vmatpush.msra.mxu0 0.0
  %1976 = vmatpush.msra.mxu0 0.0
  %1977 = vmatpush.msra.mxu0 0.0
  %1978 = vmatpush.msra.mxu0 0.0
  %1979 = vmatpush.msra.mxu0 0.0
  %1980 = vmatpush.msra.mxu0 0.0
  %1981 = vmatpush.msra.mxu0 0.0
  %1982 = vmatpush.msra.mxu0 0.0
  %1983 = vmatpush.msra.mxu0 0.0
  %1984 = vmatpush.msra.mxu0 0.0
  %1985 = vmatpush.msra.mxu0 0.0
  %1986 = vmatpush.msra.mxu0 0.0
  %1987 = vmatpush.msra.mxu0 %v198
  %1988 = vmatpush.msra.mxu0 %v196
  %1989 = vmatpush.msra.mxu0 %v194
  %1990 = vmatpush.msra.mxu0 %v192
  %1991 = vmatmul.f32.gmra.mxu0 %v1622
  %v1992 = vpop.f32.mrf.mxu0
  %v1993 = vadd.f32 %v1842, %v1992
  %1994 = vmatmul.f32.gmra.mxu0 %v1625
  %v1995 = vpop.f32.mrf.mxu0
  %v1996 = vadd.f32 %v1845, %v1995
  %1997 = vdwg.mxu0
  %1998 = vmatpush.msra.mxu0 0.0
  %1999 = vmatpush.msra.mxu0 0.0
  %2000 = vmatpush.msra.mxu0 0.0
  %2001 = vmatpush.msra.mxu0 0.0
  %2002 = vmatpush.msra.mxu0 0.0
  %2003 = vmatpush.msra.mxu0 0.0
  %2004 = vmatpush.msra.mxu0 0.0
  %2005 = vmatpush.msra.mxu0 0.0
  %2006 = vmatpush.msra.mxu0 0.0
  %2007 = vmatpush.msra.mxu0 0.0
  %2008 = vmatpush.msra.mxu0 0.0
  %2009 = vmatpush.msra.mxu0 0.0
  %2010 = vmatpush.msra.mxu0 %v199
  %2011 = vmatpush.msra.mxu0 %v197
  %2012 = vmatpush.msra.mxu0 %v195
  %2013 = vmatpush.msra.mxu0 %v193
  %2014 = vmatmul.f32.gmra.mxu0 %v1622
  %v2015 = vpop.f32.mrf.mxu0
  %v2016 = vadd.f32 %v1865, %v2015
  %2017 = vmatmul.f32.gmra.mxu0 %v1625
  %v2018 = vpop.f32.mrf.mxu0
  %v2019 = vadd.f32 %v1868, %v2018
  %2020 = vdwg.mxu0
  %v2021 = vadd.f32 %v1993, %v1947
  %v2022 = vadd.f32 %v2016, %v1970
  %v2023 = vadd.f32 %v1996, %v1950
  %v2024 = vadd.f32 %v2019, %v1973
  %vm2025 = vcmp.gt.f32.partialorder %v2021, 0.0
  %vm2026 = vcmp.gt.f32.partialorder %v2022, 0.0
  %vm2027 = vcmp.gt.f32.partialorder %v2023, 0.0
  %vm2028 = vcmp.gt.f32.partialorder %v2024, 0.0
  %v2029 = vmul.f32 %v2021, 0.01
  %v2030 = vmul.f32 %v2022, 0.01
  %v2031 = vmul.f32 %v2023, 0.01
  %v2032 = vmul.f32 %v2024, 0.01
  %v2033 = vsel %vm2025, %v2021, %v2029
  %v2034 = vsel %vm2026, %v2022, %v2030
  %v2035 = vsel %vm2027, %v2023, %v2031
  %v2036 = vsel %vm2028, %v2024, %v2032
  %v2037 = vmul.f32 %v2033, %v78
  %v2038 = vmul.f32 %v2034, %v79
  %v2039 = vmul.f32 %v2035, %v80
  %v2040 = vmul.f32 %v2036, %v81
  %2041 = vmatpush.msra.mxu0 %v97
  %2042 = vmatpush.msra.mxu0 %v96
  %2043 = vmatpush.msra.mxu0 %v95
  %2044 = vmatpush.msra.mxu0 %v94
  %2045 = vmatpush.msra.mxu0 %v93
  %2046 = vmatpush.msra.mxu0 %v92
  %2047 = vmatpush.msra.mxu0 %v91
  %2048 = vmatpush.msra.mxu0 %v90
  %2049 = vmatpush.msra.mxu0 %v89
  %2050 = vmatpush.msra.mxu0 %v88
  %2051 = vmatpush.msra.mxu0 %v87
  %2052 = vmatpush.msra.mxu0 %v86
  %2053 = vmatpush.msra.mxu0 %v85
  %2054 = vmatpush.msra.mxu0 %v84
  %2055 = vmatpush.msra.mxu0 %v83
  %2056 = vmatpush.msra.mxu0 %v82
  %2057 = vmatmul.f32.gmra.mxu0 %v2037
  %v2058 = vpop.f32.mrf.mxu0
  %v2059 = vadd.f32 0.0, %v2058
  %2060 = vmatmul.f32.gmra.mxu0 %v2039
  %v2061 = vpop.f32.mrf.mxu0
  %v2062 = vadd.f32 0.0, %v2061
  %2063 = vdwg.mxu0
  %2064 = vmatpush.msra.mxu0 %v113
  %2065 = vmatpush.msra.mxu0 %v112
  %2066 = vmatpush.msra.mxu0 %v111
  %2067 = vmatpush.msra.mxu0 %v110
  %2068 = vmatpush.msra.mxu0 %v109
  %2069 = vmatpush.msra.mxu0 %v108
  %2070 = vmatpush.msra.mxu0 %v107
  %2071 = vmatpush.msra.mxu0 %v106
  %2072 = vmatpush.msra.mxu0 %v105
  %2073 = vmatpush.msra.mxu0 %v104
  %2074 = vmatpush.msra.mxu0 %v103
  %2075 = vmatpush.msra.mxu0 %v102
  %2076 = vmatpush.msra.mxu0 %v101
  %2077 = vmatpush.msra.mxu0 %v100
  %2078 = vmatpush.msra.mxu0 %v99
  %2079 = vmatpush.msra.mxu0 %v98
  %2080 = vmatmul.f32.gmra.mxu0 %v2038
  %v2081 = vpop.f32.mrf.mxu0
  %v2082 = vadd.f32 %v2059, %v2081
  %2083 = vmatmul.f32.gmra.mxu0 %v2040
  %v2084 = vpop.f32.mrf.mxu0
  %v2085 = vadd.f32 %v2062, %v2084
  %2086 = vdwg.mxu0
  %s2087 = scalar_lea.vmem %s10, 96
  %v2088 = vld [vmem:[%s2087] sm:$0xff]
  %v2089 = vld [vmem:[%s2087 + $0x8] sm:$0xff]
  %v2090 = vld [vmem:[%s2087 + $0x10] sm:$0xff]
  %v2091 = vld [vmem:[%s2087 + $0x18] sm:$0xff]
  %s2092 = scalar_lea.vmem %s12, 96
  %v2093 = vld [vmem:[%s2092] sm:$0xff]
  %v2094 = vld [vmem:[%s2092 + $0x8] sm:$0xff]
  %v2095 = vld [vmem:[%s2092 + $0x10] sm:$0xff]
  %v2096 = vld [vmem:[%s2092 + $0x18] sm:$0xff]
  %v2098 = vsel %vm757, %v2082, 0
  %v2101 = vsel %vm757, %v2085, 0
  %2103 = vmatpush.msra.mxu0 0.0
  %2104 = vmatpush.msra.mxu0 0.0
  %2105 = vmatpush.msra.mxu0 0.0
  %2106 = vmatpush.msra.mxu0 0.0
  %2107 = vmatpush.msra.mxu0 0.0
  %2108 = vmatpush.msra.mxu0 0.0
  %2109 = vmatpush.msra.mxu0 0.0
  %2110 = vmatpush.msra.mxu0 0.0
  %2111 = vmatpush.msra.mxu0 0.0
  %2112 = vmatpush.msra.mxu0 0.0
  %2113 = vmatpush.msra.mxu0 0.0
  %2114 = vmatpush.msra.mxu0 0.0
  %2115 = vmatpush.msra.mxu0 %v2096
  %2116 = vmatpush.msra.mxu0 %v2095
  %2117 = vmatpush.msra.mxu0 %v2094
  %2118 = vmatpush.msra.mxu0 %v2093
  %2119 = vmatmul.f32.gmra.mxu0 %v2098
  %v2120 = vpop.f32.mrf.mxu0
  %v2121 = vadd.f32 0.0, %v2120
  %2122 = vmatmul.f32.gmra.mxu0 %v2101
  %v2123 = vpop.f32.mrf.mxu0
  %v2124 = vadd.f32 0.0, %v2123
  %2125 = vdwg.mxu0
  %2126 = vmatpush.msra.mxu0 0.0
  %2127 = vmatpush.msra.mxu0 0.0
  %2128 = vmatpush.msra.mxu0 0.0
  %2129 = vmatpush.msra.mxu0 0.0
  %2130 = vmatpush.msra.mxu0 0.0
  %2131 = vmatpush.msra.mxu0 0.0
  %2132 = vmatpush.msra.mxu0 0.0
  %2133 = vmatpush.msra.mxu0 0.0
  %2134 = vmatpush.msra.mxu0 0.0
  %2135 = vmatpush.msra.mxu0 0.0
  %2136 = vmatpush.msra.mxu0 0.0
  %2137 = vmatpush.msra.mxu0 0.0
  %2138 = vmatpush.msra.mxu0 %v2091
  %2139 = vmatpush.msra.mxu0 %v2090
  %2140 = vmatpush.msra.mxu0 %v2089
  %2141 = vmatpush.msra.mxu0 %v2088
  %2142 = vmatmul.f32.gmra.mxu0 %v1819
  %v2143 = vpop.f32.mrf.mxu0
  %v2144 = vadd.f32 %v2121, %v2143
  %2145 = vmatmul.f32.gmra.mxu0 %v1822
  %v2146 = vpop.f32.mrf.mxu0
  %v2147 = vadd.f32 %v2124, %v2146
  %2148 = vdwg.mxu0
  %v2149 = vadd.f32 %v2144, %v744
  %v2150 = vadd.f32 %v2147, %v747
  %vm2151 = vcmp.gt.f32.partialorder %v2149, 0.0
  %vm2152 = vcmp.gt.f32.partialorder %v2150, 0.0
  %v2153 = vmul.f32 %v2149, 0.01
  %v2154 = vmul.f32 %v2150, 0.01
  %v2155 = vsel %vm2151, %v2149, %v2153
  %v2156 = vsel %vm2152, %v2150, %v2154
  %v2157 = vld [vmem:[%s18] sm:$0x1]
  %v2158 = vld [vmem:[%s16] sm:$0x3]
  %v2160 = vsel %vm868, %v2158, 0
  %2162 = vmatpush.msra.mxu0 0.0
  %2163 = vmatpush.msra.mxu0 0.0
  %2164 = vmatpush.msra.mxu0 0.0
  %2165 = vmatpush.msra.mxu0 0.0
  %2166 = vmatpush.msra.mxu0 0.0
  %2167 = vmatpush.msra.mxu0 0.0
  %2168 = vmatpush.msra.mxu0 0.0
  %2169 = vmatpush.msra.mxu0 0.0
  %2170 = vmatpush.msra.mxu0 0.0
  %2171 = vmatpush.msra.mxu0 0.0
  %2172 = vmatpush.msra.mxu0 0.0
  %2173 = vmatpush.msra.mxu0 0.0
  %2174 = vmatpush.msra.mxu0 0.0
  %2175 = vmatpush.msra.mxu0 0.0
  %2176 = vmatpush.msra.mxu0 %v2156
  %2177 = vmatpush.msra.mxu0 %v2155
  %2178 = vmatmul.f32.gmra.mxu0 %v2160
  %v2179 = vpop.f32.mrf.mxu0
  %v2180 = vadd.f32 0.0, %v2179
  %2181 = vdwg.mxu0
  %v2182 = vld [vmem:[%s17] sm:$0xff]
  %v2183 = vld [vmem:[%s17 + $0x8] sm:$0xff]
  %v2184 = vld [vmem:[%s17 + $0x10] sm:$0xff]
  %v2185 = vld [vmem:[%s17 + $0x18] sm:$0xff]
  %v2187 = vsel %vm757, %v2180, 0
  %2189 = vmatpush.msra.mxu0 0.0
  %2190 = vmatpush.msra.mxu0 0.0
  %2191 = vmatpush.msra.mxu0 0.0
  %2192 = vmatpush.msra.mxu0 0.0
  %2193 = vmatpush.msra.mxu0 0.0
  %2194 = vmatpush.msra.mxu0 0.0
  %2195 = vmatpush.msra.mxu0 0.0
  %2196 = vmatpush.msra.mxu0 0.0
  %2197 = vmatpush.msra.mxu0 0.0
  %2198 = vmatpush.msra.mxu0 0.0
  %2199 = vmatpush.msra.mxu0 0.0
  %2200 = vmatpush.msra.mxu0 0.0
  %2201 = vmatpush.msra.mxu0 %v2185
  %2202 = vmatpush.msra.mxu0 %v2184
  %2203 = vmatpush.msra.mxu0 %v2183
  %2204 = vmatpush.msra.mxu0 %v2182
  %2205 = vmatmul.f32.gmra.mxu0 %v2187
  %v2206 = vpop.f32.mrf.mxu0
  %v2207 = vadd.f32 0.0, %v2206
  %2208 = vdwg.mxu0
  %v2210 = vperm.slane %v2157, 0
  %v2212 = vadd.f32 %v2210, %v2207
  %s2213 = scalar_lea.vmem %s16, 2
  %v2214 = vld [vmem:[%s2213] sm:$0x3]
  %v2216 = vsel %vm868, %v2214, 0
  %2218 = vmatpush.msra.mxu0 0.0
  %2219 = vmatpush.msra.mxu0 0.0
  %2220 = vmatpush.msra.mxu0 0.0
  %2221 = vmatpush.msra.mxu0 0.0
  %2222 = vmatpush.msra.mxu0 0.0
  %2223 = vmatpush.msra.mxu0 0.0
  %2224 = vmatpush.msra.mxu0 0.0
  %2225 = vmatpush.msra.mxu0 0.0
  %2226 = vmatpush.msra.mxu0 0.0
  %2227 = vmatpush.msra.mxu0 0.0
  %2228 = vmatpush.msra.mxu0 0.0
  %2229 = vmatpush.msra.mxu0 0.0
  %2230 = vmatpush.msra.mxu0 0.0
  %2231 = vmatpush.msra.mxu0 0.0
  %2232 = vmatpush.msra.mxu0 %v2156
  %2233 = vmatpush.msra.mxu0 %v2155
  %2234 = vmatmul.f32.gmra.mxu0 %v2216
  %v2235 = vpop.f32.mrf.mxu0
  %v2236 = vadd.f32 0.0, %v2235
  %2237 = vdwg.mxu0
  %s2238 = scalar_lea.vmem %s17, 32
  %v2239 = vld [vmem:[%s2238] sm:$0xff]
  %v2240 = vld [vmem:[%s2238 + $0x8] sm:$0xff]
  %v2241 = vld [vmem:[%s2238 + $0x10] sm:$0xff]
  %v2242 = vld [vmem:[%s2238 + $0x18] sm:$0xff]
  %v2244 = vsel %vm757, %v2236, 0
  %2246 = vmatpush.msra.mxu0 0.0
  %2247 = vmatpush.msra.mxu0 0.0
  %2248 = vmatpush.msra.mxu0 0.0
  %2249 = vmatpush.msra.mxu0 0.0
  %2250 = vmatpush.msra.mxu0 0.0
  %2251 = vmatpush.msra.mxu0 0.0
  %2252 = vmatpush.msra.mxu0 0.0
  %2253 = vmatpush.msra.mxu0 0.0
  %2254 = vmatpush.msra.mxu0 0.0
  %2255 = vmatpush.msra.mxu0 0.0
  %2256 = vmatpush.msra.mxu0 0.0
  %2257 = vmatpush.msra.mxu0 0.0
  %2258 = vmatpush.msra.mxu0 %v2242
  %2259 = vmatpush.msra.mxu0 %v2241
  %2260 = vmatpush.msra.mxu0 %v2240
  %2261 = vmatpush.msra.mxu0 %v2239
  %2262 = vmatmul.f32.gmra.mxu0 %v2244
  %v2263 = vpop.f32.mrf.mxu0
  %v2264 = vadd.f32 0.0, %v2263
  %2265 = vdwg.mxu0
  %v2266 = vadd.f32 %v2212, %v2264
  %s2267 = scalar_lea.vmem %s16, 4
  %v2268 = vld [vmem:[%s2267] sm:$0x3]
  %v2270 = vsel %vm868, %v2268, 0
  %2272 = vmatpush.msra.mxu0 0.0
  %2273 = vmatpush.msra.mxu0 0.0
  %2274 = vmatpush.msra.mxu0 0.0
  %2275 = vmatpush.msra.mxu0 0.0
  %2276 = vmatpush.msra.mxu0 0.0
  %2277 = vmatpush.msra.mxu0 0.0
  %2278 = vmatpush.msra.mxu0 0.0
  %2279 = vmatpush.msra.mxu0 0.0
  %2280 = vmatpush.msra.mxu0 0.0
  %2281 = vmatpush.msra.mxu0 0.0
  %2282 = vmatpush.msra.mxu0 0.0
  %2283 = vmatpush.msra.mxu0 0.0
  %2284 = vmatpush.msra.mxu0 0.0
  %2285 = vmatpush.msra.mxu0 0.0
  %2286 = vmatpush.msra.mxu0 %v2156
  %2287 = vmatpush.msra.mxu0 %v2155
  %2288 = vmatmul.f32.gmra.mxu0 %v2270
  %v2289 = vpop.f32.mrf.mxu0
  %v2290 = vadd.f32 0.0, %v2289
  %2291 = vdwg.mxu0
  %s2292 = scalar_lea.vmem %s17, 64
  %v2293 = vld [vmem:[%s2292] sm:$0xff]
  %v2294 = vld [vmem:[%s2292 + $0x8] sm:$0xff]
  %v2295 = vld [vmem:[%s2292 + $0x10] sm:$0xff]
  %v2296 = vld [vmem:[%s2292 + $0x18] sm:$0xff]
  %v2298 = vsel %vm757, %v2290, 0
  %2300 = vmatpush.msra.mxu0 0.0
  %2301 = vmatpush.msra.mxu0 0.0
  %2302 = vmatpush.msra.mxu0 0.0
  %2303 = vmatpush.msra.mxu0 0.0
  %2304 = vmatpush.msra.mxu0 0.0
  %2305 = vmatpush.msra.mxu0 0.0
  %2306 = vmatpush.msra.mxu0 0.0
  %2307 = vmatpush.msra.mxu0 0.0
  %2308 = vmatpush.msra.mxu0 0.0
  %2309 = vmatpush.msra.mxu0 0.0
  %2310 = vmatpush.msra.mxu0 0.0
  %2311 = vmatpush.msra.mxu0 0.0
  %2312 = vmatpush.msra.mxu0 %v2296
  %2313 = vmatpush.msra.mxu0 %v2295
  %2314 = vmatpush.msra.mxu0 %v2294
  %2315 = vmatpush.msra.mxu0 %v2293
  %2316 = vmatmul.f32.gmra.mxu0 %v2298
  %v2317 = vpop.f32.mrf.mxu0
  %v2318 = vadd.f32 0.0, %v2317
  %2319 = vdwg.mxu0
  %v2320 = vadd.f32 %v2266, %v2318
  %v2321 = vld [vmem:[%s19] sm:$0xff]
  %v2322 = vld [vmem:[%s19 + $0x8] sm:$0xff]
  %v2323 = vld [vmem:[%s19 + $0x10] sm:$0xff]
  %v2324 = vld [vmem:[%s19 + $0x18] sm:$0xff]
  %v2325 = vld [vmem:[%s19 + $0x20] sm:$0xff]
  %v2326 = vld [vmem:[%s19 + $0x28] sm:$0xff]
  %v2327 = vld [vmem:[%s19 + $0x30] sm:$0xff]
  %v2328 = vld [vmem:[%s19 + $0x38] sm:$0xff]
  %v2329 = vld [vmem:[%s19 + $0x40] sm:$0xff]
  %v2330 = vld [vmem:[%s19 + $0x48] sm:$0xff]
  %v2331 = vld [vmem:[%s19 + $0x50] sm:$0xff]
  %v2332 = vld [vmem:[%s19 + $0x58] sm:$0xff]
  %v2333 = vld [vmem:[%s19 + $0x60] sm:$0xff]
  %v2334 = vld [vmem:[%s19 + $0x68] sm:$0xff]
  %v2335 = vld [vmem:[%s19 + $0x70] sm:$0xff]
  %v2336 = vld [vmem:[%s19 + $0x78] sm:$0xff]
  %v2337 = vld [vmem:[%s20] sm:$0x1]
  %v2339 = vperm.slane %v2337, 0
  %2341 = vmatpush.msra.mxu0 %v2336
  %2342 = vmatpush.msra.mxu0 %v2335
  %2343 = vmatpush.msra.mxu0 %v2334
  %2344 = vmatpush.msra.mxu0 %v2333
  %2345 = vmatpush.msra.mxu0 %v2332
  %2346 = vmatpush.msra.mxu0 %v2331
  %2347 = vmatpush.msra.mxu0 %v2330
  %2348 = vmatpush.msra.mxu0 %v2329
  %2349 = vmatpush.msra.mxu0 %v2328
  %2350 = vmatpush.msra.mxu0 %v2327
  %2351 = vmatpush.msra.mxu0 %v2326
  %2352 = vmatpush.msra.mxu0 %v2325
  %2353 = vmatpush.msra.mxu0 %v2324
  %2354 = vmatpush.msra.mxu0 %v2323
  %2355 = vmatpush.msra.mxu0 %v2322
  %2356 = vmatpush.msra.mxu0 %v2321
  %2357 = vmatmul.f32.gmra.mxu0 %v2320
  %v2358 = vpop.f32.mrf.mxu0
  %v2359 = vadd.f32 %v2339, %v2358
  %2360 = vdwg.mxu0
  %v2361 = vld [vmem:[%s21] sm:$0xff]
  %v2362 = vld [vmem:[%s21 + $0x8] sm:$0xff]
  %v2363 = vld [vmem:[%s21 + $0x10] sm:$0xff]
  %v2364 = vld [vmem:[%s21 + $0x18] sm:$0xff]
  %v2365 = vld [vmem:[%s21 + $0x20] sm:$0xff]
  %v2366 = vld [vmem:[%s21 + $0x28] sm:$0xff]
  %v2367 = vld [vmem:[%s21 + $0x30] sm:$0xff]
  %v2368 = vld [vmem:[%s21 + $0x38] sm:$0xff]
  %v2369 = vld [vmem:[#allocation2] sm:$0x1]
  %v2371 = vperm.slane %v2369, 0
  %vm2373 = vcmask 523264
  %v2375 = vsel %vm2373, %v2359, 0
  %2377 = vmatpush.msra.mxu0 0.0
  %2378 = vmatpush.msra.mxu0 0.0
  %2379 = vmatpush.msra.mxu0 0.0
  %2380 = vmatpush.msra.mxu0 0.0
  %2381 = vmatpush.msra.mxu0 0.0
  %2382 = vmatpush.msra.mxu0 0.0
  %2383 = vmatpush.msra.mxu0 0.0
  %2384 = vmatpush.msra.mxu0 0.0
  %2385 = vmatpush.msra.mxu0 %v2368
  %2386 = vmatpush.msra.mxu0 %v2367
  %2387 = vmatpush.msra.mxu0 %v2366
  %2388 = vmatpush.msra.mxu0 %v2365
  %2389 = vmatpush.msra.mxu0 %v2364
  %2390 = vmatpush.msra.mxu0 %v2363
  %2391 = vmatpush.msra.mxu0 %v2362
  %2392 = vmatpush.msra.mxu0 %v2361
  %2393 = vmatmul.f32.gmra.mxu0 %v2375
  %v2394 = vpop.f32.mrf.mxu0
  %v2395 = vadd.f32 %v2371, %v2394
  %2396 = vdwg.mxu0
  %v2397 = vxor.u32 %v2395, 2147483648
  %v2398 = vmul.f32 %v2397, 1.442695
  %v2399 = vpow.pop %v2398
  %v2400 = vadd.f32 %v2399, 1.0
  %v2401 = vrcp.pop %v2400
  %v2402 = vmul.f32 %v2400, %v2401
  %v2403 = vsub.f32 1.0, %v2402
  %v2404 = vmul.f32 %v2401, %v2403
  %v2405 = vadd.f32 %v2401, %v2404
  %vm2406 = vweird.f32 %v2400
  %vm2407 = vweird.f32 %v2401
  %vm2408 = vmor %vm2406, %vm2407
  %v2409 = vsel %vm2408, %v2401, %v2405
  %v2410 = vand.u32 2147483647, %v2400
  %vm2411 = vcmp.eq.f32.partialorder %v2410, 8.507059e+37
  %v2412 = vand.u32 %v2400, 2147483648
  %v2413 = vor.u32 1.1754944e-38, %v2412
  %v2414 = vsel %vm2411, %v2413, %v2409
  %v2415 = vmul.f32 1.0, %v2414
  %vm2416 = vcmask 1024
  %2417 = vst.msk [vmem:[%s23] sm:$0x3] %vm2416, %v2415
  // Predicated region
  $region94: #{seiral_gnn_4input_forward.1} parent=0 // pred_check
    _
  $region95: #{seiral_gnn_4input_forward.1} parent=0 // pred_check_branch
    %2419 = sbr.rel (0) target = $region97
  $region96: #{seiral_gnn_4input_forward.1} parent=0 // pred_region
    _
  $region97: #{seiral_gnn_4input_forward.1} parent=0 // pred_fallthru
    _
  // Predicated region
  $region98: #{seiral_gnn_4input_forward.1} parent=0 // pred_check
    _
  $region99: #{seiral_gnn_4input_forward.1} parent=0 // pred_check_branch
    %2421 = sbr.rel (0) target = $region101
  $region100: #{seiral_gnn_4input_forward.1} parent=0 // pred_region
    _
  $region101: #{seiral_gnn_4input_forward.1} parent=0 // pred_fallthru
    _

</llo_original>
